<compile_context>
chip_gen: v5e
topology: v5e:2x2
jax: 0.10.0
libtpu: 0.0.40
codegen_flags: <defaults>
</compile_context>

<pallas_src>
import functools

import jax
import jax.numpy as jnp
import numpy as np
from jax.experimental import pallas as pl
from jax.experimental.pallas import tpu as pltpu

LANE = 128


def _round_up(x, m):
    return ((x + m - 1) // m) * m


def _masked_layernorm(h, gamma, beta, lane_mask, true_h, eps=1e-5):
    """LayerNorm over the first `true_h` lanes (padded lanes of h are exactly 0)."""
    inv_h = 1.0 / float(true_h)
    mu = jnp.sum(h, axis=-1, keepdims=True) * inv_h          # padded lanes add 0
    c = (h - mu) * lane_mask
    var = jnp.sum(c * c, axis=-1, keepdims=True) * inv_h
    # gamma/beta are zero in padded lanes -> padded lanes of the result stay 0.
    return c * jax.lax.rsqrt(var + eps) * gamma + beta


def transition_gnn_kernel(x_ref, act_ref, w_ref, b_ref, out_ref, nf_ref,
                          *, H, D, A, compute_dtype):
    f32 = jnp.float32
    bt, K, _ = x_ref.shape
    Hp = w_ref.shape[-1]
    Dp = nf_ref.shape[-1]

    # ---- packed biases / LayerNorm params (single resident (16, Hp) array) ----
    b_all = b_ref[...]
    e_b1, e_b2, e_g, e_be, e_b3 = (b_all[0:1], b_all[1:2], b_all[2:3],
                                   b_all[3:4], b_all[4:5])
    n_b1, n_b2, n_g, n_be, n_b3 = (b_all[5:6], b_all[6:7], b_all[7:8],
                                   b_all[8:9], b_all[9:10])

    # Hoisted LayerNorm lane-validity mask (reused by both LayerNorms).
    ln_mask = (jax.lax.broadcasted_iota(jnp.int32, (1, Hp), 1) < H).astype(f32)

    # ---- node features [x | action one-hot | 0] packed into Dp lanes (scratch) ----
    nf_ref[...] = jnp.zeros_like(nf_ref)
    x = x_ref[...].astype(f32)                                   # (bt, K, D)
    idx = act_ref[...]                                           # (bt, 2) int32
    node_id = idx[:, 0:1].reshape(bt, 1, 1)
    slot_id = idx[:, 1:2].reshape(bt, 1, 1)
    kio = jax.lax.broadcasted_iota(jnp.int32, (bt, K, A), 1)
    sio = jax.lax.broadcasted_iota(jnp.int32, (bt, K, A), 2)
    onehot = ((kio == node_id) & (sio == slot_id)).astype(f32)   # (bt, K, A)
    nf_ref[:, :, 0:D] = x
    nf_ref[:, :, D:D + A] = onehot
    nf_c = nf_ref[...].reshape(bt * K, Dp).astype(compute_dtype)

    # ---- edge MLP -------------------------------------------------------------
    # Layer 1 at node granularity, broadcast to ordered pairs:
    #   h1[b,i,j] = x[b,i] @ W1[:D] + x[b,j] @ W1[D:2D] + b1
    # (the one-hot lanes multiply zero weight rows, so nf is reusable here).
    xs = jnp.dot(nf_c, w_ref[0], preferred_element_type=f32).reshape(bt, K, Hp)
    xt = jnp.dot(nf_c, w_ref[1], preferred_element_type=f32).reshape(bt, K, Hp)
    h = xs[:, :, None, :] + xt[:, None, :, :] + e_b1             # (bt, K, K, Hp)
    h = jnp.maximum(h, 0.0).reshape(bt * K * K, Hp)
    h = jnp.dot(h.astype(compute_dtype), w_ref[2], preferred_element_type=f32) + e_b2
    h = _masked_layernorm(h, e_g, e_be, ln_mask, H)
    h = jnp.maximum(h, 0.0)
    edge = jnp.dot(h.astype(compute_dtype), w_ref[3], preferred_element_type=f32) + e_b3

    # ---- unsorted_segment_sum by source node == off-diagonal sum over targets ----
    kk_i = jax.lax.broadcasted_iota(jnp.int32, (1, K, K, 1), 1)
    kk_j = jax.lax.broadcasted_iota(jnp.int32, (1, K, K, 1), 2)
    offdiag = (kk_i != kk_j).astype(f32)                          # (1, K, K, 1)
    agg = jnp.sum(edge.reshape(bt, K, K, Hp) * offdiag, axis=2)   # (bt, K, Hp)
    agg = agg.reshape(bt * K, Hp)                                 # stays f32

    # ---- node MLP (first layer split: [x|action] part + agg part) --------------
    g = (jnp.dot(nf_c, w_ref[4], preferred_element_type=f32)
         + jnp.dot(agg, w_ref[5].astype(f32), preferred_element_type=f32)
         + n_b1)
    g = jnp.maximum(g, 0.0)
    g = jnp.dot(g.astype(compute_dtype), w_ref[6], preferred_element_type=f32) + n_b2
    g = _masked_layernorm(g, n_g, n_be, ln_mask, H)
    g = jnp.maximum(g, 0.0)
    out = jnp.dot(g.astype(compute_dtype), w_ref[7], preferred_element_type=f32) + n_b3
    out_ref[...] = out[:, :D].reshape(bt, K, D).astype(out_ref.dtype)


def init_params(key, input_dim, hidden_dim, action_dim):
    """Deterministic PyTorch-style (uniform +-1/sqrt(fan_in)) Linear init."""
    def linear(k, fan_in, fan_out):
        kw, kb = jax.random.split(k)
        bound = 1.0 / float(np.sqrt(fan_in))
        w = jax.random.uniform(kw, (fan_in, fan_out), jnp.float32, -bound, bound)
        b = jax.random.uniform(kb, (1, fan_out), jnp.float32, -bound, bound)
        return w, b

    D, H, A = input_dim, hidden_dim, action_dim
    keys = jax.random.split(key, 6)
    e_w1, e_b1 = linear(keys[0], 2 * D, H)
    e_w2, e_b2 = linear(keys[1], H, H)
    e_w3, e_b3 = linear(keys[2], H, H)
    n_w1, n_b1 = linear(keys[3], H + D + A, H)
    n_w2, n_b2 = linear(keys[4], H, H)
    n_w3, n_b3 = linear(keys[5], H, D)
    ones = jnp.ones((1, H), jnp.float32)
    zeros = jnp.zeros((1, H), jnp.float32)
    return dict(
        e_w1=e_w1, e_b1=e_b1, e_w2=e_w2, e_b2=e_b2, e_g=ones, e_bt=zeros,
        e_w3=e_w3, e_b3=e_b3,
        n_w1=n_w1, n_b1=n_b1, n_w2=n_w2, n_b2=n_b2, n_g=ones, n_bt=zeros,
        n_w3=n_w3, n_b3=n_b3,
    )


def _pack_params(params, D, A, H, Dp, Hp, compute_dtype):
    """Pack all weights into one (8,Hp,Hp) array and all bias/LN vecs into (16,Hp)."""
    f32 = jnp.float32

    def pad2(w, rows, cols):
        out = jnp.zeros((rows, cols), f32)
        return out.at[:w.shape[0], :w.shape[1]].set(w)

    w_stack = jnp.stack([
        pad2(params['e_w1'][:D], Dp, Hp),        # 0: edge l1, source half
        pad2(params['e_w1'][D:], Dp, Hp),        # 1: edge l1, target half
        pad2(params['e_w2'], Hp, Hp),            # 2: edge l2
        pad2(params['e_w3'], Hp, Hp),            # 3: edge l3
        pad2(params['n_w1'][:D + A], Dp, Hp),    # 4: node l1, [x | action] half
        pad2(params['n_w1'][D + A:], Hp, Hp),    # 5: node l1, agg half
        pad2(params['n_w2'], Hp, Hp),            # 6: node l2
        pad2(params['n_w3'], Hp, Dp),            # 7: node l3
    ]).astype(compute_dtype)

    def pad_row(v, width):
        out = jnp.zeros((width,), f32)
        return out.at[:v.size].set(v.reshape(-1))

    rows = [params['e_b1'], params['e_b2'], params['e_g'], params['e_bt'],
            params['e_b3'], params['n_b1'], params['n_b2'], params['n_g'],
            params['n_bt'], params['n_b3']]
    b_stack = jnp.stack([pad_row(r, Hp) for r in rows]
                        + [jnp.zeros((Hp,), f32)] * 6)            # (16, Hp)
    return w_stack, b_stack


def transition_gnn_forward(states, action, params, action_dim, *,
                           compute_dtype=jnp.bfloat16, batch_tile=8):
    """Pallas-backed forward.  states: (B, K, D) f32, action: (B,) int in [0, A*K).

    batch_tile must be a multiple of 8.  On v7x keep B/batch_tile >= 2 so the
    parallel grid can be split across the 2 TensorCores; per-step VMEM is
    ~0.1 MiB per batch element, so 8..128 is safe on every generation.
    """
    B, K, D = states.shape
    A = action_dim
    H = params['e_w2'].shape[0]
    assert batch_tile >= 8 and batch_tile % 8 == 0, "batch_tile must be a multiple of 8"
    Hp = _round_up(max(H, D + A), LANE)
    Dp = Hp                                       # uniform 128-lane padded width
    f32 = jnp.float32

    bt = batch_tile
    Bp = _round_up(B, bt)

    # ---- tiny streamed inputs (no lane padding, no one-hot in HBM) ----
    x_in = states.astype(f32)
    act = action.astype(jnp.int32)
    act_ids = jnp.stack([act // A, act % A], axis=-1)             # (B, 2) int32
    if Bp != B:
        x_in = jnp.concatenate([x_in, jnp.zeros((Bp - B, K, D), f32)], axis=0)
        act_ids = jnp.concatenate(
            [act_ids, jnp.zeros((Bp - B, 2), jnp.int32)], axis=0)

    w_stack, b_stack = _pack_params(params, D, A, H, Dp, Hp, compute_dtype)

    kernel = functools.partial(transition_gnn_kernel, H=H, D=D, A=A,
                               compute_dtype=compute_dtype)

    flops_per_b = (2 * K * Dp * Hp * 3            # edge l1 (src+tgt) + node l1 (x|act)
                   + 2 * K * K * Hp * Hp * 2      # edge l2 + l3
                   + 2 * K * Hp * Hp * 2          # node l1 (agg) + node l2
                   + 2 * K * Hp * Dp)             # node l3
    bytes_acc = (x_in.size * 4 + act_ids.size * 4 + Bp * K * D * 4
                 + w_stack.size * w_stack.dtype.itemsize + b_stack.size * 4)

    out = pl.pallas_call(
        kernel,
        out_shape=jax.ShapeDtypeStruct((Bp, K, D), f32),
        grid=(Bp // bt,),
        in_specs=[
            pl.BlockSpec((bt, K, D), lambda b: (b, 0, 0)),    # states (streamed, unpadded)
            pl.BlockSpec((bt, 2), lambda b: (b, 0)),          # action [node, slot] ids
            pl.BlockSpec((8, Hp, Hp), lambda b: (0, 0, 0)),   # packed weights (resident)
            pl.BlockSpec((16, Hp), lambda b: (0, 0)),         # packed biases / LN params
        ],
        out_specs=pl.BlockSpec((bt, K, D), lambda b: (b, 0, 0)),
        scratch_shapes=[pltpu.VMEM((bt, K, Dp), f32)],        # packed node features
        compiler_params=pltpu.CompilerParams(
            dimension_semantics=("parallel",)),
        cost_estimate=pl.CostEstimate(flops=int(Bp * flops_per_b),
                                      transcendentals=0,
                                      bytes_accessed=int(bytes_acc)),
    )(x_in, act_ids, w_stack, b_stack)
    return out[:B] if Bp != B else out


def reference_forward(states, action, params, action_dim):
    """Pure-JAX f32 reference mirroring the PyTorch edge-list implementation."""
    B, K, D = states.shape
    A = action_dim
    x = states.reshape(B * K, D).astype(jnp.float32)

    ii, jj = jnp.nonzero(jnp.ones((K, K)) - jnp.eye(K), size=K * (K - 1))
    offs = (jnp.arange(B) * K)[:, None]
    rows = (ii[None, :] + offs).reshape(-1)
    cols = (jj[None, :] + offs).reshape(-1)

    def mlp3(h, w1, b1, w2, b2, g, bt, w3, b3):
        h = jnp.maximum(h @ w1 + b1, 0.0)
        h = h @ w2 + b2
        mu = h.mean(-1, keepdims=True)
        var = ((h - mu) ** 2).mean(-1, keepdims=True)
        h = (h - mu) / jnp.sqrt(var + 1e-5) * g + bt
        h = jnp.maximum(h, 0.0)
        return h @ w3 + b3

    e_in = jnp.concatenate([x[rows], x[cols]], axis=-1)
    edge_attr = mlp3(e_in, params['e_w1'], params['e_b1'], params['e_w2'],
                     params['e_b2'], params['e_g'], params['e_bt'],
                     params['e_w3'], params['e_b3'])
    agg = jax.ops.segment_sum(edge_attr, rows, num_segments=B * K)

    act_oh = jax.nn.one_hot(action, A * K, dtype=jnp.float32).reshape(B * K, A)
    n_in = jnp.concatenate([x, act_oh, agg], axis=-1)
    out = mlp3(n_in, params['n_w1'], params['n_b1'], params['n_w2'],
               params['n_b2'], params['n_g'], params['n_bt'],
               params['n_w3'], params['n_b3'])
    return out.reshape(B, K, D)


if __name__ == "__main__":
    B, K, D, H, A = 16, 5, 4, 32, 4   # batch, num_objects, input_dim, hidden_dim, action_dim

    key = jax.random.PRNGKey(0)
    k_states, k_action, k_params = jax.random.split(key, 3)
    states = jax.random.normal(k_states, (B, K, D), jnp.float32)
    action = jax.random.randint(k_action, (B,), 0, A * K)   # copy_action=False: index in [0, A*K)
    params = init_params(k_params, D, H, A)

    ref = reference_forward(states, action, params, A)

    # f32 path: exact semantic check against the PyTorch-equivalent reference.
    out_f32 = jax.block_until_ready(
        transition_gnn_forward(states, action, params, A,
                               compute_dtype=jnp.float32, batch_tile=8))
    assert out_f32.shape == (B, K, D)
    np.testing.assert_allclose(np.asarray(out_f32), np.asarray(ref),
                               rtol=1e-4, atol=1e-4)

    # bf16-MXU path (v6e/v7x perf config): f32 elementwise/LN, bf16 matmul operands.
    out_bf16 = jax.block_until_ready(
        transition_gnn_forward(states, action, params, A,
                               compute_dtype=jnp.bfloat16, batch_tile=8))
    assert out_bf16.shape == (B, K, D)
    np.testing.assert_allclose(np.asarray(out_bf16), np.asarray(ref),
                               rtol=5e-2, atol=5e-2)

    # Ragged batch (B not a multiple of batch_tile) exercises the pad/slice path.
    Br = 6
    out_r = jax.block_until_ready(
        transition_gnn_forward(states[:Br], action[:Br], params, A,
                               compute_dtype=jnp.float32, batch_tile=8))
    assert out_r.shape == (Br, K, D)
    np.testing.assert_allclose(np.asarray(out_r), np.asarray(ref[:Br]),
                               rtol=1e-4, atol=1e-4)

    print("KERNEL_OK")
</pallas_src>

<mosaic_0001>
module attributes {stable_mosaic.version = 11 : i64} {
  func.func @transition_gnn_kernel(%arg0: i32, %arg1: memref<8x5x4xf32, #tpu.memory_space<vmem>>, %arg2: memref<8x2xi32, #tpu.memory_space<vmem>>, %arg3: memref<8x128x128xf32, #tpu.memory_space<vmem>>, %arg4: memref<16x128xf32, #tpu.memory_space<vmem>>, %arg5: memref<8x5x4xf32, #tpu.memory_space<vmem>>, %arg6: memref<8x5x128xf32, #tpu.memory_space<vmem>>) attributes {dimension_semantics = [#tpu.dimension_semantics<parallel>], iteration_bounds = array<i64: 2>, scalar_prefetch = 0 : i64, scratch_operands = 1 : i64, tpu.core_type = #tpu.core_type<tc>, window_params = [{transform_indices = @transform_0, window_bounds = array<i64: 8, 5, 4>}, {transform_indices = @transform_1, window_bounds = array<i64: 8, 2>}, {pipeline_mode = #tpu.pipeline_mode<synchronous>, transform_indices = @transform_2, window_bounds = array<i64: 8, 128, 128>}, {pipeline_mode = #tpu.pipeline_mode<synchronous>, transform_indices = @transform_3, window_bounds = array<i64: 16, 128>}, {transform_indices = @transform_4, window_bounds = array<i64: 8, 5, 4>}]} {
    %c0 = arith.constant 0 : index
    %c0_0 = arith.constant 0 : index
    %0 = vector.load %arg4[%c0, %c0_0] : memref<16x128xf32, #tpu.memory_space<vmem>>, vector<16x128xf32>
    %1 = vector.extract_strided_slice %0 {offsets = [0, 0], sizes = [1, 128], strides = [1, 1]} : vector<16x128xf32> to vector<1x128xf32>
    %2 = vector.extract_strided_slice %0 {offsets = [1, 0], sizes = [1, 128], strides = [1, 1]} : vector<16x128xf32> to vector<1x128xf32>
    %3 = vector.extract_strided_slice %0 {offsets = [2, 0], sizes = [1, 128], strides = [1, 1]} : vector<16x128xf32> to vector<1x128xf32>
    %4 = vector.extract_strided_slice %0 {offsets = [3, 0], sizes = [1, 128], strides = [1, 1]} : vector<16x128xf32> to vector<1x128xf32>
    %5 = vector.extract_strided_slice %0 {offsets = [4, 0], sizes = [1, 128], strides = [1, 1]} : vector<16x128xf32> to vector<1x128xf32>
    %6 = vector.extract_strided_slice %0 {offsets = [5, 0], sizes = [1, 128], strides = [1, 1]} : vector<16x128xf32> to vector<1x128xf32>
    %7 = vector.extract_strided_slice %0 {offsets = [6, 0], sizes = [1, 128], strides = [1, 1]} : vector<16x128xf32> to vector<1x128xf32>
    %8 = vector.extract_strided_slice %0 {offsets = [7, 0], sizes = [1, 128], strides = [1, 1]} : vector<16x128xf32> to vector<1x128xf32>
    %9 = vector.extract_strided_slice %0 {offsets = [8, 0], sizes = [1, 128], strides = [1, 1]} : vector<16x128xf32> to vector<1x128xf32>
    %10 = vector.extract_strided_slice %0 {offsets = [9, 0], sizes = [1, 128], strides = [1, 1]} : vector<16x128xf32> to vector<1x128xf32>
    %11 = tpu.iota {dimensions = array<i32: 1>} : vector<1x128xi32>
    %c32_i32 = arith.constant 32 : i32
    %12 = vector.broadcast %c32_i32 : i32 to vector<1x128xi32>
    %13 = arith.cmpi slt, %11, %12 : vector<1x128xi32>
    %14 = arith.extui %13 : vector<1x128xi1> to vector<1x128xi32>
    %15 = arith.sitofp %14 : vector<1x128xi32> to vector<1x128xf32>
    %cst = arith.constant 0.000000e+00 : f32
    %16 = vector.broadcast %cst : f32 to vector<8x5x128xf32>
    %c0_1 = arith.constant 0 : index
    %c0_2 = arith.constant 0 : index
    %c0_3 = arith.constant 0 : index
    %17 = vector.load %arg6[%c0_1, %c0_2, %c0_3] : memref<8x5x128xf32, #tpu.memory_space<vmem>>, vector<8x5x128xf32>
    tpu.vector_store %arg6[%c0_1, %c0_2, %c0_3], %16 {strides = array<i32>} : memref<8x5x128xf32, #tpu.memory_space<vmem>>, vector<8x5x128xf32>,
    %c0_4 = arith.constant 0 : index
    %c0_5 = arith.constant 0 : index
    %c0_6 = arith.constant 0 : index
    %18 = vector.load %arg1[%c0_4, %c0_5, %c0_6] : memref<8x5x4xf32, #tpu.memory_space<vmem>>, vector<8x5x4xf32>
    %c0_7 = arith.constant 0 : index
    %c0_8 = arith.constant 0 : index
    %19 = vector.load %arg2[%c0_7, %c0_8] : memref<8x2xi32, #tpu.memory_space<vmem>>, vector<8x2xi32>
    %20 = vector.extract_strided_slice %19 {offsets = [0, 0], sizes = [8, 1], strides = [1, 1]} : vector<8x2xi32> to vector<8x1xi32>
    %21 = vector.shape_cast %20 : vector<8x1xi32> to vector<8x1x1xi32>
    %22 = vector.extract_strided_slice %19 {offsets = [0, 1], sizes = [8, 1], strides = [1, 1]} : vector<8x2xi32> to vector<8x1xi32>
    %23 = vector.shape_cast %22 : vector<8x1xi32> to vector<8x1x1xi32>
    %24 = tpu.iota {dimensions = array<i32: 1>} : vector<8x5x4xi32>
    %25 = tpu.iota {dimensions = array<i32: 2>} : vector<8x5x4xi32>
    %26 = vector.broadcast %21 : vector<8x1x1xi32> to vector<8x5x4xi32>
    %27 = arith.cmpi eq, %24, %26 : vector<8x5x4xi32>
    %28 = vector.broadcast %23 : vector<8x1x1xi32> to vector<8x5x4xi32>
    %29 = arith.cmpi eq, %25, %28 : vector<8x5x4xi32>
    %30 = arith.andi %27, %29 : vector<8x5x4xi1>
    %31 = arith.extui %30 : vector<8x5x4xi1> to vector<8x5x4xi32>
    %32 = arith.sitofp %31 : vector<8x5x4xi32> to vector<8x5x4xf32>
    %c0_9 = arith.constant 0 : index
    %c0_10 = arith.constant 0 : index
    %c0_11 = arith.constant 0 : index
    %33 = vector.load %arg6[%c0_9, %c0_10, %c0_11] : memref<8x5x128xf32, #tpu.memory_space<vmem>>, vector<8x5x4xf32>
    tpu.vector_store %arg6[%c0_9, %c0_10, %c0_11], %18 {strides = array<i32>} : memref<8x5x128xf32, #tpu.memory_space<vmem>>, vector<8x5x4xf32>,
    %c0_12 = arith.constant 0 : index
    %c0_13 = arith.constant 0 : index
    %c4 = arith.constant 4 : index
    %34 = vector.load %arg6[%c0_12, %c0_13, %c4] : memref<8x5x128xf32, #tpu.memory_space<vmem>>, vector<8x5x4xf32>
    tpu.vector_store %arg6[%c0_12, %c0_13, %c4], %32 {strides = array<i32>} : memref<8x5x128xf32, #tpu.memory_space<vmem>>, vector<8x5x4xf32>,
    %c0_14 = arith.constant 0 : index
    %c0_15 = arith.constant 0 : index
    %c0_16 = arith.constant 0 : index
    %35 = vector.load %arg6[%c0_14, %c0_15, %c0_16] : memref<8x5x128xf32, #tpu.memory_space<vmem>>, vector<8x5x128xf32>
    %36 = vector.shape_cast %35 : vector<8x5x128xf32> to vector<40x128xf32>
    %c0_17 = arith.constant 0 : index
    %c0_18 = arith.constant 0 : index
    %c0_19 = arith.constant 0 : index
    %37 = vector.load %arg3[%c0_17, %c0_18, %c0_19] : memref<8x128x128xf32, #tpu.memory_space<vmem>>, vector<1x128x128xf32>
    %38 = vector.shape_cast %37 : vector<1x128x128xf32> to vector<128x128xf32>
    %cst_20 = arith.constant dense<0.000000e+00> : vector<40x128xf32>
    %39 = tpu.matmul %36, %38, %cst_20 {dimension_numbers = #tpu.dot_dimension_numbers<[1], [0], [0], [1], [0, 0, 1, 1], [], []>} : vector<40x128xf32>, vector<128x128xf32>, vector<40x128xf32> -> vector<40x128xf32>
    %40 = vector.shape_cast %39 : vector<40x128xf32> to vector<8x5x128xf32>
    %c1 = arith.constant 1 : index
    %c0_21 = arith.constant 0 : index
    %c0_22 = arith.constant 0 : index
    %41 = vector.load %arg3[%c1, %c0_21, %c0_22] : memref<8x128x128xf32, #tpu.memory_space<vmem>>, vector<1x128x128xf32>
    %42 = vector.shape_cast %41 : vector<1x128x128xf32> to vector<128x128xf32>
    %cst_23 = arith.constant dense<0.000000e+00> : vector<40x128xf32>
    %43 = tpu.matmul %36, %42, %cst_23 {dimension_numbers = #tpu.dot_dimension_numbers<[1], [0], [0], [1], [0, 0, 1, 1], [], []>} : vector<40x128xf32>, vector<128x128xf32>, vector<40x128xf32> -> vector<40x128xf32>
    %44 = vector.shape_cast %43 : vector<40x128xf32> to vector<8x5x128xf32>
    %45 = vector.shape_cast %40 : vector<8x5x128xf32> to vector<8x5x1x128xf32>
    %46 = vector.shape_cast %44 : vector<8x5x128xf32> to vector<8x1x5x128xf32>
    %47 = vector.broadcast %45 : vector<8x5x1x128xf32> to vector<8x5x5x128xf32>
    %48 = vector.broadcast %46 : vector<8x1x5x128xf32> to vector<8x5x5x128xf32>
    %49 = arith.addf %47, %48 : vector<8x5x5x128xf32>
    %50 = vector.shape_cast %1 : vector<1x128xf32> to vector<1x1x1x128xf32>
    %51 = vector.broadcast %50 : vector<1x1x1x128xf32> to vector<8x5x5x128xf32>
    %52 = arith.addf %49, %51 : vector<8x5x5x128xf32>
    %cst_24 = arith.constant 0.000000e+00 : f32
    %53 = vector.broadcast %cst_24 : f32 to vector<8x5x5x128xf32>
    %54 = arith.maximumf %52, %53 : vector<8x5x5x128xf32>
    %55 = vector.shape_cast %54 : vector<8x5x5x128xf32> to vector<200x128xf32>
    %c2 = arith.constant 2 : index
    %c0_25 = arith.constant 0 : index
    %c0_26 = arith.constant 0 : index
    %56 = vector.load %arg3[%c2, %c0_25, %c0_26] : memref<8x128x128xf32, #tpu.memory_space<vmem>>, vector<1x128x128xf32>
    %57 = vector.shape_cast %56 : vector<1x128x128xf32> to vector<128x128xf32>
    %cst_27 = arith.constant dense<0.000000e+00> : vector<200x128xf32>
    %58 = tpu.matmul %55, %57, %cst_27 {dimension_numbers = #tpu.dot_dimension_numbers<[1], [0], [0], [1], [0, 0, 1, 1], [], []>} : vector<200x128xf32>, vector<128x128xf32>, vector<200x128xf32> -> vector<200x128xf32>
    %59 = vector.broadcast %2 : vector<1x128xf32> to vector<200x128xf32>
    %60 = arith.addf %58, %59 : vector<200x128xf32>
    %cst_28 = arith.constant dense<0.000000e+00> : vector<200xf32>
    %61 = vector.multi_reduction <add>, %60, %cst_28 [1] : vector<200x128xf32> to vector<200xf32>
    %62 = vector.shape_cast %61 : vector<200xf32> to vector<200x1xf32>
    %cst_29 = arith.constant 3.125000e-02 : f32
    %63 = vector.broadcast %cst_29 : f32 to vector<200x1xf32>
    %64 = arith.mulf %62, %63 : vector<200x1xf32>
    %65 = vector.broadcast %64 : vector<200x1xf32> to vector<200x128xf32>
    %66 = arith.subf %60, %65 : vector<200x128xf32>
    %67 = vector.broadcast %15 : vector<1x128xf32> to vector<200x128xf32>
    %68 = arith.mulf %66, %67 : vector<200x128xf32>
    %69 = arith.mulf %68, %68 : vector<200x128xf32>
    %cst_30 = arith.constant dense<0.000000e+00> : vector<200xf32>
    %70 = vector.multi_reduction <add>, %69, %cst_30 [1] : vector<200x128xf32> to vector<200xf32>
    %71 = vector.shape_cast %70 : vector<200xf32> to vector<200x1xf32>
    %cst_31 = arith.constant 3.125000e-02 : f32
    %72 = vector.broadcast %cst_31 : f32 to vector<200x1xf32>
    %73 = arith.mulf %71, %72 : vector<200x1xf32>
    %cst_32 = arith.constant 9.99999974E-6 : f32
    %74 = vector.broadcast %cst_32 : f32 to vector<200x1xf32>
    %75 = arith.addf %73, %74 : vector<200x1xf32>
    %76 = math.rsqrt %75 : vector<200x1xf32>
    %77 = vector.broadcast %76 : vector<200x1xf32> to vector<200x128xf32>
    %78 = arith.mulf %68, %77 : vector<200x128xf32>
    %79 = vector.broadcast %3 : vector<1x128xf32> to vector<200x128xf32>
    %80 = arith.mulf %78, %79 : vector<200x128xf32>
    %81 = vector.broadcast %4 : vector<1x128xf32> to vector<200x128xf32>
    %82 = arith.addf %80, %81 : vector<200x128xf32>
    %cst_33 = arith.constant 0.000000e+00 : f32
    %83 = vector.broadcast %cst_33 : f32 to vector<200x128xf32>
    %84 = arith.maximumf %82, %83 : vector<200x128xf32>
    %c3 = arith.constant 3 : index
    %c0_34 = arith.constant 0 : index
    %c0_35 = arith.constant 0 : index
    %85 = vector.load %arg3[%c3, %c0_34, %c0_35] : memref<8x128x128xf32, #tpu.memory_space<vmem>>, vector<1x128x128xf32>
    %86 = vector.shape_cast %85 : vector<1x128x128xf32> to vector<128x128xf32>
    %cst_36 = arith.constant dense<0.000000e+00> : vector<200x128xf32>
    %87 = tpu.matmul %84, %86, %cst_36 {dimension_numbers = #tpu.dot_dimension_numbers<[1], [0], [0], [1], [0, 0, 1, 1], [], []>} : vector<200x128xf32>, vector<128x128xf32>, vector<200x128xf32> -> vector<200x128xf32>
    %88 = vector.broadcast %5 : vector<1x128xf32> to vector<200x128xf32>
    %89 = arith.addf %87, %88 : vector<200x128xf32>
    %90 = tpu.iota {dimensions = array<i32: 1>} : vector<1x5x5x1xi32>
    %91 = tpu.iota {dimensions = array<i32: 2>} : vector<1x5x5x1xi32>
    %92 = arith.cmpi ne, %90, %91 : vector<1x5x5x1xi32>
    %93 = arith.extui %92 : vector<1x5x5x1xi1> to vector<1x5x5x1xi32>
    %94 = arith.sitofp %93 : vector<1x5x5x1xi32> to vector<1x5x5x1xf32>
    %95 = vector.shape_cast %89 : vector<200x128xf32> to vector<8x5x5x128xf32>
    %96 = vector.broadcast %94 : vector<1x5x5x1xf32> to vector<8x5x5x128xf32>
    %97 = arith.mulf %95, %96 : vector<8x5x5x128xf32>
    %cst_37 = arith.constant dense<0.000000e+00> : vector<8x5x128xf32>
    %98 = vector.multi_reduction <add>, %97, %cst_37 [2] : vector<8x5x5x128xf32> to vector<8x5x128xf32>
    %99 = vector.shape_cast %98 : vector<8x5x128xf32> to vector<40x128xf32>
    %c4_38 = arith.constant 4 : index
    %c0_39 = arith.constant 0 : index
    %c0_40 = arith.constant 0 : index
    %100 = vector.load %arg3[%c4_38, %c0_39, %c0_40] : memref<8x128x128xf32, #tpu.memory_space<vmem>>, vector<1x128x128xf32>
    %101 = vector.shape_cast %100 : vector<1x128x128xf32> to vector<128x128xf32>
    %cst_41 = arith.constant dense<0.000000e+00> : vector<40x128xf32>
    %102 = tpu.matmul %36, %101, %cst_41 {dimension_numbers = #tpu.dot_dimension_numbers<[1], [0], [0], [1], [0, 0, 1, 1], [], []>} : vector<40x128xf32>, vector<128x128xf32>, vector<40x128xf32> -> vector<40x128xf32>
    %c5 = arith.constant 5 : index
    %c0_42 = arith.constant 0 : index
    %c0_43 = arith.constant 0 : index
    %103 = vector.load %arg3[%c5, %c0_42, %c0_43] : memref<8x128x128xf32, #tpu.memory_space<vmem>>, vector<1x128x128xf32>
    %104 = vector.shape_cast %103 : vector<1x128x128xf32> to vector<128x128xf32>
    %cst_44 = arith.constant dense<0.000000e+00> : vector<40x128xf32>
    %105 = tpu.matmul %99, %104, %cst_44 {dimension_numbers = #tpu.dot_dimension_numbers<[1], [0], [0], [1], [0, 0, 1, 1], [], []>} : vector<40x128xf32>, vector<128x128xf32>, vector<40x128xf32> -> vector<40x128xf32>
    %106 = arith.addf %102, %105 : vector<40x128xf32>
    %107 = vector.broadcast %6 : vector<1x128xf32> to vector<40x128xf32>
    %108 = arith.addf %106, %107 : vector<40x128xf32>
    %cst_45 = arith.constant 0.000000e+00 : f32
    %109 = vector.broadcast %cst_45 : f32 to vector<40x128xf32>
    %110 = arith.maximumf %108, %109 : vector<40x128xf32>
    %c6 = arith.constant 6 : index
    %c0_46 = arith.constant 0 : index
    %c0_47 = arith.constant 0 : index
    %111 = vector.load %arg3[%c6, %c0_46, %c0_47] : memref<8x128x128xf32, #tpu.memory_space<vmem>>, vector<1x128x128xf32>
    %112 = vector.shape_cast %111 : vector<1x128x128xf32> to vector<128x128xf32>
    %cst_48 = arith.constant dense<0.000000e+00> : vector<40x128xf32>
    %113 = tpu.matmul %110, %112, %cst_48 {dimension_numbers = #tpu.dot_dimension_numbers<[1], [0], [0], [1], [0, 0, 1, 1], [], []>} : vector<40x128xf32>, vector<128x128xf32>, vector<40x128xf32> -> vector<40x128xf32>
    %114 = vector.broadcast %7 : vector<1x128xf32> to vector<40x128xf32>
    %115 = arith.addf %113, %114 : vector<40x128xf32>
    %cst_49 = arith.constant dense<0.000000e+00> : vector<40xf32>
    %116 = vector.multi_reduction <add>, %115, %cst_49 [1] : vector<40x128xf32> to vector<40xf32>
    %117 = vector.shape_cast %116 : vector<40xf32> to vector<40x1xf32>
    %cst_50 = arith.constant 3.125000e-02 : f32
    %118 = vector.broadcast %cst_50 : f32 to vector<40x1xf32>
    %119 = arith.mulf %117, %118 : vector<40x1xf32>
    %120 = vector.broadcast %119 : vector<40x1xf32> to vector<40x128xf32>
    %121 = arith.subf %115, %120 : vector<40x128xf32>
    %122 = vector.broadcast %15 : vector<1x128xf32> to vector<40x128xf32>
    %123 = arith.mulf %121, %122 : vector<40x128xf32>
    %124 = arith.mulf %123, %123 : vector<40x128xf32>
    %cst_51 = arith.constant dense<0.000000e+00> : vector<40xf32>
    %125 = vector.multi_reduction <add>, %124, %cst_51 [1] : vector<40x128xf32> to vector<40xf32>
    %126 = vector.shape_cast %125 : vector<40xf32> to vector<40x1xf32>
    %cst_52 = arith.constant 3.125000e-02 : f32
    %127 = vector.broadcast %cst_52 : f32 to vector<40x1xf32>
    %128 = arith.mulf %126, %127 : vector<40x1xf32>
    %cst_53 = arith.constant 9.99999974E-6 : f32
    %129 = vector.broadcast %cst_53 : f32 to vector<40x1xf32>
    %130 = arith.addf %128, %129 : vector<40x1xf32>
    %131 = math.rsqrt %130 : vector<40x1xf32>
    %132 = vector.broadcast %131 : vector<40x1xf32> to vector<40x128xf32>
    %133 = arith.mulf %123, %132 : vector<40x128xf32>
    %134 = vector.broadcast %8 : vector<1x128xf32> to vector<40x128xf32>
    %135 = arith.mulf %133, %134 : vector<40x128xf32>
    %136 = vector.broadcast %9 : vector<1x128xf32> to vector<40x128xf32>
    %137 = arith.addf %135, %136 : vector<40x128xf32>
    %cst_54 = arith.constant 0.000000e+00 : f32
    %138 = vector.broadcast %cst_54 : f32 to vector<40x128xf32>
    %139 = arith.maximumf %137, %138 : vector<40x128xf32>
    %c7 = arith.constant 7 : index
    %c0_55 = arith.constant 0 : index
    %c0_56 = arith.constant 0 : index
    %140 = vector.load %arg3[%c7, %c0_55, %c0_56] : memref<8x128x128xf32, #tpu.memory_space<vmem>>, vector<1x128x128xf32>
    %141 = vector.shape_cast %140 : vector<1x128x128xf32> to vector<128x128xf32>
    %cst_57 = arith.constant dense<0.000000e+00> : vector<40x128xf32>
    %142 = tpu.matmul %139, %141, %cst_57 {dimension_numbers = #tpu.dot_dimension_numbers<[1], [0], [0], [1], [0, 0, 1, 1], [], []>} : vector<40x128xf32>, vector<128x128xf32>, vector<40x128xf32> -> vector<40x128xf32>
    %143 = vector.broadcast %10 : vector<1x128xf32> to vector<40x128xf32>
    %144 = arith.addf %142, %143 : vector<40x128xf32>
    %145 = vector.extract_strided_slice %144 {offsets = [0, 0], sizes = [40, 4], strides = [1, 1]} : vector<40x128xf32> to vector<40x4xf32>
    %146 = vector.shape_cast %145 : vector<40x4xf32> to vector<8x5x4xf32>
    %c0_58 = arith.constant 0 : index
    %c0_59 = arith.constant 0 : index
    %c0_60 = arith.constant 0 : index
    %147 = vector.load %arg5[%c0_58, %c0_59, %c0_60] : memref<8x5x4xf32, #tpu.memory_space<vmem>>, vector<8x5x4xf32>
    tpu.vector_store %arg5[%c0_58, %c0_59, %c0_60], %146 {strides = array<i32>} : memref<8x5x4xf32, #tpu.memory_space<vmem>>, vector<8x5x4xf32>,
    return
  }
  func.func @transform_0(%arg0: i32) -> (i32, i32, i32) {
    %c0_i32 = arith.constant 0 : i32
    %c0_i32_0 = arith.constant 0 : i32
    %c0_i32_1 = arith.constant 0 : i32
    return %arg0, %c0_i32, %c0_i32_0 : i32, i32, i32
  }
  func.func @transform_1(%arg0: i32) -> (i32, i32) {
    %c0_i32 = arith.constant 0 : i32
    %c0_i32_0 = arith.constant 0 : i32
    return %arg0, %c0_i32 : i32, i32
  }
  func.func @transform_2(%arg0: i32) -> (i32, i32, i32) {
    %c0_i32 = arith.constant 0 : i32
    %c0_i32_0 = arith.constant 0 : i32
    %c0_i32_1 = arith.constant 0 : i32
    %c0_i32_2 = arith.constant 0 : i32
    return %c0_i32, %c0_i32_0, %c0_i32_1 : i32, i32, i32
  }
  func.func @transform_3(%arg0: i32) -> (i32, i32) {
    %c0_i32 = arith.constant 0 : i32
    %c0_i32_0 = arith.constant 0 : i32
    %c0_i32_1 = arith.constant 0 : i32
    return %c0_i32, %c0_i32_0 : i32, i32
  }
  func.func @transform_4(%arg0: i32) -> (i32, i32, i32) {
    %c0_i32 = arith.constant 0 : i32
    %c0_i32_0 = arith.constant 0 : i32
    %c0_i32_1 = arith.constant 0 : i32
    return %arg0, %c0_i32, %c0_i32_0 : i32, i32, i32
  }
}

</mosaic_0001>

<llo_original>
// kernel: tpu_custom_call.1
$region0: #{tpu_custom_call.1}
  #allocation0 [shape = 'u32[]', space=smem, size = 0x4, offset = 0x4, fixed_abs, tag = 'smem constant byte address 0x4 - core index']
  #allocation1 [shape = 'u32[72,128]{1,0:T(1,128)}', space=vmem, size = 0x9000, scoped, tag = 'internal scratch']
  #allocation2 [shape = 'f32[8,5,128]{2,1,0:T(8,128)}', space=vmem, size = 0x8000, scoped, tag = 'scratch operand']
  %s0 = inlined_call_operand.vmem [shape: f32[16,5,4], index: 0, kind: input, shape index: {}]
  %s1 = inlined_call_operand.vmem [shape: s32[16,2], index: 1, kind: input, shape index: {}]
  %s2 = inlined_call_operand.hbm [shape: f32[8,128,128], index: 2, kind: input, shape index: {}]
  %s3 = inlined_call_operand.vmem [shape: f32[16,128], index: 3, kind: input, shape index: {}]
  %s4 = inlined_call_operand.vmem [shape: f32[16,5,4], index: 4, kind: output, shape index: {}]
  %s5 = sld [smem:[#allocation0]]
  $region53: #{tpu_custom_call.1} parent=0
    _
  %s7 = ssub.s32 1, %s5
  %s8 = scalar_select 0, %s7, %s5
  $region1: #{tpu_custom_call.1} parent=0
    #allocation3 [shape = 'u8[524288]{0}', space=vmem, size = 0x80000, scoped, tag = 'input window, operand 2, single buffered']
    #allocation4 [shape = 's32[2]{0}', space=sflag, size = 0x8, scoped, tag = 'scoped memory for tpu_custom_call.1']
    %9 = vsyncpa [#allocation4], 0
    loop: start=0, step=1, limit=4
    $region2: #{tpu_custom_call.1} parent=1 // loop_pre_header
      _
    $region3: #{tpu_custom_call.1} parent=1 // loop_header
      %s11 = sphi 0, %s15
      %p12 = scmp.ge.s32.totalorder %s11, 4
      %s21 = sphi 0, %s23
      %s24 = sphi 0, %s21
      %s25 = sphi 0, %s24
      %s41 = sphi 0, %s25
      %s47 = sphi 0, %s49
      %s50 = sphi 0, %s47
      %s51 = sphi 0, %s50
      %s67 = sphi 0, %s51
      %s71 = sphi 0, %s71
      %s73 = sphi 0, %s71
      %s74 = sphi 0, %s73
      %s88 = sphi 0, %s74
      %s92 = sphi 0, %s92
      %s94 = sphi 0, %s92
      %s95 = sphi 0, %s94
      %s109 = sphi 0, %s95
      %s115 = sphi 0, %s117
      %s118 = sphi 0, %s115
      %s119 = sphi 0, %s118
      %s135 = sphi 0, %s119
    $region4: #{tpu_custom_call.1} parent=1 // loop_header_branch
      %14 = sbr.rel (%p12) target = $region8
    $region5: #{tpu_custom_call.1} parent=1 // loop_body
      %s16 = ssub.s32 %s11, 1
      %s17 = ssub.s32 %s11, 2
      %s18 = sadd.s32 %s11, 1
      %s19 = ssub.s32 %s11, %s18
      %p20 = scmp.eq.s32.totalorder %s19, 0
      %s22 = sadd.s32 %s21, 1
      %s23 = scalar_select %p20, %s21, %s22
      %p26 = pneg %p20
      %p27 = scmp.eq.s32.totalorder %s11, 1
      %p28 = por %p26, %p27
      %p29 = scmp.ne.s32.totalorder %s21, %s24
      %p30 = scmp.eq.s32.totalorder %s11, 0
      %p31 = por %p29, %p30
      %p32 = scmp.ne.s32.totalorder %s21, %s24
      %p33 = scmp.eq.s32.totalorder %s16, 1
      %p34 = por %p32, %p33
      %p35 = scmp.ne.s32.totalorder %s24, %s25
      %p36 = scmp.eq.s32.totalorder %s16, 0
      %p37 = por %p35, %p36
      %p38 = scmp.ne.s32.totalorder %s24, %s25
      %p39 = scmp.eq.s32.totalorder %s17, 1
      %p40 = por %p38, %p39
      %p42 = scmp.ne.s32.totalorder %s25, %s41
      %p43 = scmp.eq.s32.totalorder %s17, 0
      %p44 = por %p42, %p43
      %s45 = ssub.s32 %s11, %s18
      %p46 = scmp.eq.s32.totalorder %s45, 0
      %s48 = sadd.s32 %s47, 1
      %s49 = scalar_select %p46, %s47, %s48
      %p52 = pneg %p46
      %p53 = scmp.eq.s32.totalorder %s11, 1
      %p54 = por %p52, %p53
      %p55 = scmp.ne.s32.totalorder %s47, %s50
      %p56 = scmp.eq.s32.totalorder %s11, 0
      %p57 = por %p55, %p56
      %p58 = scmp.ne.s32.totalorder %s47, %s50
      %p59 = scmp.eq.s32.totalorder %s16, 1
      %p60 = por %p58, %p59
      %p61 = scmp.ne.s32.totalorder %s50, %s51
      %p62 = scmp.eq.s32.totalorder %s16, 0
      %p63 = por %p61, %p62
      %p64 = scmp.ne.s32.totalorder %s50, %s51
      %p65 = scmp.eq.s32.totalorder %s17, 1
      %p66 = por %p64, %p65
      %p68 = scmp.ne.s32.totalorder %s51, %s67
      %p69 = scmp.eq.s32.totalorder %s17, 0
      %p70 = por %p68, %p69
      %s72 = sadd.s32 %s71, 1
      %p75 = scmp.eq.s32.totalorder %s11, 1
      %p76 = scmp.ne.s32.totalorder %s71, %s73
      %p77 = scmp.eq.s32.totalorder %s11, 0
      %p78 = por %p76, %p77
      %p79 = scmp.ne.s32.totalorder %s71, %s73
      %p80 = scmp.eq.s32.totalorder %s16, 1
      %p81 = por %p79, %p80
      %p82 = scmp.ne.s32.totalorder %s73, %s74
      %p83 = scmp.eq.s32.totalorder %s16, 0
      %p84 = por %p82, %p83
      %p85 = scmp.ne.s32.totalorder %s73, %s74
      %p86 = scmp.eq.s32.totalorder %s17, 1
      %p87 = por %p85, %p86
      %p89 = scmp.ne.s32.totalorder %s74, %s88
      %p90 = scmp.eq.s32.totalorder %s17, 0
      %p91 = por %p89, %p90
      %s93 = sadd.s32 %s92, 1
      %p96 = scmp.eq.s32.totalorder %s11, 1
      %p97 = scmp.ne.s32.totalorder %s92, %s94
      %p98 = scmp.eq.s32.totalorder %s11, 0
      %p99 = por %p97, %p98
      %p100 = scmp.ne.s32.totalorder %s92, %s94
      %p101 = scmp.eq.s32.totalorder %s16, 1
      %p102 = por %p100, %p101
      %p103 = scmp.ne.s32.totalorder %s94, %s95
      %p104 = scmp.eq.s32.totalorder %s16, 0
      %p105 = por %p103, %p104
      %p106 = scmp.ne.s32.totalorder %s94, %s95
      %p107 = scmp.eq.s32.totalorder %s17, 1
      %p108 = por %p106, %p107
      %p110 = scmp.ne.s32.totalorder %s95, %s109
      %p111 = scmp.eq.s32.totalorder %s17, 0
      %p112 = por %p110, %p111
      %s113 = ssub.s32 %s11, %s18
      %p114 = scmp.eq.s32.totalorder %s113, 0
      %s116 = sadd.s32 %s115, 1
      %s117 = scalar_select %p114, %s115, %s116
      %p120 = pneg %p114
      %p121 = scmp.eq.s32.totalorder %s11, 1
      %p122 = por %p120, %p121
      %p123 = scmp.ne.s32.totalorder %s115, %s118
      %p124 = scmp.eq.s32.totalorder %s11, 0
      %p125 = por %p123, %p124
      %p126 = scmp.ne.s32.totalorder %s115, %s118
      %p127 = scmp.eq.s32.totalorder %s16, 1
      %p128 = por %p126, %p127
      %p129 = scmp.ne.s32.totalorder %s118, %s119
      %p130 = scmp.eq.s32.totalorder %s16, 0
      %p131 = por %p129, %p130
      %p132 = scmp.ne.s32.totalorder %s118, %s119
      %p133 = scmp.eq.s32.totalorder %s17, 1
      %p134 = por %p132, %p133
      %p136 = scmp.ne.s32.totalorder %s119, %s135
      %p137 = scmp.eq.s32.totalorder %s17, 0
      %p138 = por %p136, %p137
      %p139 = scmp.le.s32.totalorder 1, %s11
      %p140 = scmp.lt.s32.totalorder %s11, 3
      %p141 = pnand %p139, %p140
      %p142 = pneg %p141
      // Predicated region
      $region9: #{tpu_custom_call.1} parent=5 // pred_check
        _
      $region10: #{tpu_custom_call.1} parent=5 // pred_check_branch
        %144 = sbr.rel (%p141) target = $region12
      $region11: #{tpu_custom_call.1} parent=5 // pred_region
        %s145 = ssub.s32 %s11, 1
        // Predicated region
        $region13: #{tpu_custom_call.1} parent=11 // pred_check
          %p146 = pneg %p84
        $region14: #{tpu_custom_call.1} parent=11 // pred_check_branch
          %148 = sbr.rel (%p146) target = $region16
        $region15: #{tpu_custom_call.1} parent=11 // pred_region
          %150 = vsyncadd [#allocation4], 0
          %s151 = sshll.u32 %s2, 4
          %s152 = int_to_ptr.hbm [resolvable:$true] %s151
          %s153 = sshll.u32 [#allocation3], 4
          %s154 = int_to_ptr.vmem [resolvable:$true] %s153
          %159 = dma.hbm_to_vmem [thread:$0]  %s152, 16384, %s154, [#allocation4], 128, 128, 8
        $region16: #{tpu_custom_call.1} parent=11 // pred_fallthru
          _
        // Predicated region
        $region17: #{tpu_custom_call.1} parent=11 // pred_check
          %p160 = pneg %p105
        $region18: #{tpu_custom_call.1} parent=11 // pred_check_branch
          %162 = sbr.rel (%p160) target = $region20
        $region19: #{tpu_custom_call.1} parent=11 // pred_region
          _
        $region20: #{tpu_custom_call.1} parent=11 // pred_fallthru
          _
      $region12: #{tpu_custom_call.1} parent=5 // pred_fallthru
        _
      %p163 = scmp.lt.s32.totalorder %s11, 2
      // Predicated region
      $region21: #{tpu_custom_call.1} parent=5 // pred_check
        %p164 = pneg %p163
      $region22: #{tpu_custom_call.1} parent=5 // pred_check_branch
        %166 = sbr.rel (%p164) target = $region24
      $region23: #{tpu_custom_call.1} parent=5 // pred_region
        // Predicated region
        $region25: #{tpu_custom_call.1} parent=23 // pred_check
          %p167 = pneg %p31
        $region26: #{tpu_custom_call.1} parent=23 // pred_check_branch
          %169 = sbr.rel (%p167) target = $region28
        $region27: #{tpu_custom_call.1} parent=23 // pred_region
          %s170 = smul.u32 8, %s11
          %p171 = scmp.lt.s32.totalorder %s170, 15
          %s172 = scalar_select %p171, %s170, 15
          %s173 = smul.addr %s172, 8
          %s174 = scalar_lea.vmem %s0, %s173
          %s175 = smul.u32 8, %s11
        $region28: #{tpu_custom_call.1} parent=23 // pred_fallthru
          _
        // Predicated region
        $region29: #{tpu_custom_call.1} parent=23 // pred_check
          %p176 = pneg %p57
        $region30: #{tpu_custom_call.1} parent=23 // pred_check_branch
          %178 = sbr.rel (%p176) target = $region32
        $region31: #{tpu_custom_call.1} parent=23 // pred_region
          %p179 = scmp.lt.s32.totalorder %s11, 1
          %s180 = scalar_select %p179, %s11, 1
          %s181 = smul.addr %s180, 8
          %s182 = scalar_lea.vmem %s1, %s181
        $region32: #{tpu_custom_call.1} parent=23 // pred_fallthru
          _
      $region24: #{tpu_custom_call.1} parent=5 // pred_fallthru
        _
      %p183 = scmp.le.s32.totalorder 1, %s11
      %p184 = scmp.lt.s32.totalorder %s11, 3
      %p185 = pnand %p183, %p184
      %p186 = pneg %p185
      // Predicated region
      $region33: #{tpu_custom_call.1} parent=5 // pred_check
        _
      $region34: #{tpu_custom_call.1} parent=5 // pred_check_branch
        %188 = sbr.rel (%p185) target = $region36
      $region35: #{tpu_custom_call.1} parent=5 // pred_region
        %s189 = ssub.s32 %s11, 1
        // Predicated region
        $region37: #{tpu_custom_call.1} parent=35 // pred_check
          %p190 = pneg %p84
        $region38: #{tpu_custom_call.1} parent=35 // pred_check_branch
          %192 = sbr.rel (%p190) target = $region40
        $region39: #{tpu_custom_call.1} parent=35 // pred_region
          %194 = dma.done [#allocation4], 16384
        $region40: #{tpu_custom_call.1} parent=35 // pred_fallthru
          _
        %s195 = smul.u32 8, %s16
        %p196 = scmp.lt.s32.totalorder %s195, 15
        %s197 = scalar_select %p196, %s195, 15
        %s198 = smul.addr %s197, 8
        %s199 = scalar_lea.vmem %s0, %s198
        %p200 = pneg %p37
        %p201 = pneg %p34
        %p202 = scmp.lt.s32.totalorder %s16, 1
        %s203 = scalar_select %p202, %s16, 1
        %s204 = smul.addr %s203, 8
        %s205 = scalar_lea.vmem %s1, %s204
        %p206 = pneg %p63
        %p207 = pneg %p60
        %p208 = pneg %p84
        %p209 = pneg %p81
        %p210 = pneg %p105
        %p211 = pneg %p102
        %p212 = pneg %p131
        %p213 = pneg %p128
        %s214 = smul.u32 8, %s16
        %p215 = scmp.lt.s32.totalorder %s214, 15
        %s216 = scalar_select %p215, %s214, 15
        %s217 = smul.addr %s216, 8
        %s218 = scalar_lea.vmem %s4, %s217
        %s219 = smul.u32 8, %s16
        %p220 = scmp.lt.s32.totalorder %s219, 15
        %s221 = scalar_select %p220, %s219, 15
        %s222 = smul.addr %s221, 8
        %s223 = scalar_lea.vmem %s0, %s222
        %s224 = smul.u32 8, %s16
        %p225 = scmp.lt.s32.totalorder %s16, 1
        %s226 = scalar_select %p225, %s16, 1
        %s227 = smul.addr %s226, 8
        %s228 = scalar_lea.vmem %s1, %s227
        %s229 = smul.u32 8, %s16
        %p230 = scmp.lt.s32.totalorder %s229, 15
        %s231 = scalar_select %p230, %s229, 15
        %s232 = smul.addr %s231, 8
        %s233 = scalar_lea.vmem %s4, %s232
        %s234 = smul.u32 8, %s16
        %v235 = vld [vmem:[%s3] sm:$0xff]
        %v236 = vld [vmem:[%s3 + $0x8] sm:$0xff]
        %v237 = vlaneseq
        %v238 = vand.u32 %v237, 127
        %vm239 = vcmp.lt.s32.totalorder %v238, 32
        %v240 = vsel %vm239, 1, 0
        %v241 = vcvt.s32.f32 %v240
        %242 = vst [vmem:[#allocation2] sm:$0x1f] 0.0
        %243 = vst [vmem:[#allocation2 + $0x8] sm:$0x1f] 0.0
        %244 = vst [vmem:[#allocation2 + $0x10] sm:$0x1f] 0.0
        %245 = vst [vmem:[#allocation2 + $0x18] sm:$0x1f] 0.0
        %246 = vst [vmem:[#allocation2 + $0x20] sm:$0x1f] 0.0
        %247 = vst [vmem:[#allocation2 + $0x28] sm:$0x1f] 0.0
        %248 = vst [vmem:[#allocation2 + $0x30] sm:$0x1f] 0.0
        %249 = vst [vmem:[#allocation2 + $0x38] sm:$0x1f] 0.0
        %v250 = vld [vmem:[%s223] sm:$0x1f]
        %v251 = vld [vmem:[%s223 + $0x8] sm:$0x1f]
        %v252 = vld [vmem:[%s223 + $0x10] sm:$0x1f]
        %v253 = vld [vmem:[%s223 + $0x18] sm:$0x1f]
        %v254 = vld [vmem:[%s223 + $0x20] sm:$0x1f]
        %v255 = vld [vmem:[%s223 + $0x28] sm:$0x1f]
        %v256 = vld [vmem:[%s223 + $0x30] sm:$0x1f]
        %v257 = vld [vmem:[%s223 + $0x38] sm:$0x1f]
        %v258 = vld [vmem:[%s228] sm:$0xff]
        %v259 = vrot.slane %v258, 1
        %v260 = vrot.slane %v258, 2
        %v261 = vrot.slane %v258, 3
        %v262 = vrot.slane %v258, 4
        %v263 = vrot.slane %v258, 5
        %v264 = vrot.slane %v258, 6
        %v265 = vrot.slane %v258, 7
        %v266 = vlaneseq
        %v267 = vshrl.u32 %v266, 7
        %v268 = vperm.slane %v258, 0
        %v269 = vperm.slane %v259, 0
        %v270 = vperm.slane %v260, 0
        %v271 = vperm.slane %v261, 0
        %v272 = vperm.slane %v262, 0
        %v273 = vperm.slane %v263, 0
        %v274 = vperm.slane %v264, 0
        %v275 = vperm.slane %v265, 0
        %276 = vset.pattern.permute.xlu0 0
        %277 = vperm.xlu0 %276, %v268
        %v278 = vpop.permute.xlu0 %277
        %279 = vset.pattern.permute.xlu0 0
        %280 = vperm.xlu0 %279, %v269
        %v281 = vpop.permute.xlu0 %280
        %282 = vset.pattern.permute.xlu0 0
        %283 = vperm.xlu0 %282, %v270
        %v284 = vpop.permute.xlu0 %283
        %285 = vset.pattern.permute.xlu0 0
        %286 = vperm.xlu0 %285, %v271
        %v287 = vpop.permute.xlu0 %286
        %288 = vset.pattern.permute.xlu0 0
        %289 = vperm.xlu0 %288, %v272
        %v290 = vpop.permute.xlu0 %289
        %291 = vset.pattern.permute.xlu0 0
        %292 = vperm.xlu0 %291, %v273
        %v293 = vpop.permute.xlu0 %292
        %294 = vset.pattern.permute.xlu0 0
        %295 = vperm.xlu0 %294, %v274
        %v296 = vpop.permute.xlu0 %295
        %297 = vset.pattern.permute.xlu0 0
        %298 = vperm.xlu0 %297, %v275
        %v299 = vpop.permute.xlu0 %298
        %vm300 = vcmp.eq.s32.totalorder %v267, %v278
        %vm301 = vcmp.eq.s32.totalorder %v267, %v281
        %vm302 = vcmp.eq.s32.totalorder %v267, %v284
        %vm303 = vcmp.eq.s32.totalorder %v267, %v287
        %vm304 = vcmp.eq.s32.totalorder %v267, %v290
        %vm305 = vcmp.eq.s32.totalorder %v267, %v293
        %vm306 = vcmp.eq.s32.totalorder %v267, %v296
        %vm307 = vcmp.eq.s32.totalorder %v267, %v299
        %308 = vset.pattern.permute.xlu0 1
        %309 = vperm.xlu0 %308, %v268
        %v310 = vpop.permute.xlu0 %309
        %311 = vset.pattern.permute.xlu0 1
        %312 = vperm.xlu0 %311, %v269
        %v313 = vpop.permute.xlu0 %312
        %314 = vset.pattern.permute.xlu0 1
        %315 = vperm.xlu0 %314, %v270
        %v316 = vpop.permute.xlu0 %315
        %317 = vset.pattern.permute.xlu0 1
        %318 = vperm.xlu0 %317, %v271
        %v319 = vpop.permute.xlu0 %318
        %320 = vset.pattern.permute.xlu0 1
        %321 = vperm.xlu0 %320, %v272
        %v322 = vpop.permute.xlu0 %321
        %323 = vset.pattern.permute.xlu0 1
        %324 = vperm.xlu0 %323, %v273
        %v325 = vpop.permute.xlu0 %324
        %326 = vset.pattern.permute.xlu0 1
        %327 = vperm.xlu0 %326, %v274
        %v328 = vpop.permute.xlu0 %327
        %329 = vset.pattern.permute.xlu0 1
        %330 = vperm.xlu0 %329, %v275
        %v331 = vpop.permute.xlu0 %330
        %vm332 = vcmp.eq.s32.totalorder %v238, %v310
        %vm333 = vcmp.eq.s32.totalorder %v238, %v313
        %vm334 = vcmp.eq.s32.totalorder %v238, %v316
        %vm335 = vcmp.eq.s32.totalorder %v238, %v319
        %vm336 = vcmp.eq.s32.totalorder %v238, %v322
        %vm337 = vcmp.eq.s32.totalorder %v238, %v325
        %vm338 = vcmp.eq.s32.totalorder %v238, %v328
        %vm339 = vcmp.eq.s32.totalorder %v238, %v331
        %vm340 = vmand %vm300, %vm332
        %vm341 = vmand %vm301, %vm333
        %vm342 = vmand %vm302, %vm334
        %vm343 = vmand %vm303, %vm335
        %vm344 = vmand %vm304, %vm336
        %vm345 = vmand %vm305, %vm337
        %vm346 = vmand %vm306, %vm338
        %vm347 = vmand %vm307, %vm339
        %v348 = vsel %vm340, 1, 0
        %v349 = vsel %vm341, 1, 0
        %v350 = vsel %vm342, 1, 0
        %v351 = vsel %vm343, 1, 0
        %v352 = vsel %vm344, 1, 0
        %v353 = vsel %vm345, 1, 0
        %v354 = vsel %vm346, 1, 0
        %v355 = vsel %vm347, 1, 0
        %v356 = vcvt.s32.f32 %v348
        %v357 = vcvt.s32.f32 %v349
        %v358 = vcvt.s32.f32 %v350
        %v359 = vcvt.s32.f32 %v351
        %v360 = vcvt.s32.f32 %v352
        %v361 = vcvt.s32.f32 %v353
        %v362 = vcvt.s32.f32 %v354
        %v363 = vcvt.s32.f32 %v355
        %vm364 = vcmask 28672
        %365 = vst.msk [vmem:[#allocation2] sm:$0x1f] %vm364, %v250
        %366 = vst.msk [vmem:[#allocation2 + $0x8] sm:$0x1f] %vm364, %v251
        %367 = vst.msk [vmem:[#allocation2 + $0x10] sm:$0x1f] %vm364, %v252
        %368 = vst.msk [vmem:[#allocation2 + $0x18] sm:$0x1f] %vm364, %v253
        %369 = vst.msk [vmem:[#allocation2 + $0x20] sm:$0x1f] %vm364, %v254
        %370 = vst.msk [vmem:[#allocation2 + $0x28] sm:$0x1f] %vm364, %v255
        %371 = vst.msk [vmem:[#allocation2 + $0x30] sm:$0x1f] %vm364, %v256
        %372 = vst.msk [vmem:[#allocation2 + $0x38] sm:$0x1f] %vm364, %v257
        %381 = vrot.lane.b32.xlu0 %v356, 4
        %v382 = vpop.permute.xlu0 %381
        %383 = vrot.lane.b32.xlu0 %v357, 4
        %v384 = vpop.permute.xlu0 %383
        %385 = vrot.lane.b32.xlu0 %v358, 4
        %v386 = vpop.permute.xlu0 %385
        %387 = vrot.lane.b32.xlu0 %v359, 4
        %v388 = vpop.permute.xlu0 %387
        %389 = vrot.lane.b32.xlu0 %v360, 4
        %v390 = vpop.permute.xlu0 %389
        %391 = vrot.lane.b32.xlu0 %v361, 4
        %v392 = vpop.permute.xlu0 %391
        %393 = vrot.lane.b32.xlu0 %v362, 4
        %v394 = vpop.permute.xlu0 %393
        %395 = vrot.lane.b32.xlu0 %v363, 4
        %v396 = vpop.permute.xlu0 %395
        %vm405 = vcmask 61472
        %406 = vst.msk [vmem:[#allocation2] sm:$0x1f] %vm405, %v382
        %407 = vst.msk [vmem:[#allocation2 + $0x8] sm:$0x1f] %vm405, %v384
        %408 = vst.msk [vmem:[#allocation2 + $0x10] sm:$0x1f] %vm405, %v386
        %409 = vst.msk [vmem:[#allocation2 + $0x18] sm:$0x1f] %vm405, %v388
        %410 = vst.msk [vmem:[#allocation2 + $0x20] sm:$0x1f] %vm405, %v390
        %411 = vst.msk [vmem:[#allocation2 + $0x28] sm:$0x1f] %vm405, %v392
        %412 = vst.msk [vmem:[#allocation2 + $0x30] sm:$0x1f] %vm405, %v394
        %413 = vst.msk [vmem:[#allocation2 + $0x38] sm:$0x1f] %vm405, %v396
        %v414 = vld [vmem:[#allocation2] sm:$0x1f]
        %v415 = vld [vmem:[#allocation2 + $0x8] sm:$0x1f]
        %v416 = vld [vmem:[#allocation2 + $0x10] sm:$0x1f]
        %v417 = vld [vmem:[#allocation2 + $0x18] sm:$0x1f]
        %v418 = vld [vmem:[#allocation2 + $0x20] sm:$0x1f]
        %v419 = vld [vmem:[#allocation2 + $0x28] sm:$0x1f]
        %v420 = vld [vmem:[#allocation2 + $0x30] sm:$0x1f]
        %v421 = vld [vmem:[#allocation2 + $0x38] sm:$0x1f]
        %v430 = vrot.slane %v414, 1
        %v431 = vrot.slane %v414, 2
        %v432 = vrot.slane %v414, 3
        %v433 = vrot.slane %v414, 4
        %v434 = vrot.slane %v415, 1
        %v435 = vrot.slane %v415, 2
        %v436 = vrot.slane %v415, 3
        %v437 = vrot.slane %v415, 4
        %v438 = vrot.slane %v416, 1
        %v439 = vrot.slane %v416, 2
        %v440 = vrot.slane %v416, 3
        %v441 = vrot.slane %v416, 4
        %v442 = vrot.slane %v417, 1
        %v443 = vrot.slane %v417, 2
        %v444 = vrot.slane %v417, 3
        %v445 = vrot.slane %v417, 4
        %v446 = vrot.slane %v418, 1
        %v447 = vrot.slane %v418, 2
        %v448 = vrot.slane %v418, 3
        %v449 = vrot.slane %v418, 4
        %v450 = vrot.slane %v419, 1
        %v451 = vrot.slane %v419, 2
        %v452 = vrot.slane %v419, 3
        %v453 = vrot.slane %v419, 4
        %v454 = vrot.slane %v420, 1
        %v455 = vrot.slane %v420, 2
        %v456 = vrot.slane %v420, 3
        %v457 = vrot.slane %v420, 4
        %v458 = vrot.slane %v421, 1
        %v459 = vrot.slane %v421, 2
        %v460 = vrot.slane %v421, 3
        %v461 = vrot.slane %v421, 4
        %v462 = vld [vmem:[#allocation3] sm:$0xff]
        %v463 = vld [vmem:[#allocation3 + $0x8] sm:$0xff]
        %v464 = vld [vmem:[#allocation3 + $0x10] sm:$0xff]
        %v465 = vld [vmem:[#allocation3 + $0x18] sm:$0xff]
        %v466 = vld [vmem:[#allocation3 + $0x20] sm:$0xff]
        %v467 = vld [vmem:[#allocation3 + $0x28] sm:$0xff]
        %v468 = vld [vmem:[#allocation3 + $0x30] sm:$0xff]
        %v469 = vld [vmem:[#allocation3 + $0x38] sm:$0xff]
        %v470 = vld [vmem:[#allocation3 + $0x40] sm:$0xff]
        %v471 = vld [vmem:[#allocation3 + $0x48] sm:$0xff]
        %v472 = vld [vmem:[#allocation3 + $0x50] sm:$0xff]
        %v473 = vld [vmem:[#allocation3 + $0x58] sm:$0xff]
        %v474 = vld [vmem:[#allocation3 + $0x60] sm:$0xff]
        %v475 = vld [vmem:[#allocation3 + $0x68] sm:$0xff]
        %v476 = vld [vmem:[#allocation3 + $0x70] sm:$0xff]
        %v477 = vld [vmem:[#allocation3 + $0x78] sm:$0xff]
        %478 = vst [vmem:[#allocation1] ss:$9 sm:$0xff] %v414
        %s479 = scalar_lea.vmem [#allocation1], 1
        %480 = vst [vmem:[%s479] ss:$9 sm:$0xff] %v430
        %s481 = scalar_lea.vmem [#allocation1], 2
        %482 = vst [vmem:[%s481] ss:$9 sm:$0xff] %v431
        %s483 = scalar_lea.vmem [#allocation1], 3
        %484 = vst [vmem:[%s483] ss:$9 sm:$0xff] %v432
        %s485 = scalar_lea.vmem [#allocation1], 4
        %486 = vst [vmem:[%s485] ss:$9 sm:$0xff] %v433
        %s487 = scalar_lea.vmem [#allocation1], 5
        %488 = vst [vmem:[%s487] ss:$9 sm:$0xff] %v415
        %s489 = scalar_lea.vmem [#allocation1], 6
        %490 = vst [vmem:[%s489] ss:$9 sm:$0xff] %v434
        %s491 = scalar_lea.vmem [#allocation1], 7
        %492 = vst [vmem:[%s491] ss:$9 sm:$0xff] %v435
        %v493 = vld [vmem:[#allocation1] sm:$0xff]
        %494 = vst [vmem:[#allocation1] ss:$9 sm:$0xff] %v436
        %495 = vst [vmem:[%s479] ss:$9 sm:$0xff] %v437
        %496 = vst [vmem:[%s481] ss:$9 sm:$0xff] %v416
        %497 = vst [vmem:[%s483] ss:$9 sm:$0xff] %v438
        %498 = vst [vmem:[%s485] ss:$9 sm:$0xff] %v439
        %499 = vst [vmem:[%s487] ss:$9 sm:$0xff] %v440
        %500 = vst [vmem:[%s489] ss:$9 sm:$0xff] %v441
        %501 = vst [vmem:[%s491] ss:$9 sm:$0xff] %v417
        %v502 = vld [vmem:[#allocation1] sm:$0xff]
        %503 = vst [vmem:[#allocation1] ss:$9 sm:$0xff] %v442
        %504 = vst [vmem:[%s479] ss:$9 sm:$0xff] %v443
        %505 = vst [vmem:[%s481] ss:$9 sm:$0xff] %v444
        %506 = vst [vmem:[%s483] ss:$9 sm:$0xff] %v445
        %507 = vst [vmem:[%s485] ss:$9 sm:$0xff] %v418
        %508 = vst [vmem:[%s487] ss:$9 sm:$0xff] %v446
        %509 = vst [vmem:[%s489] ss:$9 sm:$0xff] %v447
        %510 = vst [vmem:[%s491] ss:$9 sm:$0xff] %v448
        %v511 = vld [vmem:[#allocation1] sm:$0xff]
        %512 = vst [vmem:[#allocation1] ss:$9 sm:$0xff] %v449
        %513 = vst [vmem:[%s479] ss:$9 sm:$0xff] %v419
        %514 = vst [vmem:[%s481] ss:$9 sm:$0xff] %v450
        %515 = vst [vmem:[%s483] ss:$9 sm:$0xff] %v451
        %516 = vst [vmem:[%s485] ss:$9 sm:$0xff] %v452
        %517 = vst [vmem:[%s487] ss:$9 sm:$0xff] %v453
        %518 = vst [vmem:[%s489] ss:$9 sm:$0xff] %v420
        %519 = vst [vmem:[%s491] ss:$9 sm:$0xff] %v454
        %v520 = vld [vmem:[#allocation1] sm:$0xff]
        %521 = vst [vmem:[#allocation1] ss:$9 sm:$0xff] %v455
        %522 = vst [vmem:[%s479] ss:$9 sm:$0xff] %v456
        %523 = vst [vmem:[%s481] ss:$9 sm:$0xff] %v457
        %524 = vst [vmem:[%s483] ss:$9 sm:$0xff] %v421
        %525 = vst [vmem:[%s485] ss:$9 sm:$0xff] %v458
        %526 = vst [vmem:[%s487] ss:$9 sm:$0xff] %v459
        %527 = vst [vmem:[%s489] ss:$9 sm:$0xff] %v460
        %528 = vst [vmem:[%s491] ss:$9 sm:$0xff] %v461
        %v529 = vld [vmem:[#allocation1] sm:$0xff]
        %535 = vmatpush.msra.mxu0 %v477
        %536 = vmatpush.msra.mxu0 %v476
        %537 = vmatpush.msra.mxu0 %v475
        %538 = vmatpush.msra.mxu0 %v474
        %539 = vmatpush.msra.mxu0 %v473
        %540 = vmatpush.msra.mxu0 %v472
        %541 = vmatpush.msra.mxu0 %v471
        %542 = vmatpush.msra.mxu0 %v470
        %543 = vmatpush.msra.mxu0 %v469
        %544 = vmatpush.msra.mxu0 %v468
        %545 = vmatpush.msra.mxu0 %v467
        %546 = vmatpush.msra.mxu0 %v466
        %547 = vmatpush.msra.mxu0 %v465
        %548 = vmatpush.msra.mxu0 %v464
        %549 = vmatpush.msra.mxu0 %v463
        %550 = vmatpush.msra.mxu0 %v462
        %551 = vmatmul.f32.gmra.mxu0 %v493
        %v552 = vpop.f32.mrf.mxu0
        %v553 = vadd.f32 0.0, %v552
        %554 = vmatmul.f32.gmra.mxu0 %v502
        %v555 = vpop.f32.mrf.mxu0
        %v556 = vadd.f32 0.0, %v555
        %557 = vmatmul.f32.gmra.mxu0 %v511
        %v558 = vpop.f32.mrf.mxu0
        %v559 = vadd.f32 0.0, %v558
        %560 = vmatmul.f32.gmra.mxu0 %v520
        %v561 = vpop.f32.mrf.mxu0
        %v562 = vadd.f32 0.0, %v561
        %563 = vmatmul.f32.gmra.mxu0 %v529
        %v564 = vpop.f32.mrf.mxu0
        %v565 = vadd.f32 0.0, %v564
        %566 = vdwg.mxu0
        %s567 = scalar_lea.vmem [#allocation3], 128
        %v568 = vld [vmem:[%s567] sm:$0xff]
        %v569 = vld [vmem:[%s567 + $0x8] sm:$0xff]
        %v570 = vld [vmem:[%s567 + $0x10] sm:$0xff]
        %v571 = vld [vmem:[%s567 + $0x18] sm:$0xff]
        %v572 = vld [vmem:[%s567 + $0x20] sm:$0xff]
        %v573 = vld [vmem:[%s567 + $0x28] sm:$0xff]
        %v574 = vld [vmem:[%s567 + $0x30] sm:$0xff]
        %v575 = vld [vmem:[%s567 + $0x38] sm:$0xff]
        %v576 = vld [vmem:[%s567 + $0x40] sm:$0xff]
        %v577 = vld [vmem:[%s567 + $0x48] sm:$0xff]
        %v578 = vld [vmem:[%s567 + $0x50] sm:$0xff]
        %v579 = vld [vmem:[%s567 + $0x58] sm:$0xff]
        %v580 = vld [vmem:[%s567 + $0x60] sm:$0xff]
        %v581 = vld [vmem:[%s567 + $0x68] sm:$0xff]
        %v582 = vld [vmem:[%s567 + $0x70] sm:$0xff]
        %v583 = vld [vmem:[%s567 + $0x78] sm:$0xff]
        %584 = vst [vmem:[#allocation1] ss:$9 sm:$0xff] %v414
        %s585 = scalar_lea.vmem [#allocation1], 1
        %586 = vst [vmem:[%s585] ss:$9 sm:$0xff] %v430
        %s587 = scalar_lea.vmem [#allocation1], 2
        %588 = vst [vmem:[%s587] ss:$9 sm:$0xff] %v431
        %s589 = scalar_lea.vmem [#allocation1], 3
        %590 = vst [vmem:[%s589] ss:$9 sm:$0xff] %v432
        %s591 = scalar_lea.vmem [#allocation1], 4
        %592 = vst [vmem:[%s591] ss:$9 sm:$0xff] %v433
        %s593 = scalar_lea.vmem [#allocation1], 5
        %594 = vst [vmem:[%s593] ss:$9 sm:$0xff] %v415
        %s595 = scalar_lea.vmem [#allocation1], 6
        %596 = vst [vmem:[%s595] ss:$9 sm:$0xff] %v434
        %s597 = scalar_lea.vmem [#allocation1], 7
        %598 = vst [vmem:[%s597] ss:$9 sm:$0xff] %v435
        %v599 = vld [vmem:[#allocation1] sm:$0xff]
        %600 = vst [vmem:[#allocation1] ss:$9 sm:$0xff] %v436
        %601 = vst [vmem:[%s585] ss:$9 sm:$0xff] %v437
        %602 = vst [vmem:[%s587] ss:$9 sm:$0xff] %v416
        %603 = vst [vmem:[%s589] ss:$9 sm:$0xff] %v438
        %604 = vst [vmem:[%s591] ss:$9 sm:$0xff] %v439
        %605 = vst [vmem:[%s593] ss:$9 sm:$0xff] %v440
        %606 = vst [vmem:[%s595] ss:$9 sm:$0xff] %v441
        %607 = vst [vmem:[%s597] ss:$9 sm:$0xff] %v417
        %v608 = vld [vmem:[#allocation1] sm:$0xff]
        %609 = vst [vmem:[#allocation1] ss:$9 sm:$0xff] %v442
        %610 = vst [vmem:[%s585] ss:$9 sm:$0xff] %v443
        %611 = vst [vmem:[%s587] ss:$9 sm:$0xff] %v444
        %612 = vst [vmem:[%s589] ss:$9 sm:$0xff] %v445
        %613 = vst [vmem:[%s591] ss:$9 sm:$0xff] %v418
        %614 = vst [vmem:[%s593] ss:$9 sm:$0xff] %v446
        %615 = vst [vmem:[%s595] ss:$9 sm:$0xff] %v447
        %616 = vst [vmem:[%s597] ss:$9 sm:$0xff] %v448
        %v617 = vld [vmem:[#allocation1] sm:$0xff]
        %618 = vst [vmem:[#allocation1] ss:$9 sm:$0xff] %v449
        %619 = vst [vmem:[%s585] ss:$9 sm:$0xff] %v419
        %620 = vst [vmem:[%s587] ss:$9 sm:$0xff] %v450
        %621 = vst [vmem:[%s589] ss:$9 sm:$0xff] %v451
        %622 = vst [vmem:[%s591] ss:$9 sm:$0xff] %v452
        %623 = vst [vmem:[%s593] ss:$9 sm:$0xff] %v453
        %624 = vst [vmem:[%s595] ss:$9 sm:$0xff] %v420
        %625 = vst [vmem:[%s597] ss:$9 sm:$0xff] %v454
        %v626 = vld [vmem:[#allocation1] sm:$0xff]
        %627 = vst [vmem:[#allocation1] ss:$9 sm:$0xff] %v455
        %628 = vst [vmem:[%s585] ss:$9 sm:$0xff] %v456
        %629 = vst [vmem:[%s587] ss:$9 sm:$0xff] %v457
        %630 = vst [vmem:[%s589] ss:$9 sm:$0xff] %v421
        %631 = vst [vmem:[%s591] ss:$9 sm:$0xff] %v458
        %632 = vst [vmem:[%s593] ss:$9 sm:$0xff] %v459
        %633 = vst [vmem:[%s595] ss:$9 sm:$0xff] %v460
        %634 = vst [vmem:[%s597] ss:$9 sm:$0xff] %v461
        %v635 = vld [vmem:[#allocation1] sm:$0xff]
        %641 = vmatpush.msra.mxu0 %v583
        %642 = vmatpush.msra.mxu0 %v582
        %643 = vmatpush.msra.mxu0 %v581
        %644 = vmatpush.msra.mxu0 %v580
        %645 = vmatpush.msra.mxu0 %v579
        %646 = vmatpush.msra.mxu0 %v578
        %647 = vmatpush.msra.mxu0 %v577
        %648 = vmatpush.msra.mxu0 %v576
        %649 = vmatpush.msra.mxu0 %v575
        %650 = vmatpush.msra.mxu0 %v574
        %651 = vmatpush.msra.mxu0 %v573
        %652 = vmatpush.msra.mxu0 %v572
        %653 = vmatpush.msra.mxu0 %v571
        %654 = vmatpush.msra.mxu0 %v570
        %655 = vmatpush.msra.mxu0 %v569
        %656 = vmatpush.msra.mxu0 %v568
        %657 = vmatmul.f32.gmra.mxu0 %v599
        %v658 = vpop.f32.mrf.mxu0
        %v659 = vadd.f32 0.0, %v658
        %660 = vmatmul.f32.gmra.mxu0 %v608
        %v661 = vpop.f32.mrf.mxu0
        %v662 = vadd.f32 0.0, %v661
        %663 = vmatmul.f32.gmra.mxu0 %v617
        %v664 = vpop.f32.mrf.mxu0
        %v665 = vadd.f32 0.0, %v664
        %666 = vmatmul.f32.gmra.mxu0 %v626
        %v667 = vpop.f32.mrf.mxu0
        %v668 = vadd.f32 0.0, %v667
        %669 = vmatmul.f32.gmra.mxu0 %v635
        %v670 = vpop.f32.mrf.mxu0
        %v671 = vadd.f32 0.0, %v670
        %672 = vdwg.mxu0
        %v678 = vrot.slane %v553, 1
        %v679 = vrot.slane %v553, 2
        %v680 = vrot.slane %v553, 3
        %v681 = vrot.slane %v553, 4
        %v682 = vrot.slane %v553, 5
        %v683 = vrot.slane %v553, 6
        %v684 = vrot.slane %v553, 7
        %v685 = vrot.slane %v556, 1
        %v686 = vrot.slane %v556, 2
        %v687 = vrot.slane %v556, 3
        %v688 = vrot.slane %v556, 4
        %v689 = vrot.slane %v556, 5
        %v690 = vrot.slane %v556, 6
        %v691 = vrot.slane %v556, 7
        %v692 = vrot.slane %v559, 1
        %v693 = vrot.slane %v559, 2
        %v694 = vrot.slane %v559, 3
        %v695 = vrot.slane %v559, 4
        %v696 = vrot.slane %v559, 5
        %v697 = vrot.slane %v559, 6
        %v698 = vrot.slane %v559, 7
        %v699 = vrot.slane %v562, 1
        %v700 = vrot.slane %v562, 2
        %v701 = vrot.slane %v562, 3
        %v702 = vrot.slane %v562, 4
        %v703 = vrot.slane %v562, 5
        %v704 = vrot.slane %v562, 6
        %v705 = vrot.slane %v562, 7
        %v706 = vrot.slane %v565, 1
        %v707 = vrot.slane %v565, 2
        %v708 = vrot.slane %v565, 3
        %v709 = vrot.slane %v565, 4
        %v710 = vrot.slane %v565, 5
        %v711 = vrot.slane %v565, 6
        %v712 = vrot.slane %v565, 7
        %v718 = vrot.slane %v659, 1
        %v719 = vrot.slane %v659, 2
        %v720 = vrot.slane %v659, 3
        %v721 = vrot.slane %v659, 4
        %v722 = vrot.slane %v659, 5
        %v723 = vrot.slane %v659, 6
        %v724 = vrot.slane %v659, 7
        %v725 = vrot.slane %v662, 1
        %v726 = vrot.slane %v662, 2
        %v727 = vrot.slane %v662, 3
        %v728 = vrot.slane %v662, 4
        %v729 = vrot.slane %v662, 5
        %v730 = vrot.slane %v662, 6
        %v731 = vrot.slane %v662, 7
        %v732 = vrot.slane %v665, 1
        %v733 = vrot.slane %v665, 2
        %v734 = vrot.slane %v665, 3
        %v735 = vrot.slane %v665, 4
        %v736 = vrot.slane %v665, 5
        %v737 = vrot.slane %v665, 6
        %v738 = vrot.slane %v665, 7
        %v739 = vrot.slane %v668, 1
        %v740 = vrot.slane %v668, 2
        %v741 = vrot.slane %v668, 3
        %v742 = vrot.slane %v668, 4
        %v743 = vrot.slane %v668, 5
        %v744 = vrot.slane %v668, 6
        %v745 = vrot.slane %v668, 7
        %v746 = vrot.slane %v671, 1
        %v747 = vrot.slane %v671, 2
        %v748 = vrot.slane %v671, 3
        %v749 = vrot.slane %v671, 4
        %v750 = vrot.slane %v671, 5
        %v751 = vrot.slane %v671, 6
        %v752 = vrot.slane %v671, 7
        %v753 = vperm.slane %v553, 0
        %v754 = vperm.slane %v678, 0
        %v755 = vperm.slane %v679, 0
        %v756 = vperm.slane %v680, 0
        %v757 = vperm.slane %v681, 0
        %v758 = vperm.slane %v682, 0
        %v759 = vperm.slane %v683, 0
        %v760 = vperm.slane %v684, 0
        %v761 = vperm.slane %v556, 0
        %v762 = vperm.slane %v685, 0
        %v763 = vperm.slane %v686, 0
        %v764 = vperm.slane %v687, 0
        %v765 = vperm.slane %v688, 0
        %v766 = vperm.slane %v689, 0
        %v767 = vperm.slane %v690, 0
        %v768 = vperm.slane %v691, 0
        %v769 = vperm.slane %v559, 0
        %v770 = vperm.slane %v692, 0
        %v771 = vperm.slane %v693, 0
        %v772 = vperm.slane %v694, 0
        %v773 = vperm.slane %v695, 0
        %v774 = vperm.slane %v696, 0
        %v775 = vperm.slane %v697, 0
        %v776 = vperm.slane %v698, 0
        %v777 = vperm.slane %v562, 0
        %v778 = vperm.slane %v699, 0
        %v779 = vperm.slane %v700, 0
        %v780 = vperm.slane %v701, 0
        %v781 = vperm.slane %v702, 0
        %v782 = vperm.slane %v703, 0
        %v783 = vperm.slane %v704, 0
        %v784 = vperm.slane %v705, 0
        %v785 = vperm.slane %v565, 0
        %v786 = vperm.slane %v706, 0
        %v787 = vperm.slane %v707, 0
        %v788 = vperm.slane %v708, 0
        %v789 = vperm.slane %v709, 0
        %v790 = vperm.slane %v710, 0
        %v791 = vperm.slane %v711, 0
        %v792 = vperm.slane %v712, 0
        %833 = vst [vmem:[#allocation1] ss:$9 sm:$0xff] %v659
        %s834 = scalar_lea.vmem [#allocation1], 1
        %835 = vst [vmem:[%s834] ss:$9 sm:$0xff] %v718
        %s836 = scalar_lea.vmem [#allocation1], 2
        %837 = vst [vmem:[%s836] ss:$9 sm:$0xff] %v719
        %s838 = scalar_lea.vmem [#allocation1], 3
        %839 = vst [vmem:[%s838] ss:$9 sm:$0xff] %v720
        %s840 = scalar_lea.vmem [#allocation1], 4
        %841 = vst [vmem:[%s840] ss:$9 sm:$0xff] %v721
        %v842 = vld [vmem:[#allocation1] sm:$0xff]
        %843 = vst [vmem:[#allocation1] ss:$9 sm:$0xff] %v659
        %844 = vst [vmem:[%s834] ss:$9 sm:$0xff] %v718
        %845 = vst [vmem:[%s836] ss:$9 sm:$0xff] %v719
        %846 = vst [vmem:[%s838] ss:$9 sm:$0xff] %v720
        %847 = vst [vmem:[%s840] ss:$9 sm:$0xff] %v721
        %v848 = vld [vmem:[#allocation1] sm:$0xff]
        %849 = vst [vmem:[#allocation1] ss:$9 sm:$0xff] %v659
        %850 = vst [vmem:[%s834] ss:$9 sm:$0xff] %v718
        %851 = vst [vmem:[%s836] ss:$9 sm:$0xff] %v719
        %852 = vst [vmem:[%s838] ss:$9 sm:$0xff] %v720
        %853 = vst [vmem:[%s840] ss:$9 sm:$0xff] %v721
        %v854 = vld [vmem:[#allocation1] sm:$0xff]
        %855 = vst [vmem:[#allocation1] ss:$9 sm:$0xff] %v659
        %856 = vst [vmem:[%s834] ss:$9 sm:$0xff] %v718
        %857 = vst [vmem:[%s836] ss:$9 sm:$0xff] %v719
        %858 = vst [vmem:[%s838] ss:$9 sm:$0xff] %v720
        %859 = vst [vmem:[%s840] ss:$9 sm:$0xff] %v721
        %v860 = vld [vmem:[#allocation1] sm:$0xff]
        %861 = vst [vmem:[#allocation1] ss:$9 sm:$0xff] %v659
        %862 = vst [vmem:[%s834] ss:$9 sm:$0xff] %v718
        %863 = vst [vmem:[%s836] ss:$9 sm:$0xff] %v719
        %864 = vst [vmem:[%s838] ss:$9 sm:$0xff] %v720
        %865 = vst [vmem:[%s840] ss:$9 sm:$0xff] %v721
        %v866 = vld [vmem:[#allocation1] sm:$0xff]
        %867 = vst [vmem:[#allocation1] ss:$9 sm:$0xff] %v722
        %868 = vst [vmem:[%s834] ss:$9 sm:$0xff] %v723
        %869 = vst [vmem:[%s836] ss:$9 sm:$0xff] %v724
        %870 = vst [vmem:[%s838] ss:$9 sm:$0xff] %v662
        %871 = vst [vmem:[%s840] ss:$9 sm:$0xff] %v725
        %v872 = vld [vmem:[#allocation1] sm:$0xff]
        %873 = vst [vmem:[#allocation1] ss:$9 sm:$0xff] %v722
        %874 = vst [vmem:[%s834] ss:$9 sm:$0xff] %v723
        %875 = vst [vmem:[%s836] ss:$9 sm:$0xff] %v724
        %876 = vst [vmem:[%s838] ss:$9 sm:$0xff] %v662
        %877 = vst [vmem:[%s840] ss:$9 sm:$0xff] %v725
        %v878 = vld [vmem:[#allocation1] sm:$0xff]
        %879 = vst [vmem:[#allocation1] ss:$9 sm:$0xff] %v722
        %880 = vst [vmem:[%s834] ss:$9 sm:$0xff] %v723
        %881 = vst [vmem:[%s836] ss:$9 sm:$0xff] %v724
        %882 = vst [vmem:[%s838] ss:$9 sm:$0xff] %v662
        %883 = vst [vmem:[%s840] ss:$9 sm:$0xff] %v725
        %v884 = vld [vmem:[#allocation1] sm:$0xff]
        %885 = vst [vmem:[#allocation1] ss:$9 sm:$0xff] %v722
        %886 = vst [vmem:[%s834] ss:$9 sm:$0xff] %v723
        %887 = vst [vmem:[%s836] ss:$9 sm:$0xff] %v724
        %888 = vst [vmem:[%s838] ss:$9 sm:$0xff] %v662
        %889 = vst [vmem:[%s840] ss:$9 sm:$0xff] %v725
        %v890 = vld [vmem:[#allocation1] sm:$0xff]
        %891 = vst [vmem:[#allocation1] ss:$9 sm:$0xff] %v722
        %892 = vst [vmem:[%s834] ss:$9 sm:$0xff] %v723
        %893 = vst [vmem:[%s836] ss:$9 sm:$0xff] %v724
        %894 = vst [vmem:[%s838] ss:$9 sm:$0xff] %v662
        %895 = vst [vmem:[%s840] ss:$9 sm:$0xff] %v725
        %v896 = vld [vmem:[#allocation1] sm:$0xff]
        %897 = vst [vmem:[#allocation1] ss:$9 sm:$0xff] %v726
        %898 = vst [vmem:[%s834] ss:$9 sm:$0xff] %v727
        %899 = vst [vmem:[%s836] ss:$9 sm:$0xff] %v728
        %900 = vst [vmem:[%s838] ss:$9 sm:$0xff] %v729
        %901 = vst [vmem:[%s840] ss:$9 sm:$0xff] %v730
        %v902 = vld [vmem:[#allocation1] sm:$0xff]
        %903 = vst [vmem:[#allocation1] ss:$9 sm:$0xff] %v726
        %904 = vst [vmem:[%s834] ss:$9 sm:$0xff] %v727
        %905 = vst [vmem:[%s836] ss:$9 sm:$0xff] %v728
        %906 = vst [vmem:[%s838] ss:$9 sm:$0xff] %v729
        %907 = vst [vmem:[%s840] ss:$9 sm:$0xff] %v730
        %v908 = vld [vmem:[#allocation1] sm:$0xff]
        %909 = vst [vmem:[#allocation1] ss:$9 sm:$0xff] %v726
        %910 = vst [vmem:[%s834] ss:$9 sm:$0xff] %v727
        %911 = vst [vmem:[%s836] ss:$9 sm:$0xff] %v728
        %912 = vst [vmem:[%s838] ss:$9 sm:$0xff] %v729
        %913 = vst [vmem:[%s840] ss:$9 sm:$0xff] %v730
        %v914 = vld [vmem:[#allocation1] sm:$0xff]
        %915 = vst [vmem:[#allocation1] ss:$9 sm:$0xff] %v726
        %916 = vst [vmem:[%s834] ss:$9 sm:$0xff] %v727
        %917 = vst [vmem:[%s836] ss:$9 sm:$0xff] %v728
        %918 = vst [vmem:[%s838] ss:$9 sm:$0xff] %v729
        %919 = vst [vmem:[%s840] ss:$9 sm:$0xff] %v730
        %v920 = vld [vmem:[#allocation1] sm:$0xff]
        %921 = vst [vmem:[#allocation1] ss:$9 sm:$0xff] %v726
        %922 = vst [vmem:[%s834] ss:$9 sm:$0xff] %v727
        %923 = vst [vmem:[%s836] ss:$9 sm:$0xff] %v728
        %924 = vst [vmem:[%s838] ss:$9 sm:$0xff] %v729
        %925 = vst [vmem:[%s840] ss:$9 sm:$0xff] %v730
        %v926 = vld [vmem:[#allocation1] sm:$0xff]
        %927 = vst [vmem:[#allocation1] ss:$9 sm:$0xff] %v731
        %928 = vst [vmem:[%s834] ss:$9 sm:$0xff] %v665
        %929 = vst [vmem:[%s836] ss:$9 sm:$0xff] %v732
        %930 = vst [vmem:[%s838] ss:$9 sm:$0xff] %v733
        %931 = vst [vmem:[%s840] ss:$9 sm:$0xff] %v734
        %v932 = vld [vmem:[#allocation1] sm:$0xff]
        %933 = vst [vmem:[#allocation1] ss:$9 sm:$0xff] %v731
        %934 = vst [vmem:[%s834] ss:$9 sm:$0xff] %v665
        %935 = vst [vmem:[%s836] ss:$9 sm:$0xff] %v732
        %936 = vst [vmem:[%s838] ss:$9 sm:$0xff] %v733
        %937 = vst [vmem:[%s840] ss:$9 sm:$0xff] %v734
        %v938 = vld [vmem:[#allocation1] sm:$0xff]
        %939 = vst [vmem:[#allocation1] ss:$9 sm:$0xff] %v731
        %940 = vst [vmem:[%s834] ss:$9 sm:$0xff] %v665
        %941 = vst [vmem:[%s836] ss:$9 sm:$0xff] %v732
        %942 = vst [vmem:[%s838] ss:$9 sm:$0xff] %v733
        %943 = vst [vmem:[%s840] ss:$9 sm:$0xff] %v734
        %v944 = vld [vmem:[#allocation1] sm:$0xff]
        %945 = vst [vmem:[#allocation1] ss:$9 sm:$0xff] %v731
        %946 = vst [vmem:[%s834] ss:$9 sm:$0xff] %v665
        %947 = vst [vmem:[%s836] ss:$9 sm:$0xff] %v732
        %948 = vst [vmem:[%s838] ss:$9 sm:$0xff] %v733
        %949 = vst [vmem:[%s840] ss:$9 sm:$0xff] %v734
        %v950 = vld [vmem:[#allocation1] sm:$0xff]
        %951 = vst [vmem:[#allocation1] ss:$9 sm:$0xff] %v731
        %952 = vst [vmem:[%s834] ss:$9 sm:$0xff] %v665
        %953 = vst [vmem:[%s836] ss:$9 sm:$0xff] %v732
        %954 = vst [vmem:[%s838] ss:$9 sm:$0xff] %v733
        %955 = vst [vmem:[%s840] ss:$9 sm:$0xff] %v734
        %v956 = vld [vmem:[#allocation1] sm:$0xff]
        %957 = vst [vmem:[#allocation1] ss:$9 sm:$0xff] %v735
        %958 = vst [vmem:[%s834] ss:$9 sm:$0xff] %v736
        %959 = vst [vmem:[%s836] ss:$9 sm:$0xff] %v737
        %960 = vst [vmem:[%s838] ss:$9 sm:$0xff] %v738
        %961 = vst [vmem:[%s840] ss:$9 sm:$0xff] %v668
        %v962 = vld [vmem:[#allocation1] sm:$0xff]
        %963 = vst [vmem:[#allocation1] ss:$9 sm:$0xff] %v735
        %964 = vst [vmem:[%s834] ss:$9 sm:$0xff] %v736
        %965 = vst [vmem:[%s836] ss:$9 sm:$0xff] %v737
        %966 = vst [vmem:[%s838] ss:$9 sm:$0xff] %v738
        %967 = vst [vmem:[%s840] ss:$9 sm:$0xff] %v668
        %v968 = vld [vmem:[#allocation1] sm:$0xff]
        %969 = vst [vmem:[#allocation1] ss:$9 sm:$0xff] %v735
        %970 = vst [vmem:[%s834] ss:$9 sm:$0xff] %v736
        %971 = vst [vmem:[%s836] ss:$9 sm:$0xff] %v737
        %972 = vst [vmem:[%s838] ss:$9 sm:$0xff] %v738
        %973 = vst [vmem:[%s840] ss:$9 sm:$0xff] %v668
        %v974 = vld [vmem:[#allocation1] sm:$0xff]
        %975 = vst [vmem:[#allocation1] ss:$9 sm:$0xff] %v735
        %976 = vst [vmem:[%s834] ss:$9 sm:$0xff] %v736
        %977 = vst [vmem:[%s836] ss:$9 sm:$0xff] %v737
        %978 = vst [vmem:[%s838] ss:$9 sm:$0xff] %v738
        %979 = vst [vmem:[%s840] ss:$9 sm:$0xff] %v668
        %v980 = vld [vmem:[#allocation1] sm:$0xff]
        %981 = vst [vmem:[#allocation1] ss:$9 sm:$0xff] %v735
        %982 = vst [vmem:[%s834] ss:$9 sm:$0xff] %v736
        %983 = vst [vmem:[%s836] ss:$9 sm:$0xff] %v737
        %984 = vst [vmem:[%s838] ss:$9 sm:$0xff] %v738
        %985 = vst [vmem:[%s840] ss:$9 sm:$0xff] %v668
        %v986 = vld [vmem:[#allocation1] sm:$0xff]
        %987 = vst [vmem:[#allocation1] ss:$9 sm:$0xff] %v739
        %988 = vst [vmem:[%s834] ss:$9 sm:$0xff] %v740
        %989 = vst [vmem:[%s836] ss:$9 sm:$0xff] %v741
        %990 = vst [vmem:[%s838] ss:$9 sm:$0xff] %v742
        %991 = vst [vmem:[%s840] ss:$9 sm:$0xff] %v743
        %v992 = vld [vmem:[#allocation1] sm:$0xff]
        %993 = vst [vmem:[#allocation1] ss:$9 sm:$0xff] %v739
        %994 = vst [vmem:[%s834] ss:$9 sm:$0xff] %v740
        %995 = vst [vmem:[%s836] ss:$9 sm:$0xff] %v741
        %996 = vst [vmem:[%s838] ss:$9 sm:$0xff] %v742
        %997 = vst [vmem:[%s840] ss:$9 sm:$0xff] %v743
        %v998 = vld [vmem:[#allocation1] sm:$0xff]
        %999 = vst [vmem:[#allocation1] ss:$9 sm:$0xff] %v739
        %1000 = vst [vmem:[%s834] ss:$9 sm:$0xff] %v740
        %1001 = vst [vmem:[%s836] ss:$9 sm:$0xff] %v741
        %1002 = vst [vmem:[%s838] ss:$9 sm:$0xff] %v742
        %1003 = vst [vmem:[%s840] ss:$9 sm:$0xff] %v743
        %v1004 = vld [vmem:[#allocation1] sm:$0xff]
        %1005 = vst [vmem:[#allocation1] ss:$9 sm:$0xff] %v739
        %1006 = vst [vmem:[%s834] ss:$9 sm:$0xff] %v740
        %1007 = vst [vmem:[%s836] ss:$9 sm:$0xff] %v741
        %1008 = vst [vmem:[%s838] ss:$9 sm:$0xff] %v742
        %1009 = vst [vmem:[%s840] ss:$9 sm:$0xff] %v743
        %v1010 = vld [vmem:[#allocation1] sm:$0xff]
        %1011 = vst [vmem:[#allocation1] ss:$9 sm:$0xff] %v739
        %1012 = vst [vmem:[%s834] ss:$9 sm:$0xff] %v740
        %1013 = vst [vmem:[%s836] ss:$9 sm:$0xff] %v741
        %1014 = vst [vmem:[%s838] ss:$9 sm:$0xff] %v742
        %1015 = vst [vmem:[%s840] ss:$9 sm:$0xff] %v743
        %v1016 = vld [vmem:[#allocation1] sm:$0xff]
        %1017 = vst [vmem:[#allocation1] ss:$9 sm:$0xff] %v744
        %1018 = vst [vmem:[%s834] ss:$9 sm:$0xff] %v745
        %1019 = vst [vmem:[%s836] ss:$9 sm:$0xff] %v671
        %1020 = vst [vmem:[%s838] ss:$9 sm:$0xff] %v746
        %1021 = vst [vmem:[%s840] ss:$9 sm:$0xff] %v747
        %v1022 = vld [vmem:[#allocation1] sm:$0xff]
        %1023 = vst [vmem:[#allocation1] ss:$9 sm:$0xff] %v744
        %1024 = vst [vmem:[%s834] ss:$9 sm:$0xff] %v745
        %1025 = vst [vmem:[%s836] ss:$9 sm:$0xff] %v671
        %1026 = vst [vmem:[%s838] ss:$9 sm:$0xff] %v746
        %1027 = vst [vmem:[%s840] ss:$9 sm:$0xff] %v747
        %v1028 = vld [vmem:[#allocation1] sm:$0xff]
        %1029 = vst [vmem:[#allocation1] ss:$9 sm:$0xff] %v744
        %1030 = vst [vmem:[%s834] ss:$9 sm:$0xff] %v745
        %1031 = vst [vmem:[%s836] ss:$9 sm:$0xff] %v671
        %1032 = vst [vmem:[%s838] ss:$9 sm:$0xff] %v746
        %1033 = vst [vmem:[%s840] ss:$9 sm:$0xff] %v747
        %v1034 = vld [vmem:[#allocation1] sm:$0xff]
        %1035 = vst [vmem:[#allocation1] ss:$9 sm:$0xff] %v744
        %1036 = vst [vmem:[%s834] ss:$9 sm:$0xff] %v745
        %1037 = vst [vmem:[%s836] ss:$9 sm:$0xff] %v671
        %1038 = vst [vmem:[%s838] ss:$9 sm:$0xff] %v746
        %1039 = vst [vmem:[%s840] ss:$9 sm:$0xff] %v747
        %v1040 = vld [vmem:[#allocation1] sm:$0xff]
        %1041 = vst [vmem:[#allocation1] ss:$9 sm:$0xff] %v744
        %1042 = vst [vmem:[%s834] ss:$9 sm:$0xff] %v745
        %1043 = vst [vmem:[%s836] ss:$9 sm:$0xff] %v671
        %1044 = vst [vmem:[%s838] ss:$9 sm:$0xff] %v746
        %1045 = vst [vmem:[%s840] ss:$9 sm:$0xff] %v747
        %v1046 = vld [vmem:[#allocation1] sm:$0xff]
        %1047 = vst [vmem:[#allocation1] ss:$9 sm:$0xff] %v748
        %1048 = vst [vmem:[%s834] ss:$9 sm:$0xff] %v749
        %1049 = vst [vmem:[%s836] ss:$9 sm:$0xff] %v750
        %1050 = vst [vmem:[%s838] ss:$9 sm:$0xff] %v751
        %1051 = vst [vmem:[%s840] ss:$9 sm:$0xff] %v752
        %v1052 = vld [vmem:[#allocation1] sm:$0xff]
        %1053 = vst [vmem:[#allocation1] ss:$9 sm:$0xff] %v748
        %1054 = vst [vmem:[%s834] ss:$9 sm:$0xff] %v749
        %1055 = vst [vmem:[%s836] ss:$9 sm:$0xff] %v750
        %1056 = vst [vmem:[%s838] ss:$9 sm:$0xff] %v751
        %1057 = vst [vmem:[%s840] ss:$9 sm:$0xff] %v752
        %v1058 = vld [vmem:[#allocation1] sm:$0xff]
        %1059 = vst [vmem:[#allocation1] ss:$9 sm:$0xff] %v748
        %1060 = vst [vmem:[%s834] ss:$9 sm:$0xff] %v749
        %1061 = vst [vmem:[%s836] ss:$9 sm:$0xff] %v750
        %1062 = vst [vmem:[%s838] ss:$9 sm:$0xff] %v751
        %1063 = vst [vmem:[%s840] ss:$9 sm:$0xff] %v752
        %v1064 = vld [vmem:[#allocation1] sm:$0xff]
        %1065 = vst [vmem:[#allocation1] ss:$9 sm:$0xff] %v748
        %1066 = vst [vmem:[%s834] ss:$9 sm:$0xff] %v749
        %1067 = vst [vmem:[%s836] ss:$9 sm:$0xff] %v750
        %1068 = vst [vmem:[%s838] ss:$9 sm:$0xff] %v751
        %1069 = vst [vmem:[%s840] ss:$9 sm:$0xff] %v752
        %v1070 = vld [vmem:[#allocation1] sm:$0xff]
        %1071 = vst [vmem:[#allocation1] ss:$9 sm:$0xff] %v748
        %1072 = vst [vmem:[%s834] ss:$9 sm:$0xff] %v749
        %1073 = vst [vmem:[%s836] ss:$9 sm:$0xff] %v750
        %1074 = vst [vmem:[%s838] ss:$9 sm:$0xff] %v751
        %1075 = vst [vmem:[%s840] ss:$9 sm:$0xff] %v752
        %v1076 = vld [vmem:[#allocation1] sm:$0xff]
        %v1117 = vadd.f32 %v753, %v842
        %v1118 = vadd.f32 %v754, %v848
        %v1119 = vadd.f32 %v755, %v854
        %v1120 = vadd.f32 %v756, %v860
        %v1121 = vadd.f32 %v757, %v866
        %v1122 = vadd.f32 %v758, %v872
        %v1123 = vadd.f32 %v759, %v878
        %v1124 = vadd.f32 %v760, %v884
        %v1125 = vadd.f32 %v761, %v890
        %v1126 = vadd.f32 %v762, %v896
        %v1127 = vadd.f32 %v763, %v902
        %v1128 = vadd.f32 %v764, %v908
        %v1129 = vadd.f32 %v765, %v914
        %v1130 = vadd.f32 %v766, %v920
        %v1131 = vadd.f32 %v767, %v926
        %v1132 = vadd.f32 %v768, %v932
        %v1133 = vadd.f32 %v769, %v938
        %v1134 = vadd.f32 %v770, %v944
        %v1135 = vadd.f32 %v771, %v950
        %v1136 = vadd.f32 %v772, %v956
        %v1137 = vadd.f32 %v773, %v962
        %v1138 = vadd.f32 %v774, %v968
        %v1139 = vadd.f32 %v775, %v974
        %v1140 = vadd.f32 %v776, %v980
        %v1141 = vadd.f32 %v777, %v986
        %v1142 = vadd.f32 %v778, %v992
        %v1143 = vadd.f32 %v779, %v998
        %v1144 = vadd.f32 %v780, %v1004
        %v1145 = vadd.f32 %v781, %v1010
        %v1146 = vadd.f32 %v782, %v1016
        %v1147 = vadd.f32 %v783, %v1022
        %v1148 = vadd.f32 %v784, %v1028
        %v1149 = vadd.f32 %v785, %v1034
        %v1150 = vadd.f32 %v786, %v1040
        %v1151 = vadd.f32 %v787, %v1046
        %v1152 = vadd.f32 %v788, %v1052
        %v1153 = vadd.f32 %v789, %v1058
        %v1154 = vadd.f32 %v790, %v1064
        %v1155 = vadd.f32 %v791, %v1070
        %v1156 = vadd.f32 %v792, %v1076
        %v1157 = vperm.slane %v235, 0
        %v1158 = vadd.f32 %v1117, %v1157
        %v1159 = vadd.f32 %v1118, %v1157
        %v1160 = vadd.f32 %v1119, %v1157
        %v1161 = vadd.f32 %v1120, %v1157
        %v1162 = vadd.f32 %v1121, %v1157
        %v1163 = vadd.f32 %v1122, %v1157
        %v1164 = vadd.f32 %v1123, %v1157
        %v1165 = vadd.f32 %v1124, %v1157
        %v1166 = vadd.f32 %v1125, %v1157
        %v1167 = vadd.f32 %v1126, %v1157
        %v1168 = vadd.f32 %v1127, %v1157
        %v1169 = vadd.f32 %v1128, %v1157
        %v1170 = vadd.f32 %v1129, %v1157
        %v1171 = vadd.f32 %v1130, %v1157
        %v1172 = vadd.f32 %v1131, %v1157
        %v1173 = vadd.f32 %v1132, %v1157
        %v1174 = vadd.f32 %v1133, %v1157
        %v1175 = vadd.f32 %v1134, %v1157
        %v1176 = vadd.f32 %v1135, %v1157
        %v1177 = vadd.f32 %v1136, %v1157
        %v1178 = vadd.f32 %v1137, %v1157
        %v1179 = vadd.f32 %v1138, %v1157
        %v1180 = vadd.f32 %v1139, %v1157
        %v1181 = vadd.f32 %v1140, %v1157
        %v1182 = vadd.f32 %v1141, %v1157
        %v1183 = vadd.f32 %v1142, %v1157
        %v1184 = vadd.f32 %v1143, %v1157
        %v1185 = vadd.f32 %v1144, %v1157
        %v1186 = vadd.f32 %v1145, %v1157
        %v1187 = vadd.f32 %v1146, %v1157
        %v1188 = vadd.f32 %v1147, %v1157
        %v1189 = vadd.f32 %v1148, %v1157
        %v1190 = vadd.f32 %v1149, %v1157
        %v1191 = vadd.f32 %v1150, %v1157
        %v1192 = vadd.f32 %v1151, %v1157
        %v1193 = vadd.f32 %v1152, %v1157
        %v1194 = vadd.f32 %v1153, %v1157
        %v1195 = vadd.f32 %v1154, %v1157
        %v1196 = vadd.f32 %v1155, %v1157
        %v1197 = vadd.f32 %v1156, %v1157
        %v1198 = vmax.f32 %v1158, 0.0
        %v1199 = vmax.f32 %v1159, 0.0
        %v1200 = vmax.f32 %v1160, 0.0
        %v1201 = vmax.f32 %v1161, 0.0
        %v1202 = vmax.f32 %v1162, 0.0
        %v1203 = vmax.f32 %v1163, 0.0
        %v1204 = vmax.f32 %v1164, 0.0
        %v1205 = vmax.f32 %v1165, 0.0
        %v1206 = vmax.f32 %v1166, 0.0
        %v1207 = vmax.f32 %v1167, 0.0
        %v1208 = vmax.f32 %v1168, 0.0
        %v1209 = vmax.f32 %v1169, 0.0
        %v1210 = vmax.f32 %v1170, 0.0
        %v1211 = vmax.f32 %v1171, 0.0
        %v1212 = vmax.f32 %v1172, 0.0
        %v1213 = vmax.f32 %v1173, 0.0
        %v1214 = vmax.f32 %v1174, 0.0
        %v1215 = vmax.f32 %v1175, 0.0
        %v1216 = vmax.f32 %v1176, 0.0
        %v1217 = vmax.f32 %v1177, 0.0
        %v1218 = vmax.f32 %v1178, 0.0
        %v1219 = vmax.f32 %v1179, 0.0
        %v1220 = vmax.f32 %v1180, 0.0
        %v1221 = vmax.f32 %v1181, 0.0
        %v1222 = vmax.f32 %v1182, 0.0
        %v1223 = vmax.f32 %v1183, 0.0
        %v1224 = vmax.f32 %v1184, 0.0
        %v1225 = vmax.f32 %v1185, 0.0
        %v1226 = vmax.f32 %v1186, 0.0
        %v1227 = vmax.f32 %v1187, 0.0
        %v1228 = vmax.f32 %v1188, 0.0
        %v1229 = vmax.f32 %v1189, 0.0
        %v1230 = vmax.f32 %v1190, 0.0
        %v1231 = vmax.f32 %v1191, 0.0
        %v1232 = vmax.f32 %v1192, 0.0
        %v1233 = vmax.f32 %v1193, 0.0
        %v1234 = vmax.f32 %v1194, 0.0
        %v1235 = vmax.f32 %v1195, 0.0
        %v1236 = vmax.f32 %v1196, 0.0
        %v1237 = vmax.f32 %v1197, 0.0
        %v1278 = vrot.slane %v1198, 1
        %v1279 = vrot.slane %v1198, 2
        %v1280 = vrot.slane %v1198, 3
        %v1281 = vrot.slane %v1198, 4
        %v1282 = vrot.slane %v1199, 1
        %v1283 = vrot.slane %v1199, 2
        %v1284 = vrot.slane %v1199, 3
        %v1285 = vrot.slane %v1199, 4
        %v1286 = vrot.slane %v1200, 1
        %v1287 = vrot.slane %v1200, 2
        %v1288 = vrot.slane %v1200, 3
        %v1289 = vrot.slane %v1200, 4
        %v1290 = vrot.slane %v1201, 1
        %v1291 = vrot.slane %v1201, 2
        %v1292 = vrot.slane %v1201, 3
        %v1293 = vrot.slane %v1201, 4
        %v1294 = vrot.slane %v1202, 1
        %v1295 = vrot.slane %v1202, 2
        %v1296 = vrot.slane %v1202, 3
        %v1297 = vrot.slane %v1202, 4
        %v1298 = vrot.slane %v1203, 1
        %v1299 = vrot.slane %v1203, 2
        %v1300 = vrot.slane %v1203, 3
        %v1301 = vrot.slane %v1203, 4
        %v1302 = vrot.slane %v1204, 1
        %v1303 = vrot.slane %v1204, 2
        %v1304 = vrot.slane %v1204, 3
        %v1305 = vrot.slane %v1204, 4
        %v1306 = vrot.slane %v1205, 1
        %v1307 = vrot.slane %v1205, 2
        %v1308 = vrot.slane %v1205, 3
        %v1309 = vrot.slane %v1205, 4
        %v1310 = vrot.slane %v1206, 1
        %v1311 = vrot.slane %v1206, 2
        %v1312 = vrot.slane %v1206, 3
        %v1313 = vrot.slane %v1206, 4
        %v1314 = vrot.slane %v1207, 1
        %v1315 = vrot.slane %v1207, 2
        %v1316 = vrot.slane %v1207, 3
        %v1317 = vrot.slane %v1207, 4
        %v1318 = vrot.slane %v1208, 1
        %v1319 = vrot.slane %v1208, 2
        %v1320 = vrot.slane %v1208, 3
        %v1321 = vrot.slane %v1208, 4
        %v1322 = vrot.slane %v1209, 1
        %v1323 = vrot.slane %v1209, 2
        %v1324 = vrot.slane %v1209, 3
        %v1325 = vrot.slane %v1209, 4
        %v1326 = vrot.slane %v1210, 1
        %v1327 = vrot.slane %v1210, 2
        %v1328 = vrot.slane %v1210, 3
        %v1329 = vrot.slane %v1210, 4
        %v1330 = vrot.slane %v1211, 1
        %v1331 = vrot.slane %v1211, 2
        %v1332 = vrot.slane %v1211, 3
        %v1333 = vrot.slane %v1211, 4
        %v1334 = vrot.slane %v1212, 1
        %v1335 = vrot.slane %v1212, 2
        %v1336 = vrot.slane %v1212, 3
        %v1337 = vrot.slane %v1212, 4
        %v1338 = vrot.slane %v1213, 1
        %v1339 = vrot.slane %v1213, 2
        %v1340 = vrot.slane %v1213, 3
        %v1341 = vrot.slane %v1213, 4
        %v1342 = vrot.slane %v1214, 1
        %v1343 = vrot.slane %v1214, 2
        %v1344 = vrot.slane %v1214, 3
        %v1345 = vrot.slane %v1214, 4
        %v1346 = vrot.slane %v1215, 1
        %v1347 = vrot.slane %v1215, 2
        %v1348 = vrot.slane %v1215, 3
        %v1349 = vrot.slane %v1215, 4
        %v1350 = vrot.slane %v1216, 1
        %v1351 = vrot.slane %v1216, 2
        %v1352 = vrot.slane %v1216, 3
        %v1353 = vrot.slane %v1216, 4
        %v1354 = vrot.slane %v1217, 1
        %v1355 = vrot.slane %v1217, 2
        %v1356 = vrot.slane %v1217, 3
        %v1357 = vrot.slane %v1217, 4
        %v1358 = vrot.slane %v1218, 1
        %v1359 = vrot.slane %v1218, 2
        %v1360 = vrot.slane %v1218, 3
        %v1361 = vrot.slane %v1218, 4
        %v1362 = vrot.slane %v1219, 1
        %v1363 = vrot.slane %v1219, 2
        %v1364 = vrot.slane %v1219, 3
        %v1365 = vrot.slane %v1219, 4
        %v1366 = vrot.slane %v1220, 1
        %v1367 = vrot.slane %v1220, 2
        %v1368 = vrot.slane %v1220, 3
        %v1369 = vrot.slane %v1220, 4
        %v1370 = vrot.slane %v1221, 1
        %v1371 = vrot.slane %v1221, 2
        %v1372 = vrot.slane %v1221, 3
        %v1373 = vrot.slane %v1221, 4
        %v1374 = vrot.slane %v1222, 1
        %v1375 = vrot.slane %v1222, 2
        %v1376 = vrot.slane %v1222, 3
        %v1377 = vrot.slane %v1222, 4
        %v1378 = vrot.slane %v1223, 1
        %v1379 = vrot.slane %v1223, 2
        %v1380 = vrot.slane %v1223, 3
        %v1381 = vrot.slane %v1223, 4
        %v1382 = vrot.slane %v1224, 1
        %v1383 = vrot.slane %v1224, 2
        %v1384 = vrot.slane %v1224, 3
        %v1385 = vrot.slane %v1224, 4
        %v1386 = vrot.slane %v1225, 1
        %v1387 = vrot.slane %v1225, 2
        %v1388 = vrot.slane %v1225, 3
        %v1389 = vrot.slane %v1225, 4
        %v1390 = vrot.slane %v1226, 1
        %v1391 = vrot.slane %v1226, 2
        %v1392 = vrot.slane %v1226, 3
        %v1393 = vrot.slane %v1226, 4
        %v1394 = vrot.slane %v1227, 1
        %v1395 = vrot.slane %v1227, 2
        %v1396 = vrot.slane %v1227, 3
        %v1397 = vrot.slane %v1227, 4
        %v1398 = vrot.slane %v1228, 1
        %v1399 = vrot.slane %v1228, 2
        %v1400 = vrot.slane %v1228, 3
        %v1401 = vrot.slane %v1228, 4
        %v1402 = vrot.slane %v1229, 1
        %v1403 = vrot.slane %v1229, 2
        %v1404 = vrot.slane %v1229, 3
        %v1405 = vrot.slane %v1229, 4
        %v1406 = vrot.slane %v1230, 1
        %v1407 = vrot.slane %v1230, 2
        %v1408 = vrot.slane %v1230, 3
        %v1409 = vrot.slane %v1230, 4
        %v1410 = vrot.slane %v1231, 1
        %v1411 = vrot.slane %v1231, 2
        %v1412 = vrot.slane %v1231, 3
        %v1413 = vrot.slane %v1231, 4
        %v1414 = vrot.slane %v1232, 1
        %v1415 = vrot.slane %v1232, 2
        %v1416 = vrot.slane %v1232, 3
        %v1417 = vrot.slane %v1232, 4
        %v1418 = vrot.slane %v1233, 1
        %v1419 = vrot.slane %v1233, 2
        %v1420 = vrot.slane %v1233, 3
        %v1421 = vrot.slane %v1233, 4
        %v1422 = vrot.slane %v1234, 1
        %v1423 = vrot.slane %v1234, 2
        %v1424 = vrot.slane %v1234, 3
        %v1425 = vrot.slane %v1234, 4
        %v1426 = vrot.slane %v1235, 1
        %v1427 = vrot.slane %v1235, 2
        %v1428 = vrot.slane %v1235, 3
        %v1429 = vrot.slane %v1235, 4
        %v1430 = vrot.slane %v1236, 1
        %v1431 = vrot.slane %v1236, 2
        %v1432 = vrot.slane %v1236, 3
        %v1433 = vrot.slane %v1236, 4
        %v1434 = vrot.slane %v1237, 1
        %v1435 = vrot.slane %v1237, 2
        %v1436 = vrot.slane %v1237, 3
        %v1437 = vrot.slane %v1237, 4
        %s1438 = scalar_lea.vmem [#allocation3], 256
        %v1439 = vld [vmem:[%s1438] sm:$0xff]
        %v1440 = vld [vmem:[%s1438 + $0x8] sm:$0xff]
        %v1441 = vld [vmem:[%s1438 + $0x10] sm:$0xff]
        %v1442 = vld [vmem:[%s1438 + $0x18] sm:$0xff]
        %v1443 = vld [vmem:[%s1438 + $0x20] sm:$0xff]
        %v1444 = vld [vmem:[%s1438 + $0x28] sm:$0xff]
        %v1445 = vld [vmem:[%s1438 + $0x30] sm:$0xff]
        %v1446 = vld [vmem:[%s1438 + $0x38] sm:$0xff]
        %v1447 = vld [vmem:[%s1438 + $0x40] sm:$0xff]
        %v1448 = vld [vmem:[%s1438 + $0x48] sm:$0xff]
        %v1449 = vld [vmem:[%s1438 + $0x50] sm:$0xff]
        %v1450 = vld [vmem:[%s1438 + $0x58] sm:$0xff]
        %v1451 = vld [vmem:[%s1438 + $0x60] sm:$0xff]
        %v1452 = vld [vmem:[%s1438 + $0x68] sm:$0xff]
        %v1453 = vld [vmem:[%s1438 + $0x70] sm:$0xff]
        %v1454 = vld [vmem:[%s1438 + $0x78] sm:$0xff]
        %v1455 = vperm.slane %v235, 1
        %1456 = vst [vmem:[#allocation1] ss:$9 sm:$0xff] %v1198
        %s1457 = scalar_lea.vmem [#allocation1], 1
        %1458 = vst [vmem:[%s1457] ss:$9 sm:$0xff] %v1278
        %s1459 = scalar_lea.vmem [#allocation1], 2
        %1460 = vst [vmem:[%s1459] ss:$9 sm:$0xff] %v1279
        %s1461 = scalar_lea.vmem [#allocation1], 3
        %1462 = vst [vmem:[%s1461] ss:$9 sm:$0xff] %v1280
        %s1463 = scalar_lea.vmem [#allocation1], 4
        %1464 = vst [vmem:[%s1463] ss:$9 sm:$0xff] %v1281
        %s1465 = scalar_lea.vmem [#allocation1], 5
        %1466 = vst [vmem:[%s1465] ss:$9 sm:$0xff] %v1199
        %s1467 = scalar_lea.vmem [#allocation1], 6
        %1468 = vst [vmem:[%s1467] ss:$9 sm:$0xff] %v1282
        %s1469 = scalar_lea.vmem [#allocation1], 7
        %1470 = vst [vmem:[%s1469] ss:$9 sm:$0xff] %v1283
        %v1471 = vld [vmem:[#allocation1] sm:$0xff]
        %1472 = vst [vmem:[#allocation1] ss:$9 sm:$0xff] %v1284
        %1473 = vst [vmem:[%s1457] ss:$9 sm:$0xff] %v1285
        %1474 = vst [vmem:[%s1459] ss:$9 sm:$0xff] %v1200
        %1475 = vst [vmem:[%s1461] ss:$9 sm:$0xff] %v1286
        %1476 = vst [vmem:[%s1463] ss:$9 sm:$0xff] %v1287
        %1477 = vst [vmem:[%s1465] ss:$9 sm:$0xff] %v1288
        %1478 = vst [vmem:[%s1467] ss:$9 sm:$0xff] %v1289
        %1479 = vst [vmem:[%s1469] ss:$9 sm:$0xff] %v1201
        %v1480 = vld [vmem:[#allocation1] sm:$0xff]
        %1481 = vst [vmem:[#allocation1] ss:$9 sm:$0xff] %v1290
        %1482 = vst [vmem:[%s1457] ss:$9 sm:$0xff] %v1291
        %1483 = vst [vmem:[%s1459] ss:$9 sm:$0xff] %v1292
        %1484 = vst [vmem:[%s1461] ss:$9 sm:$0xff] %v1293
        %1485 = vst [vmem:[%s1463] ss:$9 sm:$0xff] %v1202
        %1486 = vst [vmem:[%s1465] ss:$9 sm:$0xff] %v1294
        %1487 = vst [vmem:[%s1467] ss:$9 sm:$0xff] %v1295
        %1488 = vst [vmem:[%s1469] ss:$9 sm:$0xff] %v1296
        %v1489 = vld [vmem:[#allocation1] sm:$0xff]
        %1490 = vst [vmem:[#allocation1] ss:$9 sm:$0xff] %v1297
        %1491 = vst [vmem:[%s1457] ss:$9 sm:$0xff] %v1203
        %1492 = vst [vmem:[%s1459] ss:$9 sm:$0xff] %v1298
        %1493 = vst [vmem:[%s1461] ss:$9 sm:$0xff] %v1299
        %1494 = vst [vmem:[%s1463] ss:$9 sm:$0xff] %v1300
        %1495 = vst [vmem:[%s1465] ss:$9 sm:$0xff] %v1301
        %1496 = vst [vmem:[%s1467] ss:$9 sm:$0xff] %v1204
        %1497 = vst [vmem:[%s1469] ss:$9 sm:$0xff] %v1302
        %v1498 = vld [vmem:[#allocation1] sm:$0xff]
        %1499 = vst [vmem:[#allocation1] ss:$9 sm:$0xff] %v1303
        %1500 = vst [vmem:[%s1457] ss:$9 sm:$0xff] %v1304
        %1501 = vst [vmem:[%s1459] ss:$9 sm:$0xff] %v1305
        %1502 = vst [vmem:[%s1461] ss:$9 sm:$0xff] %v1205
        %1503 = vst [vmem:[%s1463] ss:$9 sm:$0xff] %v1306
        %1504 = vst [vmem:[%s1465] ss:$9 sm:$0xff] %v1307
        %1505 = vst [vmem:[%s1467] ss:$9 sm:$0xff] %v1308
        %1506 = vst [vmem:[%s1469] ss:$9 sm:$0xff] %v1309
        %v1507 = vld [vmem:[#allocation1] sm:$0xff]
        %1508 = vst [vmem:[#allocation1] ss:$9 sm:$0xff] %v1206
        %1509 = vst [vmem:[%s1457] ss:$9 sm:$0xff] %v1310
        %1510 = vst [vmem:[%s1459] ss:$9 sm:$0xff] %v1311
        %1511 = vst [vmem:[%s1461] ss:$9 sm:$0xff] %v1312
        %1512 = vst [vmem:[%s1463] ss:$9 sm:$0xff] %v1313
        %1513 = vst [vmem:[%s1465] ss:$9 sm:$0xff] %v1207
        %1514 = vst [vmem:[%s1467] ss:$9 sm:$0xff] %v1314
        %1515 = vst [vmem:[%s1469] ss:$9 sm:$0xff] %v1315
        %v1516 = vld [vmem:[#allocation1] sm:$0xff]
        %1517 = vst [vmem:[#allocation1] ss:$9 sm:$0xff] %v1316
        %1518 = vst [vmem:[%s1457] ss:$9 sm:$0xff] %v1317
        %1519 = vst [vmem:[%s1459] ss:$9 sm:$0xff] %v1208
        %1520 = vst [vmem:[%s1461] ss:$9 sm:$0xff] %v1318
        %1521 = vst [vmem:[%s1463] ss:$9 sm:$0xff] %v1319
        %1522 = vst [vmem:[%s1465] ss:$9 sm:$0xff] %v1320
        %1523 = vst [vmem:[%s1467] ss:$9 sm:$0xff] %v1321
        %1524 = vst [vmem:[%s1469] ss:$9 sm:$0xff] %v1209
        %v1525 = vld [vmem:[#allocation1] sm:$0xff]
        %1526 = vst [vmem:[#allocation1] ss:$9 sm:$0xff] %v1322
        %1527 = vst [vmem:[%s1457] ss:$9 sm:$0xff] %v1323
        %1528 = vst [vmem:[%s1459] ss:$9 sm:$0xff] %v1324
        %1529 = vst [vmem:[%s1461] ss:$9 sm:$0xff] %v1325
        %1530 = vst [vmem:[%s1463] ss:$9 sm:$0xff] %v1210
        %1531 = vst [vmem:[%s1465] ss:$9 sm:$0xff] %v1326
        %1532 = vst [vmem:[%s1467] ss:$9 sm:$0xff] %v1327
        %1533 = vst [vmem:[%s1469] ss:$9 sm:$0xff] %v1328
        %v1534 = vld [vmem:[#allocation1] sm:$0xff]
        %1535 = vst [vmem:[#allocation1] ss:$9 sm:$0xff] %v1329
        %1536 = vst [vmem:[%s1457] ss:$9 sm:$0xff] %v1211
        %1537 = vst [vmem:[%s1459] ss:$9 sm:$0xff] %v1330
        %1538 = vst [vmem:[%s1461] ss:$9 sm:$0xff] %v1331
        %1539 = vst [vmem:[%s1463] ss:$9 sm:$0xff] %v1332
        %1540 = vst [vmem:[%s1465] ss:$9 sm:$0xff] %v1333
        %1541 = vst [vmem:[%s1467] ss:$9 sm:$0xff] %v1212
        %1542 = vst [vmem:[%s1469] ss:$9 sm:$0xff] %v1334
        %v1543 = vld [vmem:[#allocation1] sm:$0xff]
        %1544 = vst [vmem:[#allocation1] ss:$9 sm:$0xff] %v1335
        %1545 = vst [vmem:[%s1457] ss:$9 sm:$0xff] %v1336
        %1546 = vst [vmem:[%s1459] ss:$9 sm:$0xff] %v1337
        %1547 = vst [vmem:[%s1461] ss:$9 sm:$0xff] %v1213
        %1548 = vst [vmem:[%s1463] ss:$9 sm:$0xff] %v1338
        %1549 = vst [vmem:[%s1465] ss:$9 sm:$0xff] %v1339
        %1550 = vst [vmem:[%s1467] ss:$9 sm:$0xff] %v1340
        %1551 = vst [vmem:[%s1469] ss:$9 sm:$0xff] %v1341
        %v1552 = vld [vmem:[#allocation1] sm:$0xff]
        %1553 = vst [vmem:[#allocation1] ss:$9 sm:$0xff] %v1214
        %1554 = vst [vmem:[%s1457] ss:$9 sm:$0xff] %v1342
        %1555 = vst [vmem:[%s1459] ss:$9 sm:$0xff] %v1343
        %1556 = vst [vmem:[%s1461] ss:$9 sm:$0xff] %v1344
        %1557 = vst [vmem:[%s1463] ss:$9 sm:$0xff] %v1345
        %1558 = vst [vmem:[%s1465] ss:$9 sm:$0xff] %v1215
        %1559 = vst [vmem:[%s1467] ss:$9 sm:$0xff] %v1346
        %1560 = vst [vmem:[%s1469] ss:$9 sm:$0xff] %v1347
        %v1561 = vld [vmem:[#allocation1] sm:$0xff]
        %1562 = vst [vmem:[#allocation1] ss:$9 sm:$0xff] %v1348
        %1563 = vst [vmem:[%s1457] ss:$9 sm:$0xff] %v1349
        %1564 = vst [vmem:[%s1459] ss:$9 sm:$0xff] %v1216
        %1565 = vst [vmem:[%s1461] ss:$9 sm:$0xff] %v1350
        %1566 = vst [vmem:[%s1463] ss:$9 sm:$0xff] %v1351
        %1567 = vst [vmem:[%s1465] ss:$9 sm:$0xff] %v1352
        %1568 = vst [vmem:[%s1467] ss:$9 sm:$0xff] %v1353
        %1569 = vst [vmem:[%s1469] ss:$9 sm:$0xff] %v1217
        %v1570 = vld [vmem:[#allocation1] sm:$0xff]
        %1571 = vst [vmem:[#allocation1] ss:$9 sm:$0xff] %v1354
        %1572 = vst [vmem:[%s1457] ss:$9 sm:$0xff] %v1355
        %1573 = vst [vmem:[%s1459] ss:$9 sm:$0xff] %v1356
        %1574 = vst [vmem:[%s1461] ss:$9 sm:$0xff] %v1357
        %1575 = vst [vmem:[%s1463] ss:$9 sm:$0xff] %v1218
        %1576 = vst [vmem:[%s1465] ss:$9 sm:$0xff] %v1358
        %1577 = vst [vmem:[%s1467] ss:$9 sm:$0xff] %v1359
        %1578 = vst [vmem:[%s1469] ss:$9 sm:$0xff] %v1360
        %v1579 = vld [vmem:[#allocation1] sm:$0xff]
        %1580 = vst [vmem:[#allocation1] ss:$9 sm:$0xff] %v1361
        %1581 = vst [vmem:[%s1457] ss:$9 sm:$0xff] %v1219
        %1582 = vst [vmem:[%s1459] ss:$9 sm:$0xff] %v1362
        %1583 = vst [vmem:[%s1461] ss:$9 sm:$0xff] %v1363
        %1584 = vst [vmem:[%s1463] ss:$9 sm:$0xff] %v1364
        %1585 = vst [vmem:[%s1465] ss:$9 sm:$0xff] %v1365
        %1586 = vst [vmem:[%s1467] ss:$9 sm:$0xff] %v1220
        %1587 = vst [vmem:[%s1469] ss:$9 sm:$0xff] %v1366
        %v1588 = vld [vmem:[#allocation1] sm:$0xff]
        %1589 = vst [vmem:[#allocation1] ss:$9 sm:$0xff] %v1367
        %1590 = vst [vmem:[%s1457] ss:$9 sm:$0xff] %v1368
        %1591 = vst [vmem:[%s1459] ss:$9 sm:$0xff] %v1369
        %1592 = vst [vmem:[%s1461] ss:$9 sm:$0xff] %v1221
        %1593 = vst [vmem:[%s1463] ss:$9 sm:$0xff] %v1370
        %1594 = vst [vmem:[%s1465] ss:$9 sm:$0xff] %v1371
        %1595 = vst [vmem:[%s1467] ss:$9 sm:$0xff] %v1372
        %1596 = vst [vmem:[%s1469] ss:$9 sm:$0xff] %v1373
        %v1597 = vld [vmem:[#allocation1] sm:$0xff]
        %1598 = vst [vmem:[#allocation1] ss:$9 sm:$0xff] %v1222
        %1599 = vst [vmem:[%s1457] ss:$9 sm:$0xff] %v1374
        %1600 = vst [vmem:[%s1459] ss:$9 sm:$0xff] %v1375
        %1601 = vst [vmem:[%s1461] ss:$9 sm:$0xff] %v1376
        %1602 = vst [vmem:[%s1463] ss:$9 sm:$0xff] %v1377
        %1603 = vst [vmem:[%s1465] ss:$9 sm:$0xff] %v1223
        %1604 = vst [vmem:[%s1467] ss:$9 sm:$0xff] %v1378
        %1605 = vst [vmem:[%s1469] ss:$9 sm:$0xff] %v1379
        %v1606 = vld [vmem:[#allocation1] sm:$0xff]
        %1607 = vst [vmem:[#allocation1] ss:$9 sm:$0xff] %v1380
        %1608 = vst [vmem:[%s1457] ss:$9 sm:$0xff] %v1381
        %1609 = vst [vmem:[%s1459] ss:$9 sm:$0xff] %v1224
        %1610 = vst [vmem:[%s1461] ss:$9 sm:$0xff] %v1382
        %1611 = vst [vmem:[%s1463] ss:$9 sm:$0xff] %v1383
        %1612 = vst [vmem:[%s1465] ss:$9 sm:$0xff] %v1384
        %1613 = vst [vmem:[%s1467] ss:$9 sm:$0xff] %v1385
        %1614 = vst [vmem:[%s1469] ss:$9 sm:$0xff] %v1225
        %v1615 = vld [vmem:[#allocation1] sm:$0xff]
        %1616 = vst [vmem:[#allocation1] ss:$9 sm:$0xff] %v1386
        %1617 = vst [vmem:[%s1457] ss:$9 sm:$0xff] %v1387
        %1618 = vst [vmem:[%s1459] ss:$9 sm:$0xff] %v1388
        %1619 = vst [vmem:[%s1461] ss:$9 sm:$0xff] %v1389
        %1620 = vst [vmem:[%s1463] ss:$9 sm:$0xff] %v1226
        %1621 = vst [vmem:[%s1465] ss:$9 sm:$0xff] %v1390
        %1622 = vst [vmem:[%s1467] ss:$9 sm:$0xff] %v1391
        %1623 = vst [vmem:[%s1469] ss:$9 sm:$0xff] %v1392
        %v1624 = vld [vmem:[#allocation1] sm:$0xff]
        %1625 = vst [vmem:[#allocation1] ss:$9 sm:$0xff] %v1393
        %1626 = vst [vmem:[%s1457] ss:$9 sm:$0xff] %v1227
        %1627 = vst [vmem:[%s1459] ss:$9 sm:$0xff] %v1394
        %1628 = vst [vmem:[%s1461] ss:$9 sm:$0xff] %v1395
        %1629 = vst [vmem:[%s1463] ss:$9 sm:$0xff] %v1396
        %1630 = vst [vmem:[%s1465] ss:$9 sm:$0xff] %v1397
        %1631 = vst [vmem:[%s1467] ss:$9 sm:$0xff] %v1228
        %1632 = vst [vmem:[%s1469] ss:$9 sm:$0xff] %v1398
        %v1633 = vld [vmem:[#allocation1] sm:$0xff]
        %1634 = vst [vmem:[#allocation1] ss:$9 sm:$0xff] %v1399
        %1635 = vst [vmem:[%s1457] ss:$9 sm:$0xff] %v1400
        %1636 = vst [vmem:[%s1459] ss:$9 sm:$0xff] %v1401
        %1637 = vst [vmem:[%s1461] ss:$9 sm:$0xff] %v1229
        %1638 = vst [vmem:[%s1463] ss:$9 sm:$0xff] %v1402
        %1639 = vst [vmem:[%s1465] ss:$9 sm:$0xff] %v1403
        %1640 = vst [vmem:[%s1467] ss:$9 sm:$0xff] %v1404
        %1641 = vst [vmem:[%s1469] ss:$9 sm:$0xff] %v1405
        %v1642 = vld [vmem:[#allocation1] sm:$0xff]
        %1643 = vst [vmem:[#allocation1] ss:$9 sm:$0xff] %v1230
        %1644 = vst [vmem:[%s1457] ss:$9 sm:$0xff] %v1406
        %1645 = vst [vmem:[%s1459] ss:$9 sm:$0xff] %v1407
        %1646 = vst [vmem:[%s1461] ss:$9 sm:$0xff] %v1408
        %1647 = vst [vmem:[%s1463] ss:$9 sm:$0xff] %v1409
        %1648 = vst [vmem:[%s1465] ss:$9 sm:$0xff] %v1231
        %1649 = vst [vmem:[%s1467] ss:$9 sm:$0xff] %v1410
        %1650 = vst [vmem:[%s1469] ss:$9 sm:$0xff] %v1411
        %v1651 = vld [vmem:[#allocation1] sm:$0xff]
        %1652 = vst [vmem:[#allocation1] ss:$9 sm:$0xff] %v1412
        %1653 = vst [vmem:[%s1457] ss:$9 sm:$0xff] %v1413
        %1654 = vst [vmem:[%s1459] ss:$9 sm:$0xff] %v1232
        %1655 = vst [vmem:[%s1461] ss:$9 sm:$0xff] %v1414
        %1656 = vst [vmem:[%s1463] ss:$9 sm:$0xff] %v1415
        %1657 = vst [vmem:[%s1465] ss:$9 sm:$0xff] %v1416
        %1658 = vst [vmem:[%s1467] ss:$9 sm:$0xff] %v1417
        %1659 = vst [vmem:[%s1469] ss:$9 sm:$0xff] %v1233
        %v1660 = vld [vmem:[#allocation1] sm:$0xff]
        %1661 = vst [vmem:[#allocation1] ss:$9 sm:$0xff] %v1418
        %1662 = vst [vmem:[%s1457] ss:$9 sm:$0xff] %v1419
        %1663 = vst [vmem:[%s1459] ss:$9 sm:$0xff] %v1420
        %1664 = vst [vmem:[%s1461] ss:$9 sm:$0xff] %v1421
        %1665 = vst [vmem:[%s1463] ss:$9 sm:$0xff] %v1234
        %1666 = vst [vmem:[%s1465] ss:$9 sm:$0xff] %v1422
        %1667 = vst [vmem:[%s1467] ss:$9 sm:$0xff] %v1423
        %1668 = vst [vmem:[%s1469] ss:$9 sm:$0xff] %v1424
        %v1669 = vld [vmem:[#allocation1] sm:$0xff]
        %1670 = vst [vmem:[#allocation1] ss:$9 sm:$0xff] %v1425
        %1671 = vst [vmem:[%s1457] ss:$9 sm:$0xff] %v1235
        %1672 = vst [vmem:[%s1459] ss:$9 sm:$0xff] %v1426
        %1673 = vst [vmem:[%s1461] ss:$9 sm:$0xff] %v1427
        %1674 = vst [vmem:[%s1463] ss:$9 sm:$0xff] %v1428
        %1675 = vst [vmem:[%s1465] ss:$9 sm:$0xff] %v1429
        %1676 = vst [vmem:[%s1467] ss:$9 sm:$0xff] %v1236
        %1677 = vst [vmem:[%s1469] ss:$9 sm:$0xff] %v1430
        %v1678 = vld [vmem:[#allocation1] sm:$0xff]
        %1679 = vst [vmem:[#allocation1] ss:$9 sm:$0xff] %v1431
        %1680 = vst [vmem:[%s1457] ss:$9 sm:$0xff] %v1432
        %1681 = vst [vmem:[%s1459] ss:$9 sm:$0xff] %v1433
        %1682 = vst [vmem:[%s1461] ss:$9 sm:$0xff] %v1237
        %1683 = vst [vmem:[%s1463] ss:$9 sm:$0xff] %v1434
        %1684 = vst [vmem:[%s1465] ss:$9 sm:$0xff] %v1435
        %1685 = vst [vmem:[%s1467] ss:$9 sm:$0xff] %v1436
        %1686 = vst [vmem:[%s1469] ss:$9 sm:$0xff] %v1437
        %v1687 = vld [vmem:[#allocation1] sm:$0xff]
        %1713 = vmatpush.msra.mxu0 %v1454
        %1714 = vmatpush.msra.mxu0 %v1453
        %1715 = vmatpush.msra.mxu0 %v1452
        %1716 = vmatpush.msra.mxu0 %v1451
        %1717 = vmatpush.msra.mxu0 %v1450
        %1718 = vmatpush.msra.mxu0 %v1449
        %1719 = vmatpush.msra.mxu0 %v1448
        %1720 = vmatpush.msra.mxu0 %v1447
        %1721 = vmatpush.msra.mxu0 %v1446
        %1722 = vmatpush.msra.mxu0 %v1445
        %1723 = vmatpush.msra.mxu0 %v1444
        %1724 = vmatpush.msra.mxu0 %v1443
        %1725 = vmatpush.msra.mxu0 %v1442
        %1726 = vmatpush.msra.mxu0 %v1441
        %1727 = vmatpush.msra.mxu0 %v1440
        %1728 = vmatpush.msra.mxu0 %v1439
        %1729 = vmatmul.f32.gmra.mxu0 %v1471
        %v1730 = vpop.f32.mrf.mxu0
        %v1731 = vadd.f32 %v1455, %v1730
        %1732 = vmatmul.f32.gmra.mxu0 %v1480
        %v1733 = vpop.f32.mrf.mxu0
        %v1734 = vadd.f32 %v1455, %v1733
        %1735 = vmatmul.f32.gmra.mxu0 %v1489
        %v1736 = vpop.f32.mrf.mxu0
        %v1737 = vadd.f32 %v1455, %v1736
        %1738 = vmatmul.f32.gmra.mxu0 %v1498
        %v1739 = vpop.f32.mrf.mxu0
        %v1740 = vadd.f32 %v1455, %v1739
        %1741 = vmatmul.f32.gmra.mxu0 %v1507
        %v1742 = vpop.f32.mrf.mxu0
        %v1743 = vadd.f32 %v1455, %v1742
        %1744 = vmatmul.f32.gmra.mxu0 %v1516
        %v1745 = vpop.f32.mrf.mxu0
        %v1746 = vadd.f32 %v1455, %v1745
        %1747 = vmatmul.f32.gmra.mxu0 %v1525
        %v1748 = vpop.f32.mrf.mxu0
        %v1749 = vadd.f32 %v1455, %v1748
        %1750 = vmatmul.f32.gmra.mxu0 %v1534
        %v1751 = vpop.f32.mrf.mxu0
        %v1752 = vadd.f32 %v1455, %v1751
        %1753 = vmatmul.f32.gmra.mxu0 %v1543
        %v1754 = vpop.f32.mrf.mxu0
        %v1755 = vadd.f32 %v1455, %v1754
        %1756 = vmatmul.f32.gmra.mxu0 %v1552
        %v1757 = vpop.f32.mrf.mxu0
        %v1758 = vadd.f32 %v1455, %v1757
        %1759 = vmatmul.f32.gmra.mxu0 %v1561
        %v1760 = vpop.f32.mrf.mxu0
        %v1761 = vadd.f32 %v1455, %v1760
        %1762 = vmatmul.f32.gmra.mxu0 %v1570
        %v1763 = vpop.f32.mrf.mxu0
        %v1764 = vadd.f32 %v1455, %v1763
        %1765 = vmatmul.f32.gmra.mxu0 %v1579
        %v1766 = vpop.f32.mrf.mxu0
        %v1767 = vadd.f32 %v1455, %v1766
        %1768 = vmatmul.f32.gmra.mxu0 %v1588
        %v1769 = vpop.f32.mrf.mxu0
        %v1770 = vadd.f32 %v1455, %v1769
        %1771 = vmatmul.f32.gmra.mxu0 %v1597
        %v1772 = vpop.f32.mrf.mxu0
        %v1773 = vadd.f32 %v1455, %v1772
        %1774 = vmatmul.f32.gmra.mxu0 %v1606
        %v1775 = vpop.f32.mrf.mxu0
        %v1776 = vadd.f32 %v1455, %v1775
        %1777 = vmatmul.f32.gmra.mxu0 %v1615
        %v1778 = vpop.f32.mrf.mxu0
        %v1779 = vadd.f32 %v1455, %v1778
        %1780 = vmatmul.f32.gmra.mxu0 %v1624
        %v1781 = vpop.f32.mrf.mxu0
        %v1782 = vadd.f32 %v1455, %v1781
        %1783 = vmatmul.f32.gmra.mxu0 %v1633
        %v1784 = vpop.f32.mrf.mxu0
        %v1785 = vadd.f32 %v1455, %v1784
        %1786 = vmatmul.f32.gmra.mxu0 %v1642
        %v1787 = vpop.f32.mrf.mxu0
        %v1788 = vadd.f32 %v1455, %v1787
        %1789 = vmatmul.f32.gmra.mxu0 %v1651
        %v1790 = vpop.f32.mrf.mxu0
        %v1791 = vadd.f32 %v1455, %v1790
        %1792 = vmatmul.f32.gmra.mxu0 %v1660
        %v1793 = vpop.f32.mrf.mxu0
        %v1794 = vadd.f32 %v1455, %v1793
        %1795 = vmatmul.f32.gmra.mxu0 %v1669
        %v1796 = vpop.f32.mrf.mxu0
        %v1797 = vadd.f32 %v1455, %v1796
        %1798 = vmatmul.f32.gmra.mxu0 %v1678
        %v1799 = vpop.f32.mrf.mxu0
        %v1800 = vadd.f32 %v1455, %v1799
        %1801 = vmatmul.f32.gmra.mxu0 %v1687
        %v1802 = vpop.f32.mrf.mxu0
        %v1803 = vadd.f32 %v1455, %v1802
        %1804 = vdwg.mxu0
        %1805 = vadd.xlane.f32.xlu0 %v1731
        %v1806 = vpop.xlane.xlu0 %1805
        %1807 = vadd.xlane.f32.xlu0 %v1734
        %v1808 = vpop.xlane.xlu0 %1807
        %1809 = vadd.xlane.f32.xlu0 %v1737
        %v1810 = vpop.xlane.xlu0 %1809
        %1811 = vadd.xlane.f32.xlu0 %v1740
        %v1812 = vpop.xlane.xlu0 %1811
        %1813 = vadd.xlane.f32.xlu0 %v1743
        %v1814 = vpop.xlane.xlu0 %1813
        %1815 = vadd.xlane.f32.xlu0 %v1746
        %v1816 = vpop.xlane.xlu0 %1815
        %1817 = vadd.xlane.f32.xlu0 %v1749
        %v1818 = vpop.xlane.xlu0 %1817
        %1819 = vadd.xlane.f32.xlu0 %v1752
        %v1820 = vpop.xlane.xlu0 %1819
        %1821 = vadd.xlane.f32.xlu0 %v1755
        %v1822 = vpop.xlane.xlu0 %1821
        %1823 = vadd.xlane.f32.xlu0 %v1758
        %v1824 = vpop.xlane.xlu0 %1823
        %1825 = vadd.xlane.f32.xlu0 %v1761
        %v1826 = vpop.xlane.xlu0 %1825
        %1827 = vadd.xlane.f32.xlu0 %v1764
        %v1828 = vpop.xlane.xlu0 %1827
        %1829 = vadd.xlane.f32.xlu0 %v1767
        %v1830 = vpop.xlane.xlu0 %1829
        %1831 = vadd.xlane.f32.xlu0 %v1770
        %v1832 = vpop.xlane.xlu0 %1831
        %1833 = vadd.xlane.f32.xlu0 %v1773
        %v1834 = vpop.xlane.xlu0 %1833
        %1835 = vadd.xlane.f32.xlu0 %v1776
        %v1836 = vpop.xlane.xlu0 %1835
        %1837 = vadd.xlane.f32.xlu0 %v1779
        %v1838 = vpop.xlane.xlu0 %1837
        %1839 = vadd.xlane.f32.xlu0 %v1782
        %v1840 = vpop.xlane.xlu0 %1839
        %1841 = vadd.xlane.f32.xlu0 %v1785
        %v1842 = vpop.xlane.xlu0 %1841
        %1843 = vadd.xlane.f32.xlu0 %v1788
        %v1844 = vpop.xlane.xlu0 %1843
        %1845 = vadd.xlane.f32.xlu0 %v1791
        %v1846 = vpop.xlane.xlu0 %1845
        %1847 = vadd.xlane.f32.xlu0 %v1794
        %v1848 = vpop.xlane.xlu0 %1847
        %1849 = vadd.xlane.f32.xlu0 %v1797
        %v1850 = vpop.xlane.xlu0 %1849
        %1851 = vadd.xlane.f32.xlu0 %v1800
        %v1852 = vpop.xlane.xlu0 %1851
        %1853 = vadd.xlane.f32.xlu0 %v1803
        %v1854 = vpop.xlane.xlu0 %1853
        %v1855 = vmul.f32 %v1806, 0.03125
        %v1856 = vmul.f32 %v1808, 0.03125
        %v1857 = vmul.f32 %v1810, 0.03125
        %v1858 = vmul.f32 %v1812, 0.03125
        %v1859 = vmul.f32 %v1814, 0.03125
        %v1860 = vmul.f32 %v1816, 0.03125
        %v1861 = vmul.f32 %v1818, 0.03125
        %v1862 = vmul.f32 %v1820, 0.03125
        %v1863 = vmul.f32 %v1822, 0.03125
        %v1864 = vmul.f32 %v1824, 0.03125
        %v1865 = vmul.f32 %v1826, 0.03125
        %v1866 = vmul.f32 %v1828, 0.03125
        %v1867 = vmul.f32 %v1830, 0.03125
        %v1868 = vmul.f32 %v1832, 0.03125
        %v1869 = vmul.f32 %v1834, 0.03125
        %v1870 = vmul.f32 %v1836, 0.03125
        %v1871 = vmul.f32 %v1838, 0.03125
        %v1872 = vmul.f32 %v1840, 0.03125
        %v1873 = vmul.f32 %v1842, 0.03125
        %v1874 = vmul.f32 %v1844, 0.03125
        %v1875 = vmul.f32 %v1846, 0.03125
        %v1876 = vmul.f32 %v1848, 0.03125
        %v1877 = vmul.f32 %v1850, 0.03125
        %v1878 = vmul.f32 %v1852, 0.03125
        %v1879 = vmul.f32 %v1854, 0.03125
        %v1880 = vsub.f32 %v1731, %v1855
        %v1881 = vsub.f32 %v1734, %v1856
        %v1882 = vsub.f32 %v1737, %v1857
        %v1883 = vsub.f32 %v1740, %v1858
        %v1884 = vsub.f32 %v1743, %v1859
        %v1885 = vsub.f32 %v1746, %v1860
        %v1886 = vsub.f32 %v1749, %v1861
        %v1887 = vsub.f32 %v1752, %v1862
        %v1888 = vsub.f32 %v1755, %v1863
        %v1889 = vsub.f32 %v1758, %v1864
        %v1890 = vsub.f32 %v1761, %v1865
        %v1891 = vsub.f32 %v1764, %v1866
        %v1892 = vsub.f32 %v1767, %v1867
        %v1893 = vsub.f32 %v1770, %v1868
        %v1894 = vsub.f32 %v1773, %v1869
        %v1895 = vsub.f32 %v1776, %v1870
        %v1896 = vsub.f32 %v1779, %v1871
        %v1897 = vsub.f32 %v1782, %v1872
        %v1898 = vsub.f32 %v1785, %v1873
        %v1899 = vsub.f32 %v1788, %v1874
        %v1900 = vsub.f32 %v1791, %v1875
        %v1901 = vsub.f32 %v1794, %v1876
        %v1902 = vsub.f32 %v1797, %v1877
        %v1903 = vsub.f32 %v1800, %v1878
        %v1904 = vsub.f32 %v1803, %v1879
        %v1905 = vmul.f32 %v1880, %v241
        %v1906 = vmul.f32 %v1881, %v241
        %v1907 = vmul.f32 %v1882, %v241
        %v1908 = vmul.f32 %v1883, %v241
        %v1909 = vmul.f32 %v1884, %v241
        %v1910 = vmul.f32 %v1885, %v241
        %v1911 = vmul.f32 %v1886, %v241
        %v1912 = vmul.f32 %v1887, %v241
        %v1913 = vmul.f32 %v1888, %v241
        %v1914 = vmul.f32 %v1889, %v241
        %v1915 = vmul.f32 %v1890, %v241
        %v1916 = vmul.f32 %v1891, %v241
        %v1917 = vmul.f32 %v1892, %v241
        %v1918 = vmul.f32 %v1893, %v241
        %v1919 = vmul.f32 %v1894, %v241
        %v1920 = vmul.f32 %v1895, %v241
        %v1921 = vmul.f32 %v1896, %v241
        %v1922 = vmul.f32 %v1897, %v241
        %v1923 = vmul.f32 %v1898, %v241
        %v1924 = vmul.f32 %v1899, %v241
        %v1925 = vmul.f32 %v1900, %v241
        %v1926 = vmul.f32 %v1901, %v241
        %v1927 = vmul.f32 %v1902, %v241
        %v1928 = vmul.f32 %v1903, %v241
        %v1929 = vmul.f32 %v1904, %v241
        %v1930 = vmul.f32 %v1905, %v1905
        %v1931 = vmul.f32 %v1906, %v1906
        %v1932 = vmul.f32 %v1907, %v1907
        %v1933 = vmul.f32 %v1908, %v1908
        %v1934 = vmul.f32 %v1909, %v1909
        %v1935 = vmul.f32 %v1910, %v1910
        %v1936 = vmul.f32 %v1911, %v1911
        %v1937 = vmul.f32 %v1912, %v1912
        %v1938 = vmul.f32 %v1913, %v1913
        %v1939 = vmul.f32 %v1914, %v1914
        %v1940 = vmul.f32 %v1915, %v1915
        %v1941 = vmul.f32 %v1916, %v1916
        %v1942 = vmul.f32 %v1917, %v1917
        %v1943 = vmul.f32 %v1918, %v1918
        %v1944 = vmul.f32 %v1919, %v1919
        %v1945 = vmul.f32 %v1920, %v1920
        %v1946 = vmul.f32 %v1921, %v1921
        %v1947 = vmul.f32 %v1922, %v1922
        %v1948 = vmul.f32 %v1923, %v1923
        %v1949 = vmul.f32 %v1924, %v1924
        %v1950 = vmul.f32 %v1925, %v1925
        %v1951 = vmul.f32 %v1926, %v1926
        %v1952 = vmul.f32 %v1927, %v1927
        %v1953 = vmul.f32 %v1928, %v1928
        %v1954 = vmul.f32 %v1929, %v1929
        %1955 = vadd.xlane.f32.xlu0 %v1930
        %v1956 = vpop.xlane.xlu0 %1955
        %1957 = vadd.xlane.f32.xlu0 %v1931
        %v1958 = vpop.xlane.xlu0 %1957
        %1959 = vadd.xlane.f32.xlu0 %v1932
        %v1960 = vpop.xlane.xlu0 %1959
        %1961 = vadd.xlane.f32.xlu0 %v1933
        %v1962 = vpop.xlane.xlu0 %1961
        %1963 = vadd.xlane.f32.xlu0 %v1934
        %v1964 = vpop.xlane.xlu0 %1963
        %1965 = vadd.xlane.f32.xlu0 %v1935
        %v1966 = vpop.xlane.xlu0 %1965
        %1967 = vadd.xlane.f32.xlu0 %v1936
        %v1968 = vpop.xlane.xlu0 %1967
        %1969 = vadd.xlane.f32.xlu0 %v1937
        %v1970 = vpop.xlane.xlu0 %1969
        %1971 = vadd.xlane.f32.xlu0 %v1938
        %v1972 = vpop.xlane.xlu0 %1971
        %1973 = vadd.xlane.f32.xlu0 %v1939
        %v1974 = vpop.xlane.xlu0 %1973
        %1975 = vadd.xlane.f32.xlu0 %v1940
        %v1976 = vpop.xlane.xlu0 %1975
        %1977 = vadd.xlane.f32.xlu0 %v1941
        %v1978 = vpop.xlane.xlu0 %1977
        %1979 = vadd.xlane.f32.xlu0 %v1942
        %v1980 = vpop.xlane.xlu0 %1979
        %1981 = vadd.xlane.f32.xlu0 %v1943
        %v1982 = vpop.xlane.xlu0 %1981
        %1983 = vadd.xlane.f32.xlu0 %v1944
        %v1984 = vpop.xlane.xlu0 %1983
        %1985 = vadd.xlane.f32.xlu0 %v1945
        %v1986 = vpop.xlane.xlu0 %1985
        %1987 = vadd.xlane.f32.xlu0 %v1946
        %v1988 = vpop.xlane.xlu0 %1987
        %1989 = vadd.xlane.f32.xlu0 %v1947
        %v1990 = vpop.xlane.xlu0 %1989
        %1991 = vadd.xlane.f32.xlu0 %v1948
        %v1992 = vpop.xlane.xlu0 %1991
        %1993 = vadd.xlane.f32.xlu0 %v1949
        %v1994 = vpop.xlane.xlu0 %1993
        %1995 = vadd.xlane.f32.xlu0 %v1950
        %v1996 = vpop.xlane.xlu0 %1995
        %1997 = vadd.xlane.f32.xlu0 %v1951
        %v1998 = vpop.xlane.xlu0 %1997
        %1999 = vadd.xlane.f32.xlu0 %v1952
        %v2000 = vpop.xlane.xlu0 %1999
        %2001 = vadd.xlane.f32.xlu0 %v1953
        %v2002 = vpop.xlane.xlu0 %2001
        %2003 = vadd.xlane.f32.xlu0 %v1954
        %v2004 = vpop.xlane.xlu0 %2003
        %v2005 = vmul.f32 %v1956, 0.03125
        %v2006 = vmul.f32 %v1958, 0.03125
        %v2007 = vmul.f32 %v1960, 0.03125
        %v2008 = vmul.f32 %v1962, 0.03125
        %v2009 = vmul.f32 %v1964, 0.03125
        %v2010 = vmul.f32 %v1966, 0.03125
        %v2011 = vmul.f32 %v1968, 0.03125
        %v2012 = vmul.f32 %v1970, 0.03125
        %v2013 = vmul.f32 %v1972, 0.03125
        %v2014 = vmul.f32 %v1974, 0.03125
        %v2015 = vmul.f32 %v1976, 0.03125
        %v2016 = vmul.f32 %v1978, 0.03125
        %v2017 = vmul.f32 %v1980, 0.03125
        %v2018 = vmul.f32 %v1982, 0.03125
        %v2019 = vmul.f32 %v1984, 0.03125
        %v2020 = vmul.f32 %v1986, 0.03125
        %v2021 = vmul.f32 %v1988, 0.03125
        %v2022 = vmul.f32 %v1990, 0.03125
        %v2023 = vmul.f32 %v1992, 0.03125
        %v2024 = vmul.f32 %v1994, 0.03125
        %v2025 = vmul.f32 %v1996, 0.03125
        %v2026 = vmul.f32 %v1998, 0.03125
        %v2027 = vmul.f32 %v2000, 0.03125
        %v2028 = vmul.f32 %v2002, 0.03125
        %v2029 = vmul.f32 %v2004, 0.03125
        %v2030 = vadd.f32 %v2005, 1e-05
        %v2031 = vadd.f32 %v2006, 1e-05
        %v2032 = vadd.f32 %v2007, 1e-05
        %v2033 = vadd.f32 %v2008, 1e-05
        %v2034 = vadd.f32 %v2009, 1e-05
        %v2035 = vadd.f32 %v2010, 1e-05
        %v2036 = vadd.f32 %v2011, 1e-05
        %v2037 = vadd.f32 %v2012, 1e-05
        %v2038 = vadd.f32 %v2013, 1e-05
        %v2039 = vadd.f32 %v2014, 1e-05
        %v2040 = vadd.f32 %v2015, 1e-05
        %v2041 = vadd.f32 %v2016, 1e-05
        %v2042 = vadd.f32 %v2017, 1e-05
        %v2043 = vadd.f32 %v2018, 1e-05
        %v2044 = vadd.f32 %v2019, 1e-05
        %v2045 = vadd.f32 %v2020, 1e-05
        %v2046 = vadd.f32 %v2021, 1e-05
        %v2047 = vadd.f32 %v2022, 1e-05
        %v2048 = vadd.f32 %v2023, 1e-05
        %v2049 = vadd.f32 %v2024, 1e-05
        %v2050 = vadd.f32 %v2025, 1e-05
        %v2051 = vadd.f32 %v2026, 1e-05
        %v2052 = vadd.f32 %v2027, 1e-05
        %v2053 = vadd.f32 %v2028, 1e-05
        %v2054 = vadd.f32 %v2029, 1e-05
        %v2055 = vrsqrt.pop %v2030
        %v2056 = vmul.f32 %v2055, %v2030
        %v2057 = vmul.f32 %v2056, %v2055
        %v2058 = vmul.f32 0.5, %v2057
        %v2059 = vsub.f32 1.5, %v2058
        %v2060 = vmul.f32 %v2055, %v2059
        %vm2061 = vweird.f32 %v2030
        %vm2062 = vweird.f32 %v2055
        %vm2063 = vmor %vm2061, %vm2062
        %v2064 = vsel %vm2063, %v2055, %v2060
        %v2065 = vrsqrt.pop %v2031
        %v2066 = vmul.f32 %v2065, %v2031
        %v2067 = vmul.f32 %v2066, %v2065
        %v2068 = vmul.f32 0.5, %v2067
        %v2069 = vsub.f32 1.5, %v2068
        %v2070 = vmul.f32 %v2065, %v2069
        %vm2071 = vweird.f32 %v2031
        %vm2072 = vweird.f32 %v2065
        %vm2073 = vmor %vm2071, %vm2072
        %v2074 = vsel %vm2073, %v2065, %v2070
        %v2075 = vrsqrt.pop %v2032
        %v2076 = vmul.f32 %v2075, %v2032
        %v2077 = vmul.f32 %v2076, %v2075
        %v2078 = vmul.f32 0.5, %v2077
        %v2079 = vsub.f32 1.5, %v2078
        %v2080 = vmul.f32 %v2075, %v2079
        %vm2081 = vweird.f32 %v2032
        %vm2082 = vweird.f32 %v2075
        %vm2083 = vmor %vm2081, %vm2082
        %v2084 = vsel %vm2083, %v2075, %v2080
        %v2085 = vrsqrt.pop %v2033
        %v2086 = vmul.f32 %v2085, %v2033
        %v2087 = vmul.f32 %v2086, %v2085
        %v2088 = vmul.f32 0.5, %v2087
        %v2089 = vsub.f32 1.5, %v2088
        %v2090 = vmul.f32 %v2085, %v2089
        %vm2091 = vweird.f32 %v2033
        %vm2092 = vweird.f32 %v2085
        %vm2093 = vmor %vm2091, %vm2092
        %v2094 = vsel %vm2093, %v2085, %v2090
        %v2095 = vrsqrt.pop %v2034
        %v2096 = vmul.f32 %v2095, %v2034
        %v2097 = vmul.f32 %v2096, %v2095
        %v2098 = vmul.f32 0.5, %v2097
        %v2099 = vsub.f32 1.5, %v2098
        %v2100 = vmul.f32 %v2095, %v2099
        %vm2101 = vweird.f32 %v2034
        %vm2102 = vweird.f32 %v2095
        %vm2103 = vmor %vm2101, %vm2102
        %v2104 = vsel %vm2103, %v2095, %v2100
        %v2105 = vrsqrt.pop %v2035
        %v2106 = vmul.f32 %v2105, %v2035
        %v2107 = vmul.f32 %v2106, %v2105
        %v2108 = vmul.f32 0.5, %v2107
        %v2109 = vsub.f32 1.5, %v2108
        %v2110 = vmul.f32 %v2105, %v2109
        %vm2111 = vweird.f32 %v2035
        %vm2112 = vweird.f32 %v2105
        %vm2113 = vmor %vm2111, %vm2112
        %v2114 = vsel %vm2113, %v2105, %v2110
        %v2115 = vrsqrt.pop %v2036
        %v2116 = vmul.f32 %v2115, %v2036
        %v2117 = vmul.f32 %v2116, %v2115
        %v2118 = vmul.f32 0.5, %v2117
        %v2119 = vsub.f32 1.5, %v2118
        %v2120 = vmul.f32 %v2115, %v2119
        %vm2121 = vweird.f32 %v2036
        %vm2122 = vweird.f32 %v2115
        %vm2123 = vmor %vm2121, %vm2122
        %v2124 = vsel %vm2123, %v2115, %v2120
        %v2125 = vrsqrt.pop %v2037
        %v2126 = vmul.f32 %v2125, %v2037
        %v2127 = vmul.f32 %v2126, %v2125
        %v2128 = vmul.f32 0.5, %v2127
        %v2129 = vsub.f32 1.5, %v2128
        %v2130 = vmul.f32 %v2125, %v2129
        %vm2131 = vweird.f32 %v2037
        %vm2132 = vweird.f32 %v2125
        %vm2133 = vmor %vm2131, %vm2132
        %v2134 = vsel %vm2133, %v2125, %v2130
        %v2135 = vrsqrt.pop %v2038
        %v2136 = vmul.f32 %v2135, %v2038
        %v2137 = vmul.f32 %v2136, %v2135
        %v2138 = vmul.f32 0.5, %v2137
        %v2139 = vsub.f32 1.5, %v2138
        %v2140 = vmul.f32 %v2135, %v2139
        %vm2141 = vweird.f32 %v2038
        %vm2142 = vweird.f32 %v2135
        %vm2143 = vmor %vm2141, %vm2142
        %v2144 = vsel %vm2143, %v2135, %v2140
        %v2145 = vrsqrt.pop %v2039
        %v2146 = vmul.f32 %v2145, %v2039
        %v2147 = vmul.f32 %v2146, %v2145
        %v2148 = vmul.f32 0.5, %v2147
        %v2149 = vsub.f32 1.5, %v2148
        %v2150 = vmul.f32 %v2145, %v2149
        %vm2151 = vweird.f32 %v2039
        %vm2152 = vweird.f32 %v2145
        %vm2153 = vmor %vm2151, %vm2152
        %v2154 = vsel %vm2153, %v2145, %v2150
        %v2155 = vrsqrt.pop %v2040
        %v2156 = vmul.f32 %v2155, %v2040
        %v2157 = vmul.f32 %v2156, %v2155
        %v2158 = vmul.f32 0.5, %v2157
        %v2159 = vsub.f32 1.5, %v2158
        %v2160 = vmul.f32 %v2155, %v2159
        %vm2161 = vweird.f32 %v2040
        %vm2162 = vweird.f32 %v2155
        %vm2163 = vmor %vm2161, %vm2162
        %v2164 = vsel %vm2163, %v2155, %v2160
        %v2165 = vrsqrt.pop %v2041
        %v2166 = vmul.f32 %v2165, %v2041
        %v2167 = vmul.f32 %v2166, %v2165
        %v2168 = vmul.f32 0.5, %v2167
        %v2169 = vsub.f32 1.5, %v2168
        %v2170 = vmul.f32 %v2165, %v2169
        %vm2171 = vweird.f32 %v2041
        %vm2172 = vweird.f32 %v2165
        %vm2173 = vmor %vm2171, %vm2172
        %v2174 = vsel %vm2173, %v2165, %v2170
        %v2175 = vrsqrt.pop %v2042
        %v2176 = vmul.f32 %v2175, %v2042
        %v2177 = vmul.f32 %v2176, %v2175
        %v2178 = vmul.f32 0.5, %v2177
        %v2179 = vsub.f32 1.5, %v2178
        %v2180 = vmul.f32 %v2175, %v2179
        %vm2181 = vweird.f32 %v2042
        %vm2182 = vweird.f32 %v2175
        %vm2183 = vmor %vm2181, %vm2182
        %v2184 = vsel %vm2183, %v2175, %v2180
        %v2185 = vrsqrt.pop %v2043
        %v2186 = vmul.f32 %v2185, %v2043
        %v2187 = vmul.f32 %v2186, %v2185
        %v2188 = vmul.f32 0.5, %v2187
        %v2189 = vsub.f32 1.5, %v2188
        %v2190 = vmul.f32 %v2185, %v2189
        %vm2191 = vweird.f32 %v2043
        %vm2192 = vweird.f32 %v2185
        %vm2193 = vmor %vm2191, %vm2192
        %v2194 = vsel %vm2193, %v2185, %v2190
        %v2195 = vrsqrt.pop %v2044
        %v2196 = vmul.f32 %v2195, %v2044
        %v2197 = vmul.f32 %v2196, %v2195
        %v2198 = vmul.f32 0.5, %v2197
        %v2199 = vsub.f32 1.5, %v2198
        %v2200 = vmul.f32 %v2195, %v2199
        %vm2201 = vweird.f32 %v2044
        %vm2202 = vweird.f32 %v2195
        %vm2203 = vmor %vm2201, %vm2202
        %v2204 = vsel %vm2203, %v2195, %v2200
        %v2205 = vrsqrt.pop %v2045
        %v2206 = vmul.f32 %v2205, %v2045
        %v2207 = vmul.f32 %v2206, %v2205
        %v2208 = vmul.f32 0.5, %v2207
        %v2209 = vsub.f32 1.5, %v2208
        %v2210 = vmul.f32 %v2205, %v2209
        %vm2211 = vweird.f32 %v2045
        %vm2212 = vweird.f32 %v2205
        %vm2213 = vmor %vm2211, %vm2212
        %v2214 = vsel %vm2213, %v2205, %v2210
        %v2215 = vrsqrt.pop %v2046
        %v2216 = vmul.f32 %v2215, %v2046
        %v2217 = vmul.f32 %v2216, %v2215
        %v2218 = vmul.f32 0.5, %v2217
        %v2219 = vsub.f32 1.5, %v2218
        %v2220 = vmul.f32 %v2215, %v2219
        %vm2221 = vweird.f32 %v2046
        %vm2222 = vweird.f32 %v2215
        %vm2223 = vmor %vm2221, %vm2222
        %v2224 = vsel %vm2223, %v2215, %v2220
        %v2225 = vrsqrt.pop %v2047
        %v2226 = vmul.f32 %v2225, %v2047
        %v2227 = vmul.f32 %v2226, %v2225
        %v2228 = vmul.f32 0.5, %v2227
        %v2229 = vsub.f32 1.5, %v2228
        %v2230 = vmul.f32 %v2225, %v2229
        %vm2231 = vweird.f32 %v2047
        %vm2232 = vweird.f32 %v2225
        %vm2233 = vmor %vm2231, %vm2232
        %v2234 = vsel %vm2233, %v2225, %v2230
        %v2235 = vrsqrt.pop %v2048
        %v2236 = vmul.f32 %v2235, %v2048
        %v2237 = vmul.f32 %v2236, %v2235
        %v2238 = vmul.f32 0.5, %v2237
        %v2239 = vsub.f32 1.5, %v2238
        %v2240 = vmul.f32 %v2235, %v2239
        %vm2241 = vweird.f32 %v2048
        %vm2242 = vweird.f32 %v2235
        %vm2243 = vmor %vm2241, %vm2242
        %v2244 = vsel %vm2243, %v2235, %v2240
        %v2245 = vrsqrt.pop %v2049
        %v2246 = vmul.f32 %v2245, %v2049
        %v2247 = vmul.f32 %v2246, %v2245
        %v2248 = vmul.f32 0.5, %v2247
        %v2249 = vsub.f32 1.5, %v2248
        %v2250 = vmul.f32 %v2245, %v2249
        %vm2251 = vweird.f32 %v2049
        %vm2252 = vweird.f32 %v2245
        %vm2253 = vmor %vm2251, %vm2252
        %v2254 = vsel %vm2253, %v2245, %v2250
        %v2255 = vrsqrt.pop %v2050
        %v2256 = vmul.f32 %v2255, %v2050
        %v2257 = vmul.f32 %v2256, %v2255
        %v2258 = vmul.f32 0.5, %v2257
        %v2259 = vsub.f32 1.5, %v2258
        %v2260 = vmul.f32 %v2255, %v2259
        %vm2261 = vweird.f32 %v2050
        %vm2262 = vweird.f32 %v2255
        %vm2263 = vmor %vm2261, %vm2262
        %v2264 = vsel %vm2263, %v2255, %v2260
        %v2265 = vrsqrt.pop %v2051
        %v2266 = vmul.f32 %v2265, %v2051
        %v2267 = vmul.f32 %v2266, %v2265
        %v2268 = vmul.f32 0.5, %v2267
        %v2269 = vsub.f32 1.5, %v2268
        %v2270 = vmul.f32 %v2265, %v2269
        %vm2271 = vweird.f32 %v2051
        %vm2272 = vweird.f32 %v2265
        %vm2273 = vmor %vm2271, %vm2272
        %v2274 = vsel %vm2273, %v2265, %v2270
        %v2275 = vrsqrt.pop %v2052
        %v2276 = vmul.f32 %v2275, %v2052
        %v2277 = vmul.f32 %v2276, %v2275
        %v2278 = vmul.f32 0.5, %v2277
        %v2279 = vsub.f32 1.5, %v2278
        %v2280 = vmul.f32 %v2275, %v2279
        %vm2281 = vweird.f32 %v2052
        %vm2282 = vweird.f32 %v2275
        %vm2283 = vmor %vm2281, %vm2282
        %v2284 = vsel %vm2283, %v2275, %v2280
        %v2285 = vrsqrt.pop %v2053
        %v2286 = vmul.f32 %v2285, %v2053
        %v2287 = vmul.f32 %v2286, %v2285
        %v2288 = vmul.f32 0.5, %v2287
        %v2289 = vsub.f32 1.5, %v2288
        %v2290 = vmul.f32 %v2285, %v2289
        %vm2291 = vweird.f32 %v2053
        %vm2292 = vweird.f32 %v2285
        %vm2293 = vmor %vm2291, %vm2292
        %v2294 = vsel %vm2293, %v2285, %v2290
        %v2295 = vrsqrt.pop %v2054
        %v2296 = vmul.f32 %v2295, %v2054
        %v2297 = vmul.f32 %v2296, %v2295
        %v2298 = vmul.f32 0.5, %v2297
        %v2299 = vsub.f32 1.5, %v2298
        %v2300 = vmul.f32 %v2295, %v2299
        %vm2301 = vweird.f32 %v2054
        %vm2302 = vweird.f32 %v2295
        %vm2303 = vmor %vm2301, %vm2302
        %v2304 = vsel %vm2303, %v2295, %v2300
        %v2305 = vmul.f32 %v1905, %v2064
        %v2306 = vmul.f32 %v1906, %v2074
        %v2307 = vmul.f32 %v1907, %v2084
        %v2308 = vmul.f32 %v1908, %v2094
        %v2309 = vmul.f32 %v1909, %v2104
        %v2310 = vmul.f32 %v1910, %v2114
        %v2311 = vmul.f32 %v1911, %v2124
        %v2312 = vmul.f32 %v1912, %v2134
        %v2313 = vmul.f32 %v1913, %v2144
        %v2314 = vmul.f32 %v1914, %v2154
        %v2315 = vmul.f32 %v1915, %v2164
        %v2316 = vmul.f32 %v1916, %v2174
        %v2317 = vmul.f32 %v1917, %v2184
        %v2318 = vmul.f32 %v1918, %v2194
        %v2319 = vmul.f32 %v1919, %v2204
        %v2320 = vmul.f32 %v1920, %v2214
        %v2321 = vmul.f32 %v1921, %v2224
        %v2322 = vmul.f32 %v1922, %v2234
        %v2323 = vmul.f32 %v1923, %v2244
        %v2324 = vmul.f32 %v1924, %v2254
        %v2325 = vmul.f32 %v1925, %v2264
        %v2326 = vmul.f32 %v1926, %v2274
        %v2327 = vmul.f32 %v1927, %v2284
        %v2328 = vmul.f32 %v1928, %v2294
        %v2329 = vmul.f32 %v1929, %v2304
        %v2330 = vperm.slane %v235, 2
        %v2331 = vmul.f32 %v2305, %v2330
        %v2332 = vmul.f32 %v2306, %v2330
        %v2333 = vmul.f32 %v2307, %v2330
        %v2334 = vmul.f32 %v2308, %v2330
        %v2335 = vmul.f32 %v2309, %v2330
        %v2336 = vmul.f32 %v2310, %v2330
        %v2337 = vmul.f32 %v2311, %v2330
        %v2338 = vmul.f32 %v2312, %v2330
        %v2339 = vmul.f32 %v2313, %v2330
        %v2340 = vmul.f32 %v2314, %v2330
        %v2341 = vmul.f32 %v2315, %v2330
        %v2342 = vmul.f32 %v2316, %v2330
        %v2343 = vmul.f32 %v2317, %v2330
        %v2344 = vmul.f32 %v2318, %v2330
        %v2345 = vmul.f32 %v2319, %v2330
        %v2346 = vmul.f32 %v2320, %v2330
        %v2347 = vmul.f32 %v2321, %v2330
        %v2348 = vmul.f32 %v2322, %v2330
        %v2349 = vmul.f32 %v2323, %v2330
        %v2350 = vmul.f32 %v2324, %v2330
        %v2351 = vmul.f32 %v2325, %v2330
        %v2352 = vmul.f32 %v2326, %v2330
        %v2353 = vmul.f32 %v2327, %v2330
        %v2354 = vmul.f32 %v2328, %v2330
        %v2355 = vmul.f32 %v2329, %v2330
        %v2356 = vperm.slane %v235, 3
        %v2357 = vadd.f32 %v2331, %v2356
        %v2358 = vadd.f32 %v2332, %v2356
        %v2359 = vadd.f32 %v2333, %v2356
        %v2360 = vadd.f32 %v2334, %v2356
        %v2361 = vadd.f32 %v2335, %v2356
        %v2362 = vadd.f32 %v2336, %v2356
        %v2363 = vadd.f32 %v2337, %v2356
        %v2364 = vadd.f32 %v2338, %v2356
        %v2365 = vadd.f32 %v2339, %v2356
        %v2366 = vadd.f32 %v2340, %v2356
        %v2367 = vadd.f32 %v2341, %v2356
        %v2368 = vadd.f32 %v2342, %v2356
        %v2369 = vadd.f32 %v2343, %v2356
        %v2370 = vadd.f32 %v2344, %v2356
        %v2371 = vadd.f32 %v2345, %v2356
        %v2372 = vadd.f32 %v2346, %v2356
        %v2373 = vadd.f32 %v2347, %v2356
        %v2374 = vadd.f32 %v2348, %v2356
        %v2375 = vadd.f32 %v2349, %v2356
        %v2376 = vadd.f32 %v2350, %v2356
        %v2377 = vadd.f32 %v2351, %v2356
        %v2378 = vadd.f32 %v2352, %v2356
        %v2379 = vadd.f32 %v2353, %v2356
        %v2380 = vadd.f32 %v2354, %v2356
        %v2381 = vadd.f32 %v2355, %v2356
        %v2382 = vmax.f32 %v2357, 0.0
        %v2383 = vmax.f32 %v2358, 0.0
        %v2384 = vmax.f32 %v2359, 0.0
        %v2385 = vmax.f32 %v2360, 0.0
        %v2386 = vmax.f32 %v2361, 0.0
        %v2387 = vmax.f32 %v2362, 0.0
        %v2388 = vmax.f32 %v2363, 0.0
        %v2389 = vmax.f32 %v2364, 0.0
        %v2390 = vmax.f32 %v2365, 0.0
        %v2391 = vmax.f32 %v2366, 0.0
        %v2392 = vmax.f32 %v2367, 0.0
        %v2393 = vmax.f32 %v2368, 0.0
        %v2394 = vmax.f32 %v2369, 0.0
        %v2395 = vmax.f32 %v2370, 0.0
        %v2396 = vmax.f32 %v2371, 0.0
        %v2397 = vmax.f32 %v2372, 0.0
        %v2398 = vmax.f32 %v2373, 0.0
        %v2399 = vmax.f32 %v2374, 0.0
        %v2400 = vmax.f32 %v2375, 0.0
        %v2401 = vmax.f32 %v2376, 0.0
        %v2402 = vmax.f32 %v2377, 0.0
        %v2403 = vmax.f32 %v2378, 0.0
        %v2404 = vmax.f32 %v2379, 0.0
        %v2405 = vmax.f32 %v2380, 0.0
        %v2406 = vmax.f32 %v2381, 0.0
        %s2407 = scalar_lea.vmem [#allocation3], 384
        %v2408 = vld [vmem:[%s2407] sm:$0xff]
        %v2409 = vld [vmem:[%s2407 + $0x8] sm:$0xff]
        %v2410 = vld [vmem:[%s2407 + $0x10] sm:$0xff]
        %v2411 = vld [vmem:[%s2407 + $0x18] sm:$0xff]
        %v2412 = vld [vmem:[%s2407 + $0x20] sm:$0xff]
        %v2413 = vld [vmem:[%s2407 + $0x28] sm:$0xff]
        %v2414 = vld [vmem:[%s2407 + $0x30] sm:$0xff]
        %v2415 = vld [vmem:[%s2407 + $0x38] sm:$0xff]
        %v2416 = vld [vmem:[%s2407 + $0x40] sm:$0xff]
        %v2417 = vld [vmem:[%s2407 + $0x48] sm:$0xff]
        %v2418 = vld [vmem:[%s2407 + $0x50] sm:$0xff]
        %v2419 = vld [vmem:[%s2407 + $0x58] sm:$0xff]
        %v2420 = vld [vmem:[%s2407 + $0x60] sm:$0xff]
        %v2421 = vld [vmem:[%s2407 + $0x68] sm:$0xff]
        %v2422 = vld [vmem:[%s2407 + $0x70] sm:$0xff]
        %v2423 = vld [vmem:[%s2407 + $0x78] sm:$0xff]
        %v2424 = vperm.slane %v235, 4
        %2425 = vmatpush.msra.mxu0 %v2423
        %2426 = vmatpush.msra.mxu0 %v2422
        %2427 = vmatpush.msra.mxu0 %v2421
        %2428 = vmatpush.msra.mxu0 %v2420
        %2429 = vmatpush.msra.mxu0 %v2419
        %2430 = vmatpush.msra.mxu0 %v2418
        %2431 = vmatpush.msra.mxu0 %v2417
        %2432 = vmatpush.msra.mxu0 %v2416
        %2433 = vmatpush.msra.mxu0 %v2415
        %2434 = vmatpush.msra.mxu0 %v2414
        %2435 = vmatpush.msra.mxu0 %v2413
        %2436 = vmatpush.msra.mxu0 %v2412
        %2437 = vmatpush.msra.mxu0 %v2411
        %2438 = vmatpush.msra.mxu0 %v2410
        %2439 = vmatpush.msra.mxu0 %v2409
        %2440 = vmatpush.msra.mxu0 %v2408
        %2441 = vmatmul.f32.gmra.mxu0 %v2382
        %v2442 = vpop.f32.mrf.mxu0
        %v2443 = vadd.f32 %v2424, %v2442
        %2444 = vmatmul.f32.gmra.mxu0 %v2383
        %v2445 = vpop.f32.mrf.mxu0
        %v2446 = vadd.f32 %v2424, %v2445
        %2447 = vmatmul.f32.gmra.mxu0 %v2384
        %v2448 = vpop.f32.mrf.mxu0
        %v2449 = vadd.f32 %v2424, %v2448
        %2450 = vmatmul.f32.gmra.mxu0 %v2385
        %v2451 = vpop.f32.mrf.mxu0
        %v2452 = vadd.f32 %v2424, %v2451
        %2453 = vmatmul.f32.gmra.mxu0 %v2386
        %v2454 = vpop.f32.mrf.mxu0
        %v2455 = vadd.f32 %v2424, %v2454
        %2456 = vmatmul.f32.gmra.mxu0 %v2387
        %v2457 = vpop.f32.mrf.mxu0
        %v2458 = vadd.f32 %v2424, %v2457
        %2459 = vmatmul.f32.gmra.mxu0 %v2388
        %v2460 = vpop.f32.mrf.mxu0
        %v2461 = vadd.f32 %v2424, %v2460
        %2462 = vmatmul.f32.gmra.mxu0 %v2389
        %v2463 = vpop.f32.mrf.mxu0
        %v2464 = vadd.f32 %v2424, %v2463
        %2465 = vmatmul.f32.gmra.mxu0 %v2390
        %v2466 = vpop.f32.mrf.mxu0
        %v2467 = vadd.f32 %v2424, %v2466
        %2468 = vmatmul.f32.gmra.mxu0 %v2391
        %v2469 = vpop.f32.mrf.mxu0
        %v2470 = vadd.f32 %v2424, %v2469
        %2471 = vmatmul.f32.gmra.mxu0 %v2392
        %v2472 = vpop.f32.mrf.mxu0
        %v2473 = vadd.f32 %v2424, %v2472
        %2474 = vmatmul.f32.gmra.mxu0 %v2393
        %v2475 = vpop.f32.mrf.mxu0
        %v2476 = vadd.f32 %v2424, %v2475
        %2477 = vmatmul.f32.gmra.mxu0 %v2394
        %v2478 = vpop.f32.mrf.mxu0
        %v2479 = vadd.f32 %v2424, %v2478
        %2480 = vmatmul.f32.gmra.mxu0 %v2395
        %v2481 = vpop.f32.mrf.mxu0
        %v2482 = vadd.f32 %v2424, %v2481
        %2483 = vmatmul.f32.gmra.mxu0 %v2396
        %v2484 = vpop.f32.mrf.mxu0
        %v2485 = vadd.f32 %v2424, %v2484
        %2486 = vmatmul.f32.gmra.mxu0 %v2397
        %v2487 = vpop.f32.mrf.mxu0
        %v2488 = vadd.f32 %v2424, %v2487
        %2489 = vmatmul.f32.gmra.mxu0 %v2398
        %v2490 = vpop.f32.mrf.mxu0
        %v2491 = vadd.f32 %v2424, %v2490
        %2492 = vmatmul.f32.gmra.mxu0 %v2399
        %v2493 = vpop.f32.mrf.mxu0
        %v2494 = vadd.f32 %v2424, %v2493
        %2495 = vmatmul.f32.gmra.mxu0 %v2400
        %v2496 = vpop.f32.mrf.mxu0
        %v2497 = vadd.f32 %v2424, %v2496
        %2498 = vmatmul.f32.gmra.mxu0 %v2401
        %v2499 = vpop.f32.mrf.mxu0
        %v2500 = vadd.f32 %v2424, %v2499
        %2501 = vmatmul.f32.gmra.mxu0 %v2402
        %v2502 = vpop.f32.mrf.mxu0
        %v2503 = vadd.f32 %v2424, %v2502
        %2504 = vmatmul.f32.gmra.mxu0 %v2403
        %v2505 = vpop.f32.mrf.mxu0
        %v2506 = vadd.f32 %v2424, %v2505
        %2507 = vmatmul.f32.gmra.mxu0 %v2404
        %v2508 = vpop.f32.mrf.mxu0
        %v2509 = vadd.f32 %v2424, %v2508
        %2510 = vmatmul.f32.gmra.mxu0 %v2405
        %v2511 = vpop.f32.mrf.mxu0
        %v2512 = vadd.f32 %v2424, %v2511
        %2513 = vmatmul.f32.gmra.mxu0 %v2406
        %v2514 = vpop.f32.mrf.mxu0
        %v2515 = vadd.f32 %v2424, %v2514
        %2516 = vdwg.mxu0
        %vm2517 = vcmp.ne.s32.totalorder %v267, 0
        %vm2518 = vcmp.ne.s32.totalorder %v267, 1
        %vm2519 = vcmp.ne.s32.totalorder %v267, 2
        %vm2520 = vcmp.ne.s32.totalorder %v267, 3
        %vm2521 = vcmp.ne.s32.totalorder %v267, 4
        %v2522 = vsel %vm2517, 1, 0
        %v2523 = vsel %vm2518, 1, 0
        %v2524 = vsel %vm2519, 1, 0
        %v2525 = vsel %vm2520, 1, 0
        %v2526 = vsel %vm2521, 1, 0
        %v2527 = vcvt.s32.f32 %v2522
        %v2528 = vcvt.s32.f32 %v2523
        %v2529 = vcvt.s32.f32 %v2524
        %v2530 = vcvt.s32.f32 %v2525
        %v2531 = vcvt.s32.f32 %v2526
        %v2557 = vrot.slane %v2443, 1
        %v2558 = vrot.slane %v2443, 2
        %v2559 = vrot.slane %v2443, 3
        %v2560 = vrot.slane %v2443, 4
        %v2561 = vrot.slane %v2443, 5
        %v2562 = vrot.slane %v2443, 6
        %v2563 = vrot.slane %v2443, 7
        %v2564 = vrot.slane %v2446, 1
        %v2565 = vrot.slane %v2446, 2
        %v2566 = vrot.slane %v2446, 3
        %v2567 = vrot.slane %v2446, 4
        %v2568 = vrot.slane %v2446, 5
        %v2569 = vrot.slane %v2446, 6
        %v2570 = vrot.slane %v2446, 7
        %v2571 = vrot.slane %v2449, 1
        %v2572 = vrot.slane %v2449, 2
        %v2573 = vrot.slane %v2449, 3
        %v2574 = vrot.slane %v2449, 4
        %v2575 = vrot.slane %v2449, 5
        %v2576 = vrot.slane %v2449, 6
        %v2577 = vrot.slane %v2449, 7
        %v2578 = vrot.slane %v2452, 1
        %v2579 = vrot.slane %v2452, 2
        %v2580 = vrot.slane %v2452, 3
        %v2581 = vrot.slane %v2452, 4
        %v2582 = vrot.slane %v2452, 5
        %v2583 = vrot.slane %v2452, 6
        %v2584 = vrot.slane %v2452, 7
        %v2585 = vrot.slane %v2455, 1
        %v2586 = vrot.slane %v2455, 2
        %v2587 = vrot.slane %v2455, 3
        %v2588 = vrot.slane %v2455, 4
        %v2589 = vrot.slane %v2455, 5
        %v2590 = vrot.slane %v2455, 6
        %v2591 = vrot.slane %v2455, 7
        %v2592 = vrot.slane %v2458, 1
        %v2593 = vrot.slane %v2458, 2
        %v2594 = vrot.slane %v2458, 3
        %v2595 = vrot.slane %v2458, 4
        %v2596 = vrot.slane %v2458, 5
        %v2597 = vrot.slane %v2458, 6
        %v2598 = vrot.slane %v2458, 7
        %v2599 = vrot.slane %v2461, 1
        %v2600 = vrot.slane %v2461, 2
        %v2601 = vrot.slane %v2461, 3
        %v2602 = vrot.slane %v2461, 4
        %v2603 = vrot.slane %v2461, 5
        %v2604 = vrot.slane %v2461, 6
        %v2605 = vrot.slane %v2461, 7
        %v2606 = vrot.slane %v2464, 1
        %v2607 = vrot.slane %v2464, 2
        %v2608 = vrot.slane %v2464, 3
        %v2609 = vrot.slane %v2464, 4
        %v2610 = vrot.slane %v2464, 5
        %v2611 = vrot.slane %v2464, 6
        %v2612 = vrot.slane %v2464, 7
        %v2613 = vrot.slane %v2467, 1
        %v2614 = vrot.slane %v2467, 2
        %v2615 = vrot.slane %v2467, 3
        %v2616 = vrot.slane %v2467, 4
        %v2617 = vrot.slane %v2467, 5
        %v2618 = vrot.slane %v2467, 6
        %v2619 = vrot.slane %v2467, 7
        %v2620 = vrot.slane %v2470, 1
        %v2621 = vrot.slane %v2470, 2
        %v2622 = vrot.slane %v2470, 3
        %v2623 = vrot.slane %v2470, 4
        %v2624 = vrot.slane %v2470, 5
        %v2625 = vrot.slane %v2470, 6
        %v2626 = vrot.slane %v2470, 7
        %v2627 = vrot.slane %v2473, 1
        %v2628 = vrot.slane %v2473, 2
        %v2629 = vrot.slane %v2473, 3
        %v2630 = vrot.slane %v2473, 4
        %v2631 = vrot.slane %v2473, 5
        %v2632 = vrot.slane %v2473, 6
        %v2633 = vrot.slane %v2473, 7
        %v2634 = vrot.slane %v2476, 1
        %v2635 = vrot.slane %v2476, 2
        %v2636 = vrot.slane %v2476, 3
        %v2637 = vrot.slane %v2476, 4
        %v2638 = vrot.slane %v2476, 5
        %v2639 = vrot.slane %v2476, 6
        %v2640 = vrot.slane %v2476, 7
        %v2641 = vrot.slane %v2479, 1
        %v2642 = vrot.slane %v2479, 2
        %v2643 = vrot.slane %v2479, 3
        %v2644 = vrot.slane %v2479, 4
        %v2645 = vrot.slane %v2479, 5
        %v2646 = vrot.slane %v2479, 6
        %v2647 = vrot.slane %v2479, 7
        %v2648 = vrot.slane %v2482, 1
        %v2649 = vrot.slane %v2482, 2
        %v2650 = vrot.slane %v2482, 3
        %v2651 = vrot.slane %v2482, 4
        %v2652 = vrot.slane %v2482, 5
        %v2653 = vrot.slane %v2482, 6
        %v2654 = vrot.slane %v2482, 7
        %v2655 = vrot.slane %v2485, 1
        %v2656 = vrot.slane %v2485, 2
        %v2657 = vrot.slane %v2485, 3
        %v2658 = vrot.slane %v2485, 4
        %v2659 = vrot.slane %v2485, 5
        %v2660 = vrot.slane %v2485, 6
        %v2661 = vrot.slane %v2485, 7
        %v2662 = vrot.slane %v2488, 1
        %v2663 = vrot.slane %v2488, 2
        %v2664 = vrot.slane %v2488, 3
        %v2665 = vrot.slane %v2488, 4
        %v2666 = vrot.slane %v2488, 5
        %v2667 = vrot.slane %v2488, 6
        %v2668 = vrot.slane %v2488, 7
        %v2669 = vrot.slane %v2491, 1
        %v2670 = vrot.slane %v2491, 2
        %v2671 = vrot.slane %v2491, 3
        %v2672 = vrot.slane %v2491, 4
        %v2673 = vrot.slane %v2491, 5
        %v2674 = vrot.slane %v2491, 6
        %v2675 = vrot.slane %v2491, 7
        %v2676 = vrot.slane %v2494, 1
        %v2677 = vrot.slane %v2494, 2
        %v2678 = vrot.slane %v2494, 3
        %v2679 = vrot.slane %v2494, 4
        %v2680 = vrot.slane %v2494, 5
        %v2681 = vrot.slane %v2494, 6
        %v2682 = vrot.slane %v2494, 7
        %v2683 = vrot.slane %v2497, 1
        %v2684 = vrot.slane %v2497, 2
        %v2685 = vrot.slane %v2497, 3
        %v2686 = vrot.slane %v2497, 4
        %v2687 = vrot.slane %v2497, 5
        %v2688 = vrot.slane %v2497, 6
        %v2689 = vrot.slane %v2497, 7
        %v2690 = vrot.slane %v2500, 1
        %v2691 = vrot.slane %v2500, 2
        %v2692 = vrot.slane %v2500, 3
        %v2693 = vrot.slane %v2500, 4
        %v2694 = vrot.slane %v2500, 5
        %v2695 = vrot.slane %v2500, 6
        %v2696 = vrot.slane %v2500, 7
        %v2697 = vrot.slane %v2503, 1
        %v2698 = vrot.slane %v2503, 2
        %v2699 = vrot.slane %v2503, 3
        %v2700 = vrot.slane %v2503, 4
        %v2701 = vrot.slane %v2503, 5
        %v2702 = vrot.slane %v2503, 6
        %v2703 = vrot.slane %v2503, 7
        %v2704 = vrot.slane %v2506, 1
        %v2705 = vrot.slane %v2506, 2
        %v2706 = vrot.slane %v2506, 3
        %v2707 = vrot.slane %v2506, 4
        %v2708 = vrot.slane %v2506, 5
        %v2709 = vrot.slane %v2506, 6
        %v2710 = vrot.slane %v2506, 7
        %v2711 = vrot.slane %v2509, 1
        %v2712 = vrot.slane %v2509, 2
        %v2713 = vrot.slane %v2509, 3
        %v2714 = vrot.slane %v2509, 4
        %v2715 = vrot.slane %v2509, 5
        %v2716 = vrot.slane %v2509, 6
        %v2717 = vrot.slane %v2509, 7
        %v2718 = vrot.slane %v2512, 1
        %v2719 = vrot.slane %v2512, 2
        %v2720 = vrot.slane %v2512, 3
        %v2721 = vrot.slane %v2512, 4
        %v2722 = vrot.slane %v2512, 5
        %v2723 = vrot.slane %v2512, 6
        %v2724 = vrot.slane %v2512, 7
        %v2725 = vrot.slane %v2515, 1
        %v2726 = vrot.slane %v2515, 2
        %v2727 = vrot.slane %v2515, 3
        %v2728 = vrot.slane %v2515, 4
        %v2729 = vrot.slane %v2515, 5
        %v2730 = vrot.slane %v2515, 6
        %v2731 = vrot.slane %v2515, 7
        %v2912 = vperm.slane %v2527, 0
        %v2913 = vperm.slane %v2527, 1
        %v2914 = vperm.slane %v2527, 2
        %v2915 = vperm.slane %v2527, 3
        %v2916 = vperm.slane %v2527, 4
        %v2917 = vperm.slane %v2528, 0
        %v2918 = vperm.slane %v2528, 1
        %v2919 = vperm.slane %v2528, 2
        %v2920 = vperm.slane %v2528, 3
        %v2921 = vperm.slane %v2528, 4
        %v2922 = vperm.slane %v2529, 0
        %v2923 = vperm.slane %v2529, 1
        %v2924 = vperm.slane %v2529, 2
        %v2925 = vperm.slane %v2529, 3
        %v2926 = vperm.slane %v2529, 4
        %v2927 = vperm.slane %v2530, 0
        %v2928 = vperm.slane %v2530, 1
        %v2929 = vperm.slane %v2530, 2
        %v2930 = vperm.slane %v2530, 3
        %v2931 = vperm.slane %v2530, 4
        %v2932 = vperm.slane %v2531, 0
        %v2933 = vperm.slane %v2531, 1
        %v2934 = vperm.slane %v2531, 2
        %v2935 = vperm.slane %v2531, 3
        %v2936 = vperm.slane %v2531, 4
        %v2962 = vmul.f32 %v2443, %v2912
        %v2963 = vmul.f32 %v2557, %v2913
        %v2964 = vmul.f32 %v2558, %v2914
        %v2965 = vmul.f32 %v2559, %v2915
        %v2966 = vmul.f32 %v2560, %v2916
        %v2967 = vmul.f32 %v2561, %v2917
        %v2968 = vmul.f32 %v2562, %v2918
        %v2969 = vmul.f32 %v2563, %v2919
        %v2970 = vmul.f32 %v2446, %v2920
        %v2971 = vmul.f32 %v2564, %v2921
        %v2972 = vmul.f32 %v2565, %v2922
        %v2973 = vmul.f32 %v2566, %v2923
        %v2974 = vmul.f32 %v2567, %v2924
        %v2975 = vmul.f32 %v2568, %v2925
        %v2976 = vmul.f32 %v2569, %v2926
        %v2977 = vmul.f32 %v2570, %v2927
        %v2978 = vmul.f32 %v2449, %v2928
        %v2979 = vmul.f32 %v2571, %v2929
        %v2980 = vmul.f32 %v2572, %v2930
        %v2981 = vmul.f32 %v2573, %v2931
        %v2982 = vmul.f32 %v2574, %v2932
        %v2983 = vmul.f32 %v2575, %v2933
        %v2984 = vmul.f32 %v2576, %v2934
        %v2985 = vmul.f32 %v2577, %v2935
        %v2986 = vmul.f32 %v2452, %v2936
        %v2987 = vmul.f32 %v2578, %v2912
        %v2988 = vmul.f32 %v2579, %v2913
        %v2989 = vmul.f32 %v2580, %v2914
        %v2990 = vmul.f32 %v2581, %v2915
        %v2991 = vmul.f32 %v2582, %v2916
        %v2992 = vmul.f32 %v2583, %v2917
        %v2993 = vmul.f32 %v2584, %v2918
        %v2994 = vmul.f32 %v2455, %v2919
        %v2995 = vmul.f32 %v2585, %v2920
        %v2996 = vmul.f32 %v2586, %v2921
        %v2997 = vmul.f32 %v2587, %v2922
        %v2998 = vmul.f32 %v2588, %v2923
        %v2999 = vmul.f32 %v2589, %v2924
        %v3000 = vmul.f32 %v2590, %v2925
        %v3001 = vmul.f32 %v2591, %v2926
        %v3002 = vmul.f32 %v2458, %v2927
        %v3003 = vmul.f32 %v2592, %v2928
        %v3004 = vmul.f32 %v2593, %v2929
        %v3005 = vmul.f32 %v2594, %v2930
        %v3006 = vmul.f32 %v2595, %v2931
        %v3007 = vmul.f32 %v2596, %v2932
        %v3008 = vmul.f32 %v2597, %v2933
        %v3009 = vmul.f32 %v2598, %v2934
        %v3010 = vmul.f32 %v2461, %v2935
        %v3011 = vmul.f32 %v2599, %v2936
        %v3012 = vmul.f32 %v2600, %v2912
        %v3013 = vmul.f32 %v2601, %v2913
        %v3014 = vmul.f32 %v2602, %v2914
        %v3015 = vmul.f32 %v2603, %v2915
        %v3016 = vmul.f32 %v2604, %v2916
        %v3017 = vmul.f32 %v2605, %v2917
        %v3018 = vmul.f32 %v2464, %v2918
        %v3019 = vmul.f32 %v2606, %v2919
        %v3020 = vmul.f32 %v2607, %v2920
        %v3021 = vmul.f32 %v2608, %v2921
        %v3022 = vmul.f32 %v2609, %v2922
        %v3023 = vmul.f32 %v2610, %v2923
        %v3024 = vmul.f32 %v2611, %v2924
        %v3025 = vmul.f32 %v2612, %v2925
        %v3026 = vmul.f32 %v2467, %v2926
        %v3027 = vmul.f32 %v2613, %v2927
        %v3028 = vmul.f32 %v2614, %v2928
        %v3029 = vmul.f32 %v2615, %v2929
        %v3030 = vmul.f32 %v2616, %v2930
        %v3031 = vmul.f32 %v2617, %v2931
        %v3032 = vmul.f32 %v2618, %v2932
        %v3033 = vmul.f32 %v2619, %v2933
        %v3034 = vmul.f32 %v2470, %v2934
        %v3035 = vmul.f32 %v2620, %v2935
        %v3036 = vmul.f32 %v2621, %v2936
        %v3037 = vmul.f32 %v2622, %v2912
        %v3038 = vmul.f32 %v2623, %v2913
        %v3039 = vmul.f32 %v2624, %v2914
        %v3040 = vmul.f32 %v2625, %v2915
        %v3041 = vmul.f32 %v2626, %v2916
        %v3042 = vmul.f32 %v2473, %v2917
        %v3043 = vmul.f32 %v2627, %v2918
        %v3044 = vmul.f32 %v2628, %v2919
        %v3045 = vmul.f32 %v2629, %v2920
        %v3046 = vmul.f32 %v2630, %v2921
        %v3047 = vmul.f32 %v2631, %v2922
        %v3048 = vmul.f32 %v2632, %v2923
        %v3049 = vmul.f32 %v2633, %v2924
        %v3050 = vmul.f32 %v2476, %v2925
        %v3051 = vmul.f32 %v2634, %v2926
        %v3052 = vmul.f32 %v2635, %v2927
        %v3053 = vmul.f32 %v2636, %v2928
        %v3054 = vmul.f32 %v2637, %v2929
        %v3055 = vmul.f32 %v2638, %v2930
        %v3056 = vmul.f32 %v2639, %v2931
        %v3057 = vmul.f32 %v2640, %v2932
        %v3058 = vmul.f32 %v2479, %v2933
        %v3059 = vmul.f32 %v2641, %v2934
        %v3060 = vmul.f32 %v2642, %v2935
        %v3061 = vmul.f32 %v2643, %v2936
        %v3062 = vmul.f32 %v2644, %v2912
        %v3063 = vmul.f32 %v2645, %v2913
        %v3064 = vmul.f32 %v2646, %v2914
        %v3065 = vmul.f32 %v2647, %v2915
        %v3066 = vmul.f32 %v2482, %v2916
        %v3067 = vmul.f32 %v2648, %v2917
        %v3068 = vmul.f32 %v2649, %v2918
        %v3069 = vmul.f32 %v2650, %v2919
        %v3070 = vmul.f32 %v2651, %v2920
        %v3071 = vmul.f32 %v2652, %v2921
        %v3072 = vmul.f32 %v2653, %v2922
        %v3073 = vmul.f32 %v2654, %v2923
        %v3074 = vmul.f32 %v2485, %v2924
        %v3075 = vmul.f32 %v2655, %v2925
        %v3076 = vmul.f32 %v2656, %v2926
        %v3077 = vmul.f32 %v2657, %v2927
        %v3078 = vmul.f32 %v2658, %v2928
        %v3079 = vmul.f32 %v2659, %v2929
        %v3080 = vmul.f32 %v2660, %v2930
        %v3081 = vmul.f32 %v2661, %v2931
        %v3082 = vmul.f32 %v2488, %v2932
        %v3083 = vmul.f32 %v2662, %v2933
        %v3084 = vmul.f32 %v2663, %v2934
        %v3085 = vmul.f32 %v2664, %v2935
        %v3086 = vmul.f32 %v2665, %v2936
        %v3087 = vmul.f32 %v2666, %v2912
        %v3088 = vmul.f32 %v2667, %v2913
        %v3089 = vmul.f32 %v2668, %v2914
        %v3090 = vmul.f32 %v2491, %v2915
        %v3091 = vmul.f32 %v2669, %v2916
        %v3092 = vmul.f32 %v2670, %v2917
        %v3093 = vmul.f32 %v2671, %v2918
        %v3094 = vmul.f32 %v2672, %v2919
        %v3095 = vmul.f32 %v2673, %v2920
        %v3096 = vmul.f32 %v2674, %v2921
        %v3097 = vmul.f32 %v2675, %v2922
        %v3098 = vmul.f32 %v2494, %v2923
        %v3099 = vmul.f32 %v2676, %v2924
        %v3100 = vmul.f32 %v2677, %v2925
        %v3101 = vmul.f32 %v2678, %v2926
        %v3102 = vmul.f32 %v2679, %v2927
        %v3103 = vmul.f32 %v2680, %v2928
        %v3104 = vmul.f32 %v2681, %v2929
        %v3105 = vmul.f32 %v2682, %v2930
        %v3106 = vmul.f32 %v2497, %v2931
        %v3107 = vmul.f32 %v2683, %v2932
        %v3108 = vmul.f32 %v2684, %v2933
        %v3109 = vmul.f32 %v2685, %v2934
        %v3110 = vmul.f32 %v2686, %v2935
        %v3111 = vmul.f32 %v2687, %v2936
        %v3112 = vmul.f32 %v2688, %v2912
        %v3113 = vmul.f32 %v2689, %v2913
        %v3114 = vmul.f32 %v2500, %v2914
        %v3115 = vmul.f32 %v2690, %v2915
        %v3116 = vmul.f32 %v2691, %v2916
        %v3117 = vmul.f32 %v2692, %v2917
        %v3118 = vmul.f32 %v2693, %v2918
        %v3119 = vmul.f32 %v2694, %v2919
        %v3120 = vmul.f32 %v2695, %v2920
        %v3121 = vmul.f32 %v2696, %v2921
        %v3122 = vmul.f32 %v2503, %v2922
        %v3123 = vmul.f32 %v2697, %v2923
        %v3124 = vmul.f32 %v2698, %v2924
        %v3125 = vmul.f32 %v2699, %v2925
        %v3126 = vmul.f32 %v2700, %v2926
        %v3127 = vmul.f32 %v2701, %v2927
        %v3128 = vmul.f32 %v2702, %v2928
        %v3129 = vmul.f32 %v2703, %v2929
        %v3130 = vmul.f32 %v2506, %v2930
        %v3131 = vmul.f32 %v2704, %v2931
        %v3132 = vmul.f32 %v2705, %v2932
        %v3133 = vmul.f32 %v2706, %v2933
        %v3134 = vmul.f32 %v2707, %v2934
        %v3135 = vmul.f32 %v2708, %v2935
        %v3136 = vmul.f32 %v2709, %v2936
        %v3137 = vmul.f32 %v2710, %v2912
        %v3138 = vmul.f32 %v2509, %v2913
        %v3139 = vmul.f32 %v2711, %v2914
        %v3140 = vmul.f32 %v2712, %v2915
        %v3141 = vmul.f32 %v2713, %v2916
        %v3142 = vmul.f32 %v2714, %v2917
        %v3143 = vmul.f32 %v2715, %v2918
        %v3144 = vmul.f32 %v2716, %v2919
        %v3145 = vmul.f32 %v2717, %v2920
        %v3146 = vmul.f32 %v2512, %v2921
        %v3147 = vmul.f32 %v2718, %v2922
        %v3148 = vmul.f32 %v2719, %v2923
        %v3149 = vmul.f32 %v2720, %v2924
        %v3150 = vmul.f32 %v2721, %v2925
        %v3151 = vmul.f32 %v2722, %v2926
        %v3152 = vmul.f32 %v2723, %v2927
        %v3153 = vmul.f32 %v2724, %v2928
        %v3154 = vmul.f32 %v2515, %v2929
        %v3155 = vmul.f32 %v2725, %v2930
        %v3156 = vmul.f32 %v2726, %v2931
        %v3157 = vmul.f32 %v2727, %v2932
        %v3158 = vmul.f32 %v2728, %v2933
        %v3159 = vmul.f32 %v2729, %v2934
        %v3160 = vmul.f32 %v2730, %v2935
        %v3161 = vmul.f32 %v2731, %v2936
        %3362 = vst [vmem:[#allocation1] ss:$9 sm:$0xff] %v2962
        %s3363 = scalar_lea.vmem [#allocation1], 1
        %3364 = vst [vmem:[%s3363] ss:$9 sm:$0xff] %v2963
        %s3365 = scalar_lea.vmem [#allocation1], 2
        %3366 = vst [vmem:[%s3365] ss:$9 sm:$0xff] %v2964
        %s3367 = scalar_lea.vmem [#allocation1], 3
        %3368 = vst [vmem:[%s3367] ss:$9 sm:$0xff] %v2965
        %s3369 = scalar_lea.vmem [#allocation1], 4
        %3370 = vst [vmem:[%s3369] ss:$9 sm:$0xff] %v2966
        %v3371 = vld [vmem:[#allocation1] sm:$0xff]
        %3372 = vst [vmem:[#allocation1] ss:$9 sm:$0xff] %v2967
        %3373 = vst [vmem:[%s3363] ss:$9 sm:$0xff] %v2968
        %3374 = vst [vmem:[%s3365] ss:$9 sm:$0xff] %v2969
        %3375 = vst [vmem:[%s3367] ss:$9 sm:$0xff] %v2970
        %3376 = vst [vmem:[%s3369] ss:$9 sm:$0xff] %v2971
        %v3377 = vld [vmem:[#allocation1] sm:$0xff]
        %3378 = vst [vmem:[#allocation1] ss:$9 sm:$0xff] %v2972
        %3379 = vst [vmem:[%s3363] ss:$9 sm:$0xff] %v2973
        %3380 = vst [vmem:[%s3365] ss:$9 sm:$0xff] %v2974
        %3381 = vst [vmem:[%s3367] ss:$9 sm:$0xff] %v2975
        %3382 = vst [vmem:[%s3369] ss:$9 sm:$0xff] %v2976
        %v3383 = vld [vmem:[#allocation1] sm:$0xff]
        %3384 = vst [vmem:[#allocation1] ss:$9 sm:$0xff] %v2977
        %3385 = vst [vmem:[%s3363] ss:$9 sm:$0xff] %v2978
        %3386 = vst [vmem:[%s3365] ss:$9 sm:$0xff] %v2979
        %3387 = vst [vmem:[%s3367] ss:$9 sm:$0xff] %v2980
        %3388 = vst [vmem:[%s3369] ss:$9 sm:$0xff] %v2981
        %v3389 = vld [vmem:[#allocation1] sm:$0xff]
        %3390 = vst [vmem:[#allocation1] ss:$9 sm:$0xff] %v2982
        %3391 = vst [vmem:[%s3363] ss:$9 sm:$0xff] %v2983
        %3392 = vst [vmem:[%s3365] ss:$9 sm:$0xff] %v2984
        %3393 = vst [vmem:[%s3367] ss:$9 sm:$0xff] %v2985
        %3394 = vst [vmem:[%s3369] ss:$9 sm:$0xff] %v2986
        %v3395 = vld [vmem:[#allocation1] sm:$0xff]
        %3396 = vst [vmem:[#allocation1] ss:$9 sm:$0xff] %v2987
        %3397 = vst [vmem:[%s3363] ss:$9 sm:$0xff] %v2988
        %3398 = vst [vmem:[%s3365] ss:$9 sm:$0xff] %v2989
        %3399 = vst [vmem:[%s3367] ss:$9 sm:$0xff] %v2990
        %3400 = vst [vmem:[%s3369] ss:$9 sm:$0xff] %v2991
        %v3401 = vld [vmem:[#allocation1] sm:$0xff]
        %3402 = vst [vmem:[#allocation1] ss:$9 sm:$0xff] %v2992
        %3403 = vst [vmem:[%s3363] ss:$9 sm:$0xff] %v2993
        %3404 = vst [vmem:[%s3365] ss:$9 sm:$0xff] %v2994
        %3405 = vst [vmem:[%s3367] ss:$9 sm:$0xff] %v2995
        %3406 = vst [vmem:[%s3369] ss:$9 sm:$0xff] %v2996
        %v3407 = vld [vmem:[#allocation1] sm:$0xff]
        %3408 = vst [vmem:[#allocation1] ss:$9 sm:$0xff] %v2997
        %3409 = vst [vmem:[%s3363] ss:$9 sm:$0xff] %v2998
        %3410 = vst [vmem:[%s3365] ss:$9 sm:$0xff] %v2999
        %3411 = vst [vmem:[%s3367] ss:$9 sm:$0xff] %v3000
        %3412 = vst [vmem:[%s3369] ss:$9 sm:$0xff] %v3001
        %v3413 = vld [vmem:[#allocation1] sm:$0xff]
        %3414 = vst [vmem:[#allocation1] ss:$9 sm:$0xff] %v3002
        %3415 = vst [vmem:[%s3363] ss:$9 sm:$0xff] %v3003
        %3416 = vst [vmem:[%s3365] ss:$9 sm:$0xff] %v3004
        %3417 = vst [vmem:[%s3367] ss:$9 sm:$0xff] %v3005
        %3418 = vst [vmem:[%s3369] ss:$9 sm:$0xff] %v3006
        %v3419 = vld [vmem:[#allocation1] sm:$0xff]
        %3420 = vst [vmem:[#allocation1] ss:$9 sm:$0xff] %v3007
        %3421 = vst [vmem:[%s3363] ss:$9 sm:$0xff] %v3008
        %3422 = vst [vmem:[%s3365] ss:$9 sm:$0xff] %v3009
        %3423 = vst [vmem:[%s3367] ss:$9 sm:$0xff] %v3010
        %3424 = vst [vmem:[%s3369] ss:$9 sm:$0xff] %v3011
        %v3425 = vld [vmem:[#allocation1] sm:$0xff]
        %3426 = vst [vmem:[#allocation1] ss:$9 sm:$0xff] %v3012
        %3427 = vst [vmem:[%s3363] ss:$9 sm:$0xff] %v3013
        %3428 = vst [vmem:[%s3365] ss:$9 sm:$0xff] %v3014
        %3429 = vst [vmem:[%s3367] ss:$9 sm:$0xff] %v3015
        %3430 = vst [vmem:[%s3369] ss:$9 sm:$0xff] %v3016
        %v3431 = vld [vmem:[#allocation1] sm:$0xff]
        %3432 = vst [vmem:[#allocation1] ss:$9 sm:$0xff] %v3017
        %3433 = vst [vmem:[%s3363] ss:$9 sm:$0xff] %v3018
        %3434 = vst [vmem:[%s3365] ss:$9 sm:$0xff] %v3019
        %3435 = vst [vmem:[%s3367] ss:$9 sm:$0xff] %v3020
        %3436 = vst [vmem:[%s3369] ss:$9 sm:$0xff] %v3021
        %v3437 = vld [vmem:[#allocation1] sm:$0xff]
        %3438 = vst [vmem:[#allocation1] ss:$9 sm:$0xff] %v3022
        %3439 = vst [vmem:[%s3363] ss:$9 sm:$0xff] %v3023
        %3440 = vst [vmem:[%s3365] ss:$9 sm:$0xff] %v3024
        %3441 = vst [vmem:[%s3367] ss:$9 sm:$0xff] %v3025
        %3442 = vst [vmem:[%s3369] ss:$9 sm:$0xff] %v3026
        %v3443 = vld [vmem:[#allocation1] sm:$0xff]
        %3444 = vst [vmem:[#allocation1] ss:$9 sm:$0xff] %v3027
        %3445 = vst [vmem:[%s3363] ss:$9 sm:$0xff] %v3028
        %3446 = vst [vmem:[%s3365] ss:$9 sm:$0xff] %v3029
        %3447 = vst [vmem:[%s3367] ss:$9 sm:$0xff] %v3030
        %3448 = vst [vmem:[%s3369] ss:$9 sm:$0xff] %v3031
        %v3449 = vld [vmem:[#allocation1] sm:$0xff]
        %3450 = vst [vmem:[#allocation1] ss:$9 sm:$0xff] %v3032
        %3451 = vst [vmem:[%s3363] ss:$9 sm:$0xff] %v3033
        %3452 = vst [vmem:[%s3365] ss:$9 sm:$0xff] %v3034
        %3453 = vst [vmem:[%s3367] ss:$9 sm:$0xff] %v3035
        %3454 = vst [vmem:[%s3369] ss:$9 sm:$0xff] %v3036
        %v3455 = vld [vmem:[#allocation1] sm:$0xff]
        %3456 = vst [vmem:[#allocation1] ss:$9 sm:$0xff] %v3037
        %3457 = vst [vmem:[%s3363] ss:$9 sm:$0xff] %v3038
        %3458 = vst [vmem:[%s3365] ss:$9 sm:$0xff] %v3039
        %3459 = vst [vmem:[%s3367] ss:$9 sm:$0xff] %v3040
        %3460 = vst [vmem:[%s3369] ss:$9 sm:$0xff] %v3041
        %v3461 = vld [vmem:[#allocation1] sm:$0xff]
        %3462 = vst [vmem:[#allocation1] ss:$9 sm:$0xff] %v3042
        %3463 = vst [vmem:[%s3363] ss:$9 sm:$0xff] %v3043
        %3464 = vst [vmem:[%s3365] ss:$9 sm:$0xff] %v3044
        %3465 = vst [vmem:[%s3367] ss:$9 sm:$0xff] %v3045
        %3466 = vst [vmem:[%s3369] ss:$9 sm:$0xff] %v3046
        %v3467 = vld [vmem:[#allocation1] sm:$0xff]
        %3468 = vst [vmem:[#allocation1] ss:$9 sm:$0xff] %v3047
        %3469 = vst [vmem:[%s3363] ss:$9 sm:$0xff] %v3048
        %3470 = vst [vmem:[%s3365] ss:$9 sm:$0xff] %v3049
        %3471 = vst [vmem:[%s3367] ss:$9 sm:$0xff] %v3050
        %3472 = vst [vmem:[%s3369] ss:$9 sm:$0xff] %v3051
        %v3473 = vld [vmem:[#allocation1] sm:$0xff]
        %3474 = vst [vmem:[#allocation1] ss:$9 sm:$0xff] %v3052
        %3475 = vst [vmem:[%s3363] ss:$9 sm:$0xff] %v3053
        %3476 = vst [vmem:[%s3365] ss:$9 sm:$0xff] %v3054
        %3477 = vst [vmem:[%s3367] ss:$9 sm:$0xff] %v3055
        %3478 = vst [vmem:[%s3369] ss:$9 sm:$0xff] %v3056
        %v3479 = vld [vmem:[#allocation1] sm:$0xff]
        %3480 = vst [vmem:[#allocation1] ss:$9 sm:$0xff] %v3057
        %3481 = vst [vmem:[%s3363] ss:$9 sm:$0xff] %v3058
        %3482 = vst [vmem:[%s3365] ss:$9 sm:$0xff] %v3059
        %3483 = vst [vmem:[%s3367] ss:$9 sm:$0xff] %v3060
        %3484 = vst [vmem:[%s3369] ss:$9 sm:$0xff] %v3061
        %v3485 = vld [vmem:[#allocation1] sm:$0xff]
        %3486 = vst [vmem:[#allocation1] ss:$9 sm:$0xff] %v3062
        %3487 = vst [vmem:[%s3363] ss:$9 sm:$0xff] %v3063
        %3488 = vst [vmem:[%s3365] ss:$9 sm:$0xff] %v3064
        %3489 = vst [vmem:[%s3367] ss:$9 sm:$0xff] %v3065
        %3490 = vst [vmem:[%s3369] ss:$9 sm:$0xff] %v3066
        %v3491 = vld [vmem:[#allocation1] sm:$0xff]
        %3492 = vst [vmem:[#allocation1] ss:$9 sm:$0xff] %v3067
        %3493 = vst [vmem:[%s3363] ss:$9 sm:$0xff] %v3068
        %3494 = vst [vmem:[%s3365] ss:$9 sm:$0xff] %v3069
        %3495 = vst [vmem:[%s3367] ss:$9 sm:$0xff] %v3070
        %3496 = vst [vmem:[%s3369] ss:$9 sm:$0xff] %v3071
        %v3497 = vld [vmem:[#allocation1] sm:$0xff]
        %3498 = vst [vmem:[#allocation1] ss:$9 sm:$0xff] %v3072
        %3499 = vst [vmem:[%s3363] ss:$9 sm:$0xff] %v3073
        %3500 = vst [vmem:[%s3365] ss:$9 sm:$0xff] %v3074
        %3501 = vst [vmem:[%s3367] ss:$9 sm:$0xff] %v3075
        %3502 = vst [vmem:[%s3369] ss:$9 sm:$0xff] %v3076
        %v3503 = vld [vmem:[#allocation1] sm:$0xff]
        %3504 = vst [vmem:[#allocation1] ss:$9 sm:$0xff] %v3077
        %3505 = vst [vmem:[%s3363] ss:$9 sm:$0xff] %v3078
        %3506 = vst [vmem:[%s3365] ss:$9 sm:$0xff] %v3079
        %3507 = vst [vmem:[%s3367] ss:$9 sm:$0xff] %v3080
        %3508 = vst [vmem:[%s3369] ss:$9 sm:$0xff] %v3081
        %v3509 = vld [vmem:[#allocation1] sm:$0xff]
        %3510 = vst [vmem:[#allocation1] ss:$9 sm:$0xff] %v3082
        %3511 = vst [vmem:[%s3363] ss:$9 sm:$0xff] %v3083
        %3512 = vst [vmem:[%s3365] ss:$9 sm:$0xff] %v3084
        %3513 = vst [vmem:[%s3367] ss:$9 sm:$0xff] %v3085
        %3514 = vst [vmem:[%s3369] ss:$9 sm:$0xff] %v3086
        %v3515 = vld [vmem:[#allocation1] sm:$0xff]
        %3516 = vst [vmem:[#allocation1] ss:$9 sm:$0xff] %v3087
        %3517 = vst [vmem:[%s3363] ss:$9 sm:$0xff] %v3088
        %3518 = vst [vmem:[%s3365] ss:$9 sm:$0xff] %v3089
        %3519 = vst [vmem:[%s3367] ss:$9 sm:$0xff] %v3090
        %3520 = vst [vmem:[%s3369] ss:$9 sm:$0xff] %v3091
        %v3521 = vld [vmem:[#allocation1] sm:$0xff]
        %3522 = vst [vmem:[#allocation1] ss:$9 sm:$0xff] %v3092
        %3523 = vst [vmem:[%s3363] ss:$9 sm:$0xff] %v3093
        %3524 = vst [vmem:[%s3365] ss:$9 sm:$0xff] %v3094
        %3525 = vst [vmem:[%s3367] ss:$9 sm:$0xff] %v3095
        %3526 = vst [vmem:[%s3369] ss:$9 sm:$0xff] %v3096
        %v3527 = vld [vmem:[#allocation1] sm:$0xff]
        %3528 = vst [vmem:[#allocation1] ss:$9 sm:$0xff] %v3097
        %3529 = vst [vmem:[%s3363] ss:$9 sm:$0xff] %v3098
        %3530 = vst [vmem:[%s3365] ss:$9 sm:$0xff] %v3099
        %3531 = vst [vmem:[%s3367] ss:$9 sm:$0xff] %v3100
        %3532 = vst [vmem:[%s3369] ss:$9 sm:$0xff] %v3101
        %v3533 = vld [vmem:[#allocation1] sm:$0xff]
        %3534 = vst [vmem:[#allocation1] ss:$9 sm:$0xff] %v3102
        %3535 = vst [vmem:[%s3363] ss:$9 sm:$0xff] %v3103
        %3536 = vst [vmem:[%s3365] ss:$9 sm:$0xff] %v3104
        %3537 = vst [vmem:[%s3367] ss:$9 sm:$0xff] %v3105
        %3538 = vst [vmem:[%s3369] ss:$9 sm:$0xff] %v3106
        %v3539 = vld [vmem:[#allocation1] sm:$0xff]
        %3540 = vst [vmem:[#allocation1] ss:$9 sm:$0xff] %v3107
        %3541 = vst [vmem:[%s3363] ss:$9 sm:$0xff] %v3108
        %3542 = vst [vmem:[%s3365] ss:$9 sm:$0xff] %v3109
        %3543 = vst [vmem:[%s3367] ss:$9 sm:$0xff] %v3110
        %3544 = vst [vmem:[%s3369] ss:$9 sm:$0xff] %v3111
        %v3545 = vld [vmem:[#allocation1] sm:$0xff]
        %3546 = vst [vmem:[#allocation1] ss:$9 sm:$0xff] %v3112
        %3547 = vst [vmem:[%s3363] ss:$9 sm:$0xff] %v3113
        %3548 = vst [vmem:[%s3365] ss:$9 sm:$0xff] %v3114
        %3549 = vst [vmem:[%s3367] ss:$9 sm:$0xff] %v3115
        %3550 = vst [vmem:[%s3369] ss:$9 sm:$0xff] %v3116
        %v3551 = vld [vmem:[#allocation1] sm:$0xff]
        %3552 = vst [vmem:[#allocation1] ss:$9 sm:$0xff] %v3117
        %3553 = vst [vmem:[%s3363] ss:$9 sm:$0xff] %v3118
        %3554 = vst [vmem:[%s3365] ss:$9 sm:$0xff] %v3119
        %3555 = vst [vmem:[%s3367] ss:$9 sm:$0xff] %v3120
        %3556 = vst [vmem:[%s3369] ss:$9 sm:$0xff] %v3121
        %v3557 = vld [vmem:[#allocation1] sm:$0xff]
        %3558 = vst [vmem:[#allocation1] ss:$9 sm:$0xff] %v3122
        %3559 = vst [vmem:[%s3363] ss:$9 sm:$0xff] %v3123
        %3560 = vst [vmem:[%s3365] ss:$9 sm:$0xff] %v3124
        %3561 = vst [vmem:[%s3367] ss:$9 sm:$0xff] %v3125
        %3562 = vst [vmem:[%s3369] ss:$9 sm:$0xff] %v3126
        %v3563 = vld [vmem:[#allocation1] sm:$0xff]
        %3564 = vst [vmem:[#allocation1] ss:$9 sm:$0xff] %v3127
        %3565 = vst [vmem:[%s3363] ss:$9 sm:$0xff] %v3128
        %3566 = vst [vmem:[%s3365] ss:$9 sm:$0xff] %v3129
        %3567 = vst [vmem:[%s3367] ss:$9 sm:$0xff] %v3130
        %3568 = vst [vmem:[%s3369] ss:$9 sm:$0xff] %v3131
        %v3569 = vld [vmem:[#allocation1] sm:$0xff]
        %3570 = vst [vmem:[#allocation1] ss:$9 sm:$0xff] %v3132
        %3571 = vst [vmem:[%s3363] ss:$9 sm:$0xff] %v3133
        %3572 = vst [vmem:[%s3365] ss:$9 sm:$0xff] %v3134
        %3573 = vst [vmem:[%s3367] ss:$9 sm:$0xff] %v3135
        %3574 = vst [vmem:[%s3369] ss:$9 sm:$0xff] %v3136
        %v3575 = vld [vmem:[#allocation1] sm:$0xff]
        %3576 = vst [vmem:[#allocation1] ss:$9 sm:$0xff] %v3137
        %3577 = vst [vmem:[%s3363] ss:$9 sm:$0xff] %v3138
        %3578 = vst [vmem:[%s3365] ss:$9 sm:$0xff] %v3139
        %3579 = vst [vmem:[%s3367] ss:$9 sm:$0xff] %v3140
        %3580 = vst [vmem:[%s3369] ss:$9 sm:$0xff] %v3141
        %v3581 = vld [vmem:[#allocation1] sm:$0xff]
        %3582 = vst [vmem:[#allocation1] ss:$9 sm:$0xff] %v3142
        %3583 = vst [vmem:[%s3363] ss:$9 sm:$0xff] %v3143
        %3584 = vst [vmem:[%s3365] ss:$9 sm:$0xff] %v3144
        %3585 = vst [vmem:[%s3367] ss:$9 sm:$0xff] %v3145
        %3586 = vst [vmem:[%s3369] ss:$9 sm:$0xff] %v3146
        %v3587 = vld [vmem:[#allocation1] sm:$0xff]
        %3588 = vst [vmem:[#allocation1] ss:$9 sm:$0xff] %v3147
        %3589 = vst [vmem:[%s3363] ss:$9 sm:$0xff] %v3148
        %3590 = vst [vmem:[%s3365] ss:$9 sm:$0xff] %v3149
        %3591 = vst [vmem:[%s3367] ss:$9 sm:$0xff] %v3150
        %3592 = vst [vmem:[%s3369] ss:$9 sm:$0xff] %v3151
        %v3593 = vld [vmem:[#allocation1] sm:$0xff]
        %3594 = vst [vmem:[#allocation1] ss:$9 sm:$0xff] %v3152
        %3595 = vst [vmem:[%s3363] ss:$9 sm:$0xff] %v3153
        %3596 = vst [vmem:[%s3365] ss:$9 sm:$0xff] %v3154
        %3597 = vst [vmem:[%s3367] ss:$9 sm:$0xff] %v3155
        %3598 = vst [vmem:[%s3369] ss:$9 sm:$0xff] %v3156
        %v3599 = vld [vmem:[#allocation1] sm:$0xff]
        %3600 = vst [vmem:[#allocation1] ss:$9 sm:$0xff] %v3157
        %3601 = vst [vmem:[%s3363] ss:$9 sm:$0xff] %v3158
        %3602 = vst [vmem:[%s3365] ss:$9 sm:$0xff] %v3159
        %3603 = vst [vmem:[%s3367] ss:$9 sm:$0xff] %v3160
        %3604 = vst [vmem:[%s3369] ss:$9 sm:$0xff] %v3161
        %v3605 = vld [vmem:[#allocation1] sm:$0xff]
        %vm3646 = vcmask 1044480
        %v3647 = vsel %vm3646, %v3371, 0.0
        %v3648 = vrot.slane %v3647, 4
        %v3649 = vadd.f32 %v3647, %v3648
        %v3650 = vrot.slane %v3649, 2
        %v3651 = vadd.f32 %v3649, %v3650
        %v3652 = vrot.slane %v3651, 1
        %v3653 = vadd.f32 %v3651, %v3652
        %v3654 = vsel %vm3646, %v3377, 0.0
        %v3655 = vrot.slane %v3654, 4
        %v3656 = vadd.f32 %v3654, %v3655
        %v3657 = vrot.slane %v3656, 2
        %v3658 = vadd.f32 %v3656, %v3657
        %v3659 = vrot.slane %v3658, 1
        %v3660 = vadd.f32 %v3658, %v3659
        %v3661 = vsel %vm3646, %v3383, 0.0
        %v3662 = vrot.slane %v3661, 4
        %v3663 = vadd.f32 %v3661, %v3662
        %v3664 = vrot.slane %v3663, 2
        %v3665 = vadd.f32 %v3663, %v3664
        %v3666 = vrot.slane %v3665, 1
        %v3667 = vadd.f32 %v3665, %v3666
        %v3668 = vsel %vm3646, %v3389, 0.0
        %v3669 = vrot.slane %v3668, 4
        %v3670 = vadd.f32 %v3668, %v3669
        %v3671 = vrot.slane %v3670, 2
        %v3672 = vadd.f32 %v3670, %v3671
        %v3673 = vrot.slane %v3672, 1
        %v3674 = vadd.f32 %v3672, %v3673
        %v3675 = vsel %vm3646, %v3395, 0.0
        %v3676 = vrot.slane %v3675, 4
        %v3677 = vadd.f32 %v3675, %v3676
        %v3678 = vrot.slane %v3677, 2
        %v3679 = vadd.f32 %v3677, %v3678
        %v3680 = vrot.slane %v3679, 1
        %v3681 = vadd.f32 %v3679, %v3680
        %v3682 = vsel %vm3646, %v3401, 0.0
        %v3683 = vrot.slane %v3682, 4
        %v3684 = vadd.f32 %v3682, %v3683
        %v3685 = vrot.slane %v3684, 2
        %v3686 = vadd.f32 %v3684, %v3685
        %v3687 = vrot.slane %v3686, 1
        %v3688 = vadd.f32 %v3686, %v3687
        %v3689 = vsel %vm3646, %v3407, 0.0
        %v3690 = vrot.slane %v3689, 4
        %v3691 = vadd.f32 %v3689, %v3690
        %v3692 = vrot.slane %v3691, 2
        %v3693 = vadd.f32 %v3691, %v3692
        %v3694 = vrot.slane %v3693, 1
        %v3695 = vadd.f32 %v3693, %v3694
        %v3696 = vsel %vm3646, %v3413, 0.0
        %v3697 = vrot.slane %v3696, 4
        %v3698 = vadd.f32 %v3696, %v3697
        %v3699 = vrot.slane %v3698, 2
        %v3700 = vadd.f32 %v3698, %v3699
        %v3701 = vrot.slane %v3700, 1
        %v3702 = vadd.f32 %v3700, %v3701
        %v3703 = vsel %vm3646, %v3419, 0.0
        %v3704 = vrot.slane %v3703, 4
        %v3705 = vadd.f32 %v3703, %v3704
        %v3706 = vrot.slane %v3705, 2
        %v3707 = vadd.f32 %v3705, %v3706
        %v3708 = vrot.slane %v3707, 1
        %v3709 = vadd.f32 %v3707, %v3708
        %v3710 = vsel %vm3646, %v3425, 0.0
        %v3711 = vrot.slane %v3710, 4
        %v3712 = vadd.f32 %v3710, %v3711
        %v3713 = vrot.slane %v3712, 2
        %v3714 = vadd.f32 %v3712, %v3713
        %v3715 = vrot.slane %v3714, 1
        %v3716 = vadd.f32 %v3714, %v3715
        %v3717 = vsel %vm3646, %v3431, 0.0
        %v3718 = vrot.slane %v3717, 4
        %v3719 = vadd.f32 %v3717, %v3718
        %v3720 = vrot.slane %v3719, 2
        %v3721 = vadd.f32 %v3719, %v3720
        %v3722 = vrot.slane %v3721, 1
        %v3723 = vadd.f32 %v3721, %v3722
        %v3724 = vsel %vm3646, %v3437, 0.0
        %v3725 = vrot.slane %v3724, 4
        %v3726 = vadd.f32 %v3724, %v3725
        %v3727 = vrot.slane %v3726, 2
        %v3728 = vadd.f32 %v3726, %v3727
        %v3729 = vrot.slane %v3728, 1
        %v3730 = vadd.f32 %v3728, %v3729
        %v3731 = vsel %vm3646, %v3443, 0.0
        %v3732 = vrot.slane %v3731, 4
        %v3733 = vadd.f32 %v3731, %v3732
        %v3734 = vrot.slane %v3733, 2
        %v3735 = vadd.f32 %v3733, %v3734
        %v3736 = vrot.slane %v3735, 1
        %v3737 = vadd.f32 %v3735, %v3736
        %v3738 = vsel %vm3646, %v3449, 0.0
        %v3739 = vrot.slane %v3738, 4
        %v3740 = vadd.f32 %v3738, %v3739
        %v3741 = vrot.slane %v3740, 2
        %v3742 = vadd.f32 %v3740, %v3741
        %v3743 = vrot.slane %v3742, 1
        %v3744 = vadd.f32 %v3742, %v3743
        %v3745 = vsel %vm3646, %v3455, 0.0
        %v3746 = vrot.slane %v3745, 4
        %v3747 = vadd.f32 %v3745, %v3746
        %v3748 = vrot.slane %v3747, 2
        %v3749 = vadd.f32 %v3747, %v3748
        %v3750 = vrot.slane %v3749, 1
        %v3751 = vadd.f32 %v3749, %v3750
        %v3752 = vsel %vm3646, %v3461, 0.0
        %v3753 = vrot.slane %v3752, 4
        %v3754 = vadd.f32 %v3752, %v3753
        %v3755 = vrot.slane %v3754, 2
        %v3756 = vadd.f32 %v3754, %v3755
        %v3757 = vrot.slane %v3756, 1
        %v3758 = vadd.f32 %v3756, %v3757
        %v3759 = vsel %vm3646, %v3467, 0.0
        %v3760 = vrot.slane %v3759, 4
        %v3761 = vadd.f32 %v3759, %v3760
        %v3762 = vrot.slane %v3761, 2
        %v3763 = vadd.f32 %v3761, %v3762
        %v3764 = vrot.slane %v3763, 1
        %v3765 = vadd.f32 %v3763, %v3764
        %v3766 = vsel %vm3646, %v3473, 0.0
        %v3767 = vrot.slane %v3766, 4
        %v3768 = vadd.f32 %v3766, %v3767
        %v3769 = vrot.slane %v3768, 2
        %v3770 = vadd.f32 %v3768, %v3769
        %v3771 = vrot.slane %v3770, 1
        %v3772 = vadd.f32 %v3770, %v3771
        %v3773 = vsel %vm3646, %v3479, 0.0
        %v3774 = vrot.slane %v3773, 4
        %v3775 = vadd.f32 %v3773, %v3774
        %v3776 = vrot.slane %v3775, 2
        %v3777 = vadd.f32 %v3775, %v3776
        %v3778 = vrot.slane %v3777, 1
        %v3779 = vadd.f32 %v3777, %v3778
        %v3780 = vsel %vm3646, %v3485, 0.0
        %v3781 = vrot.slane %v3780, 4
        %v3782 = vadd.f32 %v3780, %v3781
        %v3783 = vrot.slane %v3782, 2
        %v3784 = vadd.f32 %v3782, %v3783
        %v3785 = vrot.slane %v3784, 1
        %v3786 = vadd.f32 %v3784, %v3785
        %v3787 = vsel %vm3646, %v3491, 0.0
        %v3788 = vrot.slane %v3787, 4
        %v3789 = vadd.f32 %v3787, %v3788
        %v3790 = vrot.slane %v3789, 2
        %v3791 = vadd.f32 %v3789, %v3790
        %v3792 = vrot.slane %v3791, 1
        %v3793 = vadd.f32 %v3791, %v3792
        %v3794 = vsel %vm3646, %v3497, 0.0
        %v3795 = vrot.slane %v3794, 4
        %v3796 = vadd.f32 %v3794, %v3795
        %v3797 = vrot.slane %v3796, 2
        %v3798 = vadd.f32 %v3796, %v3797
        %v3799 = vrot.slane %v3798, 1
        %v3800 = vadd.f32 %v3798, %v3799
        %v3801 = vsel %vm3646, %v3503, 0.0
        %v3802 = vrot.slane %v3801, 4
        %v3803 = vadd.f32 %v3801, %v3802
        %v3804 = vrot.slane %v3803, 2
        %v3805 = vadd.f32 %v3803, %v3804
        %v3806 = vrot.slane %v3805, 1
        %v3807 = vadd.f32 %v3805, %v3806
        %v3808 = vsel %vm3646, %v3509, 0.0
        %v3809 = vrot.slane %v3808, 4
        %v3810 = vadd.f32 %v3808, %v3809
        %v3811 = vrot.slane %v3810, 2
        %v3812 = vadd.f32 %v3810, %v3811
        %v3813 = vrot.slane %v3812, 1
        %v3814 = vadd.f32 %v3812, %v3813
        %v3815 = vsel %vm3646, %v3515, 0.0
        %v3816 = vrot.slane %v3815, 4
        %v3817 = vadd.f32 %v3815, %v3816
        %v3818 = vrot.slane %v3817, 2
        %v3819 = vadd.f32 %v3817, %v3818
        %v3820 = vrot.slane %v3819, 1
        %v3821 = vadd.f32 %v3819, %v3820
        %v3822 = vsel %vm3646, %v3521, 0.0
        %v3823 = vrot.slane %v3822, 4
        %v3824 = vadd.f32 %v3822, %v3823
        %v3825 = vrot.slane %v3824, 2
        %v3826 = vadd.f32 %v3824, %v3825
        %v3827 = vrot.slane %v3826, 1
        %v3828 = vadd.f32 %v3826, %v3827
        %v3829 = vsel %vm3646, %v3527, 0.0
        %v3830 = vrot.slane %v3829, 4
        %v3831 = vadd.f32 %v3829, %v3830
        %v3832 = vrot.slane %v3831, 2
        %v3833 = vadd.f32 %v3831, %v3832
        %v3834 = vrot.slane %v3833, 1
        %v3835 = vadd.f32 %v3833, %v3834
        %v3836 = vsel %vm3646, %v3533, 0.0
        %v3837 = vrot.slane %v3836, 4
        %v3838 = vadd.f32 %v3836, %v3837
        %v3839 = vrot.slane %v3838, 2
        %v3840 = vadd.f32 %v3838, %v3839
        %v3841 = vrot.slane %v3840, 1
        %v3842 = vadd.f32 %v3840, %v3841
        %v3843 = vsel %vm3646, %v3539, 0.0
        %v3844 = vrot.slane %v3843, 4
        %v3845 = vadd.f32 %v3843, %v3844
        %v3846 = vrot.slane %v3845, 2
        %v3847 = vadd.f32 %v3845, %v3846
        %v3848 = vrot.slane %v3847, 1
        %v3849 = vadd.f32 %v3847, %v3848
        %v3850 = vsel %vm3646, %v3545, 0.0
        %v3851 = vrot.slane %v3850, 4
        %v3852 = vadd.f32 %v3850, %v3851
        %v3853 = vrot.slane %v3852, 2
        %v3854 = vadd.f32 %v3852, %v3853
        %v3855 = vrot.slane %v3854, 1
        %v3856 = vadd.f32 %v3854, %v3855
        %v3857 = vsel %vm3646, %v3551, 0.0
        %v3858 = vrot.slane %v3857, 4
        %v3859 = vadd.f32 %v3857, %v3858
        %v3860 = vrot.slane %v3859, 2
        %v3861 = vadd.f32 %v3859, %v3860
        %v3862 = vrot.slane %v3861, 1
        %v3863 = vadd.f32 %v3861, %v3862
        %v3864 = vsel %vm3646, %v3557, 0.0
        %v3865 = vrot.slane %v3864, 4
        %v3866 = vadd.f32 %v3864, %v3865
        %v3867 = vrot.slane %v3866, 2
        %v3868 = vadd.f32 %v3866, %v3867
        %v3869 = vrot.slane %v3868, 1
        %v3870 = vadd.f32 %v3868, %v3869
        %v3871 = vsel %vm3646, %v3563, 0.0
        %v3872 = vrot.slane %v3871, 4
        %v3873 = vadd.f32 %v3871, %v3872
        %v3874 = vrot.slane %v3873, 2
        %v3875 = vadd.f32 %v3873, %v3874
        %v3876 = vrot.slane %v3875, 1
        %v3877 = vadd.f32 %v3875, %v3876
        %v3878 = vsel %vm3646, %v3569, 0.0
        %v3879 = vrot.slane %v3878, 4
        %v3880 = vadd.f32 %v3878, %v3879
        %v3881 = vrot.slane %v3880, 2
        %v3882 = vadd.f32 %v3880, %v3881
        %v3883 = vrot.slane %v3882, 1
        %v3884 = vadd.f32 %v3882, %v3883
        %v3885 = vsel %vm3646, %v3575, 0.0
        %v3886 = vrot.slane %v3885, 4
        %v3887 = vadd.f32 %v3885, %v3886
        %v3888 = vrot.slane %v3887, 2
        %v3889 = vadd.f32 %v3887, %v3888
        %v3890 = vrot.slane %v3889, 1
        %v3891 = vadd.f32 %v3889, %v3890
        %v3892 = vsel %vm3646, %v3581, 0.0
        %v3893 = vrot.slane %v3892, 4
        %v3894 = vadd.f32 %v3892, %v3893
        %v3895 = vrot.slane %v3894, 2
        %v3896 = vadd.f32 %v3894, %v3895
        %v3897 = vrot.slane %v3896, 1
        %v3898 = vadd.f32 %v3896, %v3897
        %v3899 = vsel %vm3646, %v3587, 0.0
        %v3900 = vrot.slane %v3899, 4
        %v3901 = vadd.f32 %v3899, %v3900
        %v3902 = vrot.slane %v3901, 2
        %v3903 = vadd.f32 %v3901, %v3902
        %v3904 = vrot.slane %v3903, 1
        %v3905 = vadd.f32 %v3903, %v3904
        %v3906 = vsel %vm3646, %v3593, 0.0
        %v3907 = vrot.slane %v3906, 4
        %v3908 = vadd.f32 %v3906, %v3907
        %v3909 = vrot.slane %v3908, 2
        %v3910 = vadd.f32 %v3908, %v3909
        %v3911 = vrot.slane %v3910, 1
        %v3912 = vadd.f32 %v3910, %v3911
        %v3913 = vsel %vm3646, %v3599, 0.0
        %v3914 = vrot.slane %v3913, 4
        %v3915 = vadd.f32 %v3913, %v3914
        %v3916 = vrot.slane %v3915, 2
        %v3917 = vadd.f32 %v3915, %v3916
        %v3918 = vrot.slane %v3917, 1
        %v3919 = vadd.f32 %v3917, %v3918
        %v3920 = vsel %vm3646, %v3605, 0.0
        %v3921 = vrot.slane %v3920, 4
        %v3922 = vadd.f32 %v3920, %v3921
        %v3923 = vrot.slane %v3922, 2
        %v3924 = vadd.f32 %v3922, %v3923
        %v3925 = vrot.slane %v3924, 1
        %v3926 = vadd.f32 %v3924, %v3925
        %s3927 = scalar_lea.vmem [#allocation3], 512
        %v3928 = vld [vmem:[%s3927] sm:$0xff]
        %v3929 = vld [vmem:[%s3927 + $0x8] sm:$0xff]
        %v3930 = vld [vmem:[%s3927 + $0x10] sm:$0xff]
        %v3931 = vld [vmem:[%s3927 + $0x18] sm:$0xff]
        %v3932 = vld [vmem:[%s3927 + $0x20] sm:$0xff]
        %v3933 = vld [vmem:[%s3927 + $0x28] sm:$0xff]
        %v3934 = vld [vmem:[%s3927 + $0x30] sm:$0xff]
        %v3935 = vld [vmem:[%s3927 + $0x38] sm:$0xff]
        %v3936 = vld [vmem:[%s3927 + $0x40] sm:$0xff]
        %v3937 = vld [vmem:[%s3927 + $0x48] sm:$0xff]
        %v3938 = vld [vmem:[%s3927 + $0x50] sm:$0xff]
        %v3939 = vld [vmem:[%s3927 + $0x58] sm:$0xff]
        %v3940 = vld [vmem:[%s3927 + $0x60] sm:$0xff]
        %v3941 = vld [vmem:[%s3927 + $0x68] sm:$0xff]
        %v3942 = vld [vmem:[%s3927 + $0x70] sm:$0xff]
        %v3943 = vld [vmem:[%s3927 + $0x78] sm:$0xff]
        %s3944 = scalar_lea.vmem [#allocation3], 640
        %v3945 = vld [vmem:[%s3944] sm:$0xff]
        %v3946 = vld [vmem:[%s3944 + $0x8] sm:$0xff]
        %v3947 = vld [vmem:[%s3944 + $0x10] sm:$0xff]
        %v3948 = vld [vmem:[%s3944 + $0x18] sm:$0xff]
        %v3949 = vld [vmem:[%s3944 + $0x20] sm:$0xff]
        %v3950 = vld [vmem:[%s3944 + $0x28] sm:$0xff]
        %v3951 = vld [vmem:[%s3944 + $0x30] sm:$0xff]
        %v3952 = vld [vmem:[%s3944 + $0x38] sm:$0xff]
        %v3953 = vld [vmem:[%s3944 + $0x40] sm:$0xff]
        %v3954 = vld [vmem:[%s3944 + $0x48] sm:$0xff]
        %v3955 = vld [vmem:[%s3944 + $0x50] sm:$0xff]
        %v3956 = vld [vmem:[%s3944 + $0x58] sm:$0xff]
        %v3957 = vld [vmem:[%s3944 + $0x60] sm:$0xff]
        %v3958 = vld [vmem:[%s3944 + $0x68] sm:$0xff]
        %v3959 = vld [vmem:[%s3944 + $0x70] sm:$0xff]
        %v3960 = vld [vmem:[%s3944 + $0x78] sm:$0xff]
        %vm4001 = vcmask 1041409
        %v4002 = vsel %vm4001, %v3660, %v3653
        %vm4003 = vcmask 1042434
        %v4004 = vsel %vm4003, %v3667, %v4002
        %vm4005 = vcmask 1043459
        %v4006 = vsel %vm4005, %v3674, %v4004
        %vm4007 = vcmask 1044484
        %v4008 = vsel %vm4007, %v3681, %v4006
        %vm4009 = vcmask 1045509
        %v4010 = vsel %vm4009, %v3688, %v4008
        %vm4011 = vcmask 1046534
        %v4012 = vsel %vm4011, %v3695, %v4010
        %vm4013 = vcmask 1047559
        %v4014 = vsel %vm4013, %v3702, %v4012
        %v4015 = vsel %vm4001, %v3716, %v3709
        %v4016 = vsel %vm4003, %v3723, %v4015
        %v4017 = vsel %vm4005, %v3730, %v4016
        %v4018 = vsel %vm4007, %v3737, %v4017
        %v4019 = vsel %vm4009, %v3744, %v4018
        %v4020 = vsel %vm4011, %v3751, %v4019
        %v4021 = vsel %vm4013, %v3758, %v4020
        %v4022 = vsel %vm4001, %v3772, %v3765
        %v4023 = vsel %vm4003, %v3779, %v4022
        %v4024 = vsel %vm4005, %v3786, %v4023
        %v4025 = vsel %vm4007, %v3793, %v4024
        %v4026 = vsel %vm4009, %v3800, %v4025
        %v4027 = vsel %vm4011, %v3807, %v4026
        %v4028 = vsel %vm4013, %v3814, %v4027
        %v4029 = vsel %vm4001, %v3828, %v3821
        %v4030 = vsel %vm4003, %v3835, %v4029
        %v4031 = vsel %vm4005, %v3842, %v4030
        %v4032 = vsel %vm4007, %v3849, %v4031
        %v4033 = vsel %vm4009, %v3856, %v4032
        %v4034 = vsel %vm4011, %v3863, %v4033
        %v4035 = vsel %vm4013, %v3870, %v4034
        %v4036 = vsel %vm4001, %v3884, %v3877
        %v4037 = vsel %vm4003, %v3891, %v4036
        %v4038 = vsel %vm4005, %v3898, %v4037
        %v4039 = vsel %vm4007, %v3905, %v4038
        %v4040 = vsel %vm4009, %v3912, %v4039
        %v4041 = vsel %vm4011, %v3919, %v4040
        %v4042 = vsel %vm4013, %v3926, %v4041
        %4048 = vmatpush.msra.mxu0 %v3960
        %4049 = vmatpush.msra.mxu0 %v3959
        %4050 = vmatpush.msra.mxu0 %v3958
        %4051 = vmatpush.msra.mxu0 %v3957
        %4052 = vmatpush.msra.mxu0 %v3956
        %4053 = vmatpush.msra.mxu0 %v3955
        %4054 = vmatpush.msra.mxu0 %v3954
        %4055 = vmatpush.msra.mxu0 %v3953
        %4056 = vmatpush.msra.mxu0 %v3952
        %4057 = vmatpush.msra.mxu0 %v3951
        %4058 = vmatpush.msra.mxu0 %v3950
        %4059 = vmatpush.msra.mxu0 %v3949
        %4060 = vmatpush.msra.mxu0 %v3948
        %4061 = vmatpush.msra.mxu0 %v3947
        %4062 = vmatpush.msra.mxu0 %v3946
        %4063 = vmatpush.msra.mxu0 %v3945
        %4064 = vmatmul.f32.gmra.mxu0 %v4014
        %v4065 = vpop.f32.mrf.mxu0
        %v4066 = vadd.f32 0.0, %v4065
        %4067 = vmatmul.f32.gmra.mxu0 %v4021
        %v4068 = vpop.f32.mrf.mxu0
        %v4069 = vadd.f32 0.0, %v4068
        %4070 = vmatmul.f32.gmra.mxu0 %v4028
        %v4071 = vpop.f32.mrf.mxu0
        %v4072 = vadd.f32 0.0, %v4071
        %4073 = vmatmul.f32.gmra.mxu0 %v4035
        %v4074 = vpop.f32.mrf.mxu0
        %v4075 = vadd.f32 0.0, %v4074
        %4076 = vmatmul.f32.gmra.mxu0 %v4042
        %v4077 = vpop.f32.mrf.mxu0
        %v4078 = vadd.f32 0.0, %v4077
        %4079 = vdwg.mxu0
        %4080 = vst [vmem:[#allocation1] ss:$9 sm:$0xff] %v414
        %s4081 = scalar_lea.vmem [#allocation1], 1
        %4082 = vst [vmem:[%s4081] ss:$9 sm:$0xff] %v430
        %s4083 = scalar_lea.vmem [#allocation1], 2
        %4084 = vst [vmem:[%s4083] ss:$9 sm:$0xff] %v431
        %s4085 = scalar_lea.vmem [#allocation1], 3
        %4086 = vst [vmem:[%s4085] ss:$9 sm:$0xff] %v432
        %s4087 = scalar_lea.vmem [#allocation1], 4
        %4088 = vst [vmem:[%s4087] ss:$9 sm:$0xff] %v433
        %s4089 = scalar_lea.vmem [#allocation1], 5
        %4090 = vst [vmem:[%s4089] ss:$9 sm:$0xff] %v415
        %s4091 = scalar_lea.vmem [#allocation1], 6
        %4092 = vst [vmem:[%s4091] ss:$9 sm:$0xff] %v434
        %s4093 = scalar_lea.vmem [#allocation1], 7
        %4094 = vst [vmem:[%s4093] ss:$9 sm:$0xff] %v435
        %v4095 = vld [vmem:[#allocation1] sm:$0xff]
        %4096 = vst [vmem:[#allocation1] ss:$9 sm:$0xff] %v436
        %4097 = vst [vmem:[%s4081] ss:$9 sm:$0xff] %v437
        %4098 = vst [vmem:[%s4083] ss:$9 sm:$0xff] %v416
        %4099 = vst [vmem:[%s4085] ss:$9 sm:$0xff] %v438
        %4100 = vst [vmem:[%s4087] ss:$9 sm:$0xff] %v439
        %4101 = vst [vmem:[%s4089] ss:$9 sm:$0xff] %v440
        %4102 = vst [vmem:[%s4091] ss:$9 sm:$0xff] %v441
        %4103 = vst [vmem:[%s4093] ss:$9 sm:$0xff] %v417
        %v4104 = vld [vmem:[#allocation1] sm:$0xff]
        %4105 = vst [vmem:[#allocation1] ss:$9 sm:$0xff] %v442
        %4106 = vst [vmem:[%s4081] ss:$9 sm:$0xff] %v443
        %4107 = vst [vmem:[%s4083] ss:$9 sm:$0xff] %v444
        %4108 = vst [vmem:[%s4085] ss:$9 sm:$0xff] %v445
        %4109 = vst [vmem:[%s4087] ss:$9 sm:$0xff] %v418
        %4110 = vst [vmem:[%s4089] ss:$9 sm:$0xff] %v446
        %4111 = vst [vmem:[%s4091] ss:$9 sm:$0xff] %v447
        %4112 = vst [vmem:[%s4093] ss:$9 sm:$0xff] %v448
        %v4113 = vld [vmem:[#allocation1] sm:$0xff]
        %4114 = vst [vmem:[#allocation1] ss:$9 sm:$0xff] %v449
        %4115 = vst [vmem:[%s4081] ss:$9 sm:$0xff] %v419
        %4116 = vst [vmem:[%s4083] ss:$9 sm:$0xff] %v450
        %4117 = vst [vmem:[%s4085] ss:$9 sm:$0xff] %v451
        %4118 = vst [vmem:[%s4087] ss:$9 sm:$0xff] %v452
        %4119 = vst [vmem:[%s4089] ss:$9 sm:$0xff] %v453
        %4120 = vst [vmem:[%s4091] ss:$9 sm:$0xff] %v420
        %4121 = vst [vmem:[%s4093] ss:$9 sm:$0xff] %v454
        %v4122 = vld [vmem:[#allocation1] sm:$0xff]
        %4123 = vst [vmem:[#allocation1] ss:$9 sm:$0xff] %v455
        %4124 = vst [vmem:[%s4081] ss:$9 sm:$0xff] %v456
        %4125 = vst [vmem:[%s4083] ss:$9 sm:$0xff] %v457
        %4126 = vst [vmem:[%s4085] ss:$9 sm:$0xff] %v421
        %4127 = vst [vmem:[%s4087] ss:$9 sm:$0xff] %v458
        %4128 = vst [vmem:[%s4089] ss:$9 sm:$0xff] %v459
        %4129 = vst [vmem:[%s4091] ss:$9 sm:$0xff] %v460
        %4130 = vst [vmem:[%s4093] ss:$9 sm:$0xff] %v461
        %v4131 = vld [vmem:[#allocation1] sm:$0xff]
        %4137 = vmatpush.msra.mxu0 %v3943
        %4138 = vmatpush.msra.mxu0 %v3942
        %4139 = vmatpush.msra.mxu0 %v3941
        %4140 = vmatpush.msra.mxu0 %v3940
        %4141 = vmatpush.msra.mxu0 %v3939
        %4142 = vmatpush.msra.mxu0 %v3938
        %4143 = vmatpush.msra.mxu0 %v3937
        %4144 = vmatpush.msra.mxu0 %v3936
        %4145 = vmatpush.msra.mxu0 %v3935
        %4146 = vmatpush.msra.mxu0 %v3934
        %4147 = vmatpush.msra.mxu0 %v3933
        %4148 = vmatpush.msra.mxu0 %v3932
        %4149 = vmatpush.msra.mxu0 %v3931
        %4150 = vmatpush.msra.mxu0 %v3930
        %4151 = vmatpush.msra.mxu0 %v3929
        %4152 = vmatpush.msra.mxu0 %v3928
        %4153 = vmatmul.f32.gmra.mxu0 %v4095
        %v4154 = vpop.f32.mrf.mxu0
        %v4155 = vadd.f32 %v4066, %v4154
        %4156 = vmatmul.f32.gmra.mxu0 %v4104
        %v4157 = vpop.f32.mrf.mxu0
        %v4158 = vadd.f32 %v4069, %v4157
        %4159 = vmatmul.f32.gmra.mxu0 %v4113
        %v4160 = vpop.f32.mrf.mxu0
        %v4161 = vadd.f32 %v4072, %v4160
        %4162 = vmatmul.f32.gmra.mxu0 %v4122
        %v4163 = vpop.f32.mrf.mxu0
        %v4164 = vadd.f32 %v4075, %v4163
        %4165 = vmatmul.f32.gmra.mxu0 %v4131
        %v4166 = vpop.f32.mrf.mxu0
        %v4167 = vadd.f32 %v4078, %v4166
        %4168 = vdwg.mxu0
        %v4169 = vperm.slane %v235, 5
        %v4170 = vadd.f32 %v4155, %v4169
        %v4171 = vadd.f32 %v4158, %v4169
        %v4172 = vadd.f32 %v4161, %v4169
        %v4173 = vadd.f32 %v4164, %v4169
        %v4174 = vadd.f32 %v4167, %v4169
        %v4175 = vmax.f32 %v4170, 0.0
        %v4176 = vmax.f32 %v4171, 0.0
        %v4177 = vmax.f32 %v4172, 0.0
        %v4178 = vmax.f32 %v4173, 0.0
        %v4179 = vmax.f32 %v4174, 0.0
        %s4180 = scalar_lea.vmem [#allocation3], 768
        %v4181 = vld [vmem:[%s4180] sm:$0xff]
        %v4182 = vld [vmem:[%s4180 + $0x8] sm:$0xff]
        %v4183 = vld [vmem:[%s4180 + $0x10] sm:$0xff]
        %v4184 = vld [vmem:[%s4180 + $0x18] sm:$0xff]
        %v4185 = vld [vmem:[%s4180 + $0x20] sm:$0xff]
        %v4186 = vld [vmem:[%s4180 + $0x28] sm:$0xff]
        %v4187 = vld [vmem:[%s4180 + $0x30] sm:$0xff]
        %v4188 = vld [vmem:[%s4180 + $0x38] sm:$0xff]
        %v4189 = vld [vmem:[%s4180 + $0x40] sm:$0xff]
        %v4190 = vld [vmem:[%s4180 + $0x48] sm:$0xff]
        %v4191 = vld [vmem:[%s4180 + $0x50] sm:$0xff]
        %v4192 = vld [vmem:[%s4180 + $0x58] sm:$0xff]
        %v4193 = vld [vmem:[%s4180 + $0x60] sm:$0xff]
        %v4194 = vld [vmem:[%s4180 + $0x68] sm:$0xff]
        %v4195 = vld [vmem:[%s4180 + $0x70] sm:$0xff]
        %v4196 = vld [vmem:[%s4180 + $0x78] sm:$0xff]
        %v4197 = vperm.slane %v235, 6
        %4198 = vmatpush.msra.mxu0 %v4196
        %4199 = vmatpush.msra.mxu0 %v4195
        %4200 = vmatpush.msra.mxu0 %v4194
        %4201 = vmatpush.msra.mxu0 %v4193
        %4202 = vmatpush.msra.mxu0 %v4192
        %4203 = vmatpush.msra.mxu0 %v4191
        %4204 = vmatpush.msra.mxu0 %v4190
        %4205 = vmatpush.msra.mxu0 %v4189
        %4206 = vmatpush.msra.mxu0 %v4188
        %4207 = vmatpush.msra.mxu0 %v4187
        %4208 = vmatpush.msra.mxu0 %v4186
        %4209 = vmatpush.msra.mxu0 %v4185
        %4210 = vmatpush.msra.mxu0 %v4184
        %4211 = vmatpush.msra.mxu0 %v4183
        %4212 = vmatpush.msra.mxu0 %v4182
        %4213 = vmatpush.msra.mxu0 %v4181
        %4214 = vmatmul.f32.gmra.mxu0 %v4175
        %v4215 = vpop.f32.mrf.mxu0
        %v4216 = vadd.f32 %v4197, %v4215
        %4217 = vmatmul.f32.gmra.mxu0 %v4176
        %v4218 = vpop.f32.mrf.mxu0
        %v4219 = vadd.f32 %v4197, %v4218
        %4220 = vmatmul.f32.gmra.mxu0 %v4177
        %v4221 = vpop.f32.mrf.mxu0
        %v4222 = vadd.f32 %v4197, %v4221
        %4223 = vmatmul.f32.gmra.mxu0 %v4178
        %v4224 = vpop.f32.mrf.mxu0
        %v4225 = vadd.f32 %v4197, %v4224
        %4226 = vmatmul.f32.gmra.mxu0 %v4179
        %v4227 = vpop.f32.mrf.mxu0
        %v4228 = vadd.f32 %v4197, %v4227
        %4229 = vdwg.mxu0
        %4230 = vadd.xlane.f32.xlu0 %v4216
        %v4231 = vpop.xlane.xlu0 %4230
        %4232 = vadd.xlane.f32.xlu0 %v4219
        %v4233 = vpop.xlane.xlu0 %4232
        %4234 = vadd.xlane.f32.xlu0 %v4222
        %v4235 = vpop.xlane.xlu0 %4234
        %4236 = vadd.xlane.f32.xlu0 %v4225
        %v4237 = vpop.xlane.xlu0 %4236
        %4238 = vadd.xlane.f32.xlu0 %v4228
        %v4239 = vpop.xlane.xlu0 %4238
        %v4240 = vmul.f32 %v4231, 0.03125
        %v4241 = vmul.f32 %v4233, 0.03125
        %v4242 = vmul.f32 %v4235, 0.03125
        %v4243 = vmul.f32 %v4237, 0.03125
        %v4244 = vmul.f32 %v4239, 0.03125
        %v4245 = vsub.f32 %v4216, %v4240
        %v4246 = vsub.f32 %v4219, %v4241
        %v4247 = vsub.f32 %v4222, %v4242
        %v4248 = vsub.f32 %v4225, %v4243
        %v4249 = vsub.f32 %v4228, %v4244
        %v4250 = vmul.f32 %v4245, %v241
        %v4251 = vmul.f32 %v4246, %v241
        %v4252 = vmul.f32 %v4247, %v241
        %v4253 = vmul.f32 %v4248, %v241
        %v4254 = vmul.f32 %v4249, %v241
        %v4255 = vmul.f32 %v4250, %v4250
        %v4256 = vmul.f32 %v4251, %v4251
        %v4257 = vmul.f32 %v4252, %v4252
        %v4258 = vmul.f32 %v4253, %v4253
        %v4259 = vmul.f32 %v4254, %v4254
        %4260 = vadd.xlane.f32.xlu0 %v4255
        %v4261 = vpop.xlane.xlu0 %4260
        %4262 = vadd.xlane.f32.xlu0 %v4256
        %v4263 = vpop.xlane.xlu0 %4262
        %4264 = vadd.xlane.f32.xlu0 %v4257
        %v4265 = vpop.xlane.xlu0 %4264
        %4266 = vadd.xlane.f32.xlu0 %v4258
        %v4267 = vpop.xlane.xlu0 %4266
        %4268 = vadd.xlane.f32.xlu0 %v4259
        %v4269 = vpop.xlane.xlu0 %4268
        %v4270 = vmul.f32 %v4261, 0.03125
        %v4271 = vmul.f32 %v4263, 0.03125
        %v4272 = vmul.f32 %v4265, 0.03125
        %v4273 = vmul.f32 %v4267, 0.03125
        %v4274 = vmul.f32 %v4269, 0.03125
        %v4275 = vadd.f32 %v4270, 1e-05
        %v4276 = vadd.f32 %v4271, 1e-05
        %v4277 = vadd.f32 %v4272, 1e-05
        %v4278 = vadd.f32 %v4273, 1e-05
        %v4279 = vadd.f32 %v4274, 1e-05
        %v4280 = vrsqrt.pop %v4275
        %v4281 = vmul.f32 %v4280, %v4275
        %v4282 = vmul.f32 %v4281, %v4280
        %v4283 = vmul.f32 0.5, %v4282
        %v4284 = vsub.f32 1.5, %v4283
        %v4285 = vmul.f32 %v4280, %v4284
        %vm4286 = vweird.f32 %v4275
        %vm4287 = vweird.f32 %v4280
        %vm4288 = vmor %vm4286, %vm4287
        %v4289 = vsel %vm4288, %v4280, %v4285
        %v4290 = vrsqrt.pop %v4276
        %v4291 = vmul.f32 %v4290, %v4276
        %v4292 = vmul.f32 %v4291, %v4290
        %v4293 = vmul.f32 0.5, %v4292
        %v4294 = vsub.f32 1.5, %v4293
        %v4295 = vmul.f32 %v4290, %v4294
        %vm4296 = vweird.f32 %v4276
        %vm4297 = vweird.f32 %v4290
        %vm4298 = vmor %vm4296, %vm4297
        %v4299 = vsel %vm4298, %v4290, %v4295
        %v4300 = vrsqrt.pop %v4277
        %v4301 = vmul.f32 %v4300, %v4277
        %v4302 = vmul.f32 %v4301, %v4300
        %v4303 = vmul.f32 0.5, %v4302
        %v4304 = vsub.f32 1.5, %v4303
        %v4305 = vmul.f32 %v4300, %v4304
        %vm4306 = vweird.f32 %v4277
        %vm4307 = vweird.f32 %v4300
        %vm4308 = vmor %vm4306, %vm4307
        %v4309 = vsel %vm4308, %v4300, %v4305
        %v4310 = vrsqrt.pop %v4278
        %v4311 = vmul.f32 %v4310, %v4278
        %v4312 = vmul.f32 %v4311, %v4310
        %v4313 = vmul.f32 0.5, %v4312
        %v4314 = vsub.f32 1.5, %v4313
        %v4315 = vmul.f32 %v4310, %v4314
        %vm4316 = vweird.f32 %v4278
        %vm4317 = vweird.f32 %v4310
        %vm4318 = vmor %vm4316, %vm4317
        %v4319 = vsel %vm4318, %v4310, %v4315
        %v4320 = vrsqrt.pop %v4279
        %v4321 = vmul.f32 %v4320, %v4279
        %v4322 = vmul.f32 %v4321, %v4320
        %v4323 = vmul.f32 0.5, %v4322
        %v4324 = vsub.f32 1.5, %v4323
        %v4325 = vmul.f32 %v4320, %v4324
        %vm4326 = vweird.f32 %v4279
        %vm4327 = vweird.f32 %v4320
        %vm4328 = vmor %vm4326, %vm4327
        %v4329 = vsel %vm4328, %v4320, %v4325
        %v4330 = vmul.f32 %v4250, %v4289
        %v4331 = vmul.f32 %v4251, %v4299
        %v4332 = vmul.f32 %v4252, %v4309
        %v4333 = vmul.f32 %v4253, %v4319
        %v4334 = vmul.f32 %v4254, %v4329
        %v4335 = vperm.slane %v235, 7
        %v4336 = vmul.f32 %v4330, %v4335
        %v4337 = vmul.f32 %v4331, %v4335
        %v4338 = vmul.f32 %v4332, %v4335
        %v4339 = vmul.f32 %v4333, %v4335
        %v4340 = vmul.f32 %v4334, %v4335
        %v4341 = vperm.slane %v236, 0
        %v4342 = vadd.f32 %v4336, %v4341
        %v4343 = vadd.f32 %v4337, %v4341
        %v4344 = vadd.f32 %v4338, %v4341
        %v4345 = vadd.f32 %v4339, %v4341
        %v4346 = vadd.f32 %v4340, %v4341
        %v4347 = vmax.f32 %v4342, 0.0
        %v4348 = vmax.f32 %v4343, 0.0
        %v4349 = vmax.f32 %v4344, 0.0
        %v4350 = vmax.f32 %v4345, 0.0
        %v4351 = vmax.f32 %v4346, 0.0
        %s4352 = scalar_lea.vmem [#allocation3], 896
        %v4353 = vld [vmem:[%s4352] sm:$0xff]
        %v4354 = vld [vmem:[%s4352 + $0x8] sm:$0xff]
        %v4355 = vld [vmem:[%s4352 + $0x10] sm:$0xff]
        %v4356 = vld [vmem:[%s4352 + $0x18] sm:$0xff]
        %v4357 = vld [vmem:[%s4352 + $0x20] sm:$0xff]
        %v4358 = vld [vmem:[%s4352 + $0x28] sm:$0xff]
        %v4359 = vld [vmem:[%s4352 + $0x30] sm:$0xff]
        %v4360 = vld [vmem:[%s4352 + $0x38] sm:$0xff]
        %v4361 = vld [vmem:[%s4352 + $0x40] sm:$0xff]
        %v4362 = vld [vmem:[%s4352 + $0x48] sm:$0xff]
        %v4363 = vld [vmem:[%s4352 + $0x50] sm:$0xff]
        %v4364 = vld [vmem:[%s4352 + $0x58] sm:$0xff]
        %v4365 = vld [vmem:[%s4352 + $0x60] sm:$0xff]
        %v4366 = vld [vmem:[%s4352 + $0x68] sm:$0xff]
        %v4367 = vld [vmem:[%s4352 + $0x70] sm:$0xff]
        %v4368 = vld [vmem:[%s4352 + $0x78] sm:$0xff]
        %v4369 = vperm.slane %v236, 1
        %4370 = vmatpush.msra.mxu0 %v4368
        %4371 = vmatpush.msra.mxu0 %v4367
        %4372 = vmatpush.msra.mxu0 %v4366
        %4373 = vmatpush.msra.mxu0 %v4365
        %4374 = vmatpush.msra.mxu0 %v4364
        %4375 = vmatpush.msra.mxu0 %v4363
        %4376 = vmatpush.msra.mxu0 %v4362
        %4377 = vmatpush.msra.mxu0 %v4361
        %4378 = vmatpush.msra.mxu0 %v4360
        %4379 = vmatpush.msra.mxu0 %v4359
        %4380 = vmatpush.msra.mxu0 %v4358
        %4381 = vmatpush.msra.mxu0 %v4357
        %4382 = vmatpush.msra.mxu0 %v4356
        %4383 = vmatpush.msra.mxu0 %v4355
        %4384 = vmatpush.msra.mxu0 %v4354
        %4385 = vmatpush.msra.mxu0 %v4353
        %4386 = vmatmul.f32.gmra.mxu0 %v4347
        %v4387 = vpop.f32.mrf.mxu0
        %v4388 = vadd.f32 %v4369, %v4387
        %4389 = vmatmul.f32.gmra.mxu0 %v4348
        %v4390 = vpop.f32.mrf.mxu0
        %v4391 = vadd.f32 %v4369, %v4390
        %4392 = vmatmul.f32.gmra.mxu0 %v4349
        %v4393 = vpop.f32.mrf.mxu0
        %v4394 = vadd.f32 %v4369, %v4393
        %4395 = vmatmul.f32.gmra.mxu0 %v4350
        %v4396 = vpop.f32.mrf.mxu0
        %v4397 = vadd.f32 %v4369, %v4396
        %4398 = vmatmul.f32.gmra.mxu0 %v4351
        %v4399 = vpop.f32.mrf.mxu0
        %v4400 = vadd.f32 %v4369, %v4399
        %4401 = vdwg.mxu0
        %v4407 = vrot.slane %v4388, 1
        %v4408 = vrot.slane %v4388, 2
        %v4409 = vrot.slane %v4388, 3
        %v4410 = vrot.slane %v4388, 4
        %v4411 = vrot.slane %v4388, 5
        %v4412 = vrot.slane %v4388, 6
        %v4413 = vrot.slane %v4388, 7
        %v4414 = vrot.slane %v4391, 1
        %v4415 = vrot.slane %v4391, 2
        %v4416 = vrot.slane %v4391, 3
        %v4417 = vrot.slane %v4391, 4
        %v4418 = vrot.slane %v4391, 5
        %v4419 = vrot.slane %v4391, 6
        %v4420 = vrot.slane %v4391, 7
        %v4421 = vrot.slane %v4394, 1
        %v4422 = vrot.slane %v4394, 2
        %v4423 = vrot.slane %v4394, 3
        %v4424 = vrot.slane %v4394, 4
        %v4425 = vrot.slane %v4394, 5
        %v4426 = vrot.slane %v4394, 6
        %v4427 = vrot.slane %v4394, 7
        %v4428 = vrot.slane %v4397, 1
        %v4429 = vrot.slane %v4397, 2
        %v4430 = vrot.slane %v4397, 3
        %v4431 = vrot.slane %v4397, 4
        %v4432 = vrot.slane %v4397, 5
        %v4433 = vrot.slane %v4397, 6
        %v4434 = vrot.slane %v4397, 7
        %v4435 = vrot.slane %v4400, 1
        %v4436 = vrot.slane %v4400, 2
        %v4437 = vrot.slane %v4400, 3
        %v4438 = vrot.slane %v4400, 4
        %v4439 = vrot.slane %v4400, 5
        %v4440 = vrot.slane %v4400, 6
        %v4441 = vrot.slane %v4400, 7
        %4442 = vst [vmem:[#allocation1] ss:$9 sm:$0xff] %v4388
        %s4443 = scalar_lea.vmem [#allocation1], 1
        %4444 = vst [vmem:[%s4443] ss:$9 sm:$0xff] %v4407
        %s4445 = scalar_lea.vmem [#allocation1], 2
        %4446 = vst [vmem:[%s4445] ss:$9 sm:$0xff] %v4408
        %s4447 = scalar_lea.vmem [#allocation1], 3
        %4448 = vst [vmem:[%s4447] ss:$9 sm:$0xff] %v4409
        %s4449 = scalar_lea.vmem [#allocation1], 4
        %4450 = vst [vmem:[%s4449] ss:$9 sm:$0xff] %v4410
        %v4451 = vld [vmem:[#allocation1] sm:$0xff]
        %4452 = vst [vmem:[#allocation1] ss:$9 sm:$0xff] %v4411
        %4453 = vst [vmem:[%s4443] ss:$9 sm:$0xff] %v4412
        %4454 = vst [vmem:[%s4445] ss:$9 sm:$0xff] %v4413
        %4455 = vst [vmem:[%s4447] ss:$9 sm:$0xff] %v4391
        %4456 = vst [vmem:[%s4449] ss:$9 sm:$0xff] %v4414
        %v4457 = vld [vmem:[#allocation1] sm:$0xff]
        %4458 = vst [vmem:[#allocation1] ss:$9 sm:$0xff] %v4415
        %4459 = vst [vmem:[%s4443] ss:$9 sm:$0xff] %v4416
        %4460 = vst [vmem:[%s4445] ss:$9 sm:$0xff] %v4417
        %4461 = vst [vmem:[%s4447] ss:$9 sm:$0xff] %v4418
        %4462 = vst [vmem:[%s4449] ss:$9 sm:$0xff] %v4419
        %v4463 = vld [vmem:[#allocation1] sm:$0xff]
        %4464 = vst [vmem:[#allocation1] ss:$9 sm:$0xff] %v4420
        %4465 = vst [vmem:[%s4443] ss:$9 sm:$0xff] %v4394
        %4466 = vst [vmem:[%s4445] ss:$9 sm:$0xff] %v4421
        %4467 = vst [vmem:[%s4447] ss:$9 sm:$0xff] %v4422
        %4468 = vst [vmem:[%s4449] ss:$9 sm:$0xff] %v4423
        %v4469 = vld [vmem:[#allocation1] sm:$0xff]
        %4470 = vst [vmem:[#allocation1] ss:$9 sm:$0xff] %v4424
        %4471 = vst [vmem:[%s4443] ss:$9 sm:$0xff] %v4425
        %4472 = vst [vmem:[%s4445] ss:$9 sm:$0xff] %v4426
        %4473 = vst [vmem:[%s4447] ss:$9 sm:$0xff] %v4427
        %4474 = vst [vmem:[%s4449] ss:$9 sm:$0xff] %v4397
        %v4475 = vld [vmem:[#allocation1] sm:$0xff]
        %4476 = vst [vmem:[#allocation1] ss:$9 sm:$0xff] %v4428
        %4477 = vst [vmem:[%s4443] ss:$9 sm:$0xff] %v4429
        %4478 = vst [vmem:[%s4445] ss:$9 sm:$0xff] %v4430
        %4479 = vst [vmem:[%s4447] ss:$9 sm:$0xff] %v4431
        %4480 = vst [vmem:[%s4449] ss:$9 sm:$0xff] %v4432
        %v4481 = vld [vmem:[#allocation1] sm:$0xff]
        %4482 = vst [vmem:[#allocation1] ss:$9 sm:$0xff] %v4433
        %4483 = vst [vmem:[%s4443] ss:$9 sm:$0xff] %v4434
        %4484 = vst [vmem:[%s4445] ss:$9 sm:$0xff] %v4400
        %4485 = vst [vmem:[%s4447] ss:$9 sm:$0xff] %v4435
        %4486 = vst [vmem:[%s4449] ss:$9 sm:$0xff] %v4436
        %v4487 = vld [vmem:[#allocation1] sm:$0xff]
        %4488 = vst [vmem:[#allocation1] ss:$9 sm:$0xff] %v4437
        %4489 = vst [vmem:[%s4443] ss:$9 sm:$0xff] %v4438
        %4490 = vst [vmem:[%s4445] ss:$9 sm:$0xff] %v4439
        %4491 = vst [vmem:[%s4447] ss:$9 sm:$0xff] %v4440
        %4492 = vst [vmem:[%s4449] ss:$9 sm:$0xff] %v4441
        %v4493 = vld [vmem:[#allocation1] sm:$0xff]
        %4502 = vst.msk [vmem:[%s233] sm:$0x1f] %vm364, %v4451
        %4503 = vst.msk [vmem:[%s233 + $0x8] sm:$0x1f] %vm364, %v4457
        %4504 = vst.msk [vmem:[%s233 + $0x10] sm:$0x1f] %vm364, %v4463
        %4505 = vst.msk [vmem:[%s233 + $0x18] sm:$0x1f] %vm364, %v4469
        %4506 = vst.msk [vmem:[%s233 + $0x20] sm:$0x1f] %vm364, %v4475
        %4507 = vst.msk [vmem:[%s233 + $0x28] sm:$0x1f] %vm364, %v4481
        %4508 = vst.msk [vmem:[%s233 + $0x30] sm:$0x1f] %vm364, %v4487
        %4509 = vst.msk [vmem:[%s233 + $0x38] sm:$0x1f] %vm364, %v4493
        %s4510 = smul.u32 8, %s16
        %p4511 = scmp.lt.s32.totalorder %s4510, 15
        %s4512 = scalar_select %p4511, %s4510, 15
        %s4513 = smul.addr %s4512, 8
        %s4514 = scalar_lea.vmem %s4, %s4513
        // Predicated region
        $region41: #{tpu_custom_call.1} parent=35 // pred_check
          %p4515 = pneg %p128
        $region42: #{tpu_custom_call.1} parent=35 // pred_check_branch
          %4517 = sbr.rel (%p4515) target = $region44
        $region43: #{tpu_custom_call.1} parent=35 // pred_region
          %s4518 = smul.u32 8, %s16
        $region44: #{tpu_custom_call.1} parent=35 // pred_fallthru
          _
      $region36: #{tpu_custom_call.1} parent=5 // pred_fallthru
        _
      %p4519 = scmp.le.s32.totalorder 2, %s11
      // Predicated region
      $region45: #{tpu_custom_call.1} parent=5 // pred_check
        %p4520 = pneg %p4519
      $region46: #{tpu_custom_call.1} parent=5 // pred_check_branch
        %4522 = sbr.rel (%p4520) target = $region48
      $region47: #{tpu_custom_call.1} parent=5 // pred_region
        %s4523 = ssub.s32 %s11, 2
        // Predicated region
        $region49: #{tpu_custom_call.1} parent=47 // pred_check
          %p4524 = pneg %p134
        $region50: #{tpu_custom_call.1} parent=47 // pred_check_branch
          %4526 = sbr.rel (%p4524) target = $region52
        $region51: #{tpu_custom_call.1} parent=47 // pred_region
          %s4527 = smul.u32 8, %s17
          %p4528 = scmp.lt.s32.totalorder %s4527, 15
          %s4529 = scalar_select %p4528, %s4527, 15
          %s4530 = smul.addr %s4529, 8
          %s4531 = scalar_lea.vmem %s4, %s4530
        $region52: #{tpu_custom_call.1} parent=47 // pred_fallthru
          _
      $region48: #{tpu_custom_call.1} parent=5 // pred_fallthru
        _
    $region6: #{tpu_custom_call.1} parent=1 // loop_footer
      %s15 = sadd.s32 1, %s11
    $region7: #{tpu_custom_call.1} parent=1 // loop_footer_branch
      %10 = sbr.rel target = $region3
    $region8: #{tpu_custom_call.1} parent=1 // loop_exit
      _
    %4532 = vsyncpa [#allocation4], 1
    %s4533 = scalar_lea.sflag [#allocation4], 1
    %4534 = vsyncpa %s4533, 1

</llo_original>
